<compile_context>
chip_gen: v7x
topology: tpu7x:2x2x1
jax: 0.10.0
libtpu: 0.0.40
codegen_flags: <defaults>
</compile_context>

<pallas_src>
import jax
import jax.numpy as jnp
from jax.experimental import pallas as pl
from jax.experimental.pallas import tpu as pltpu


# ----------------------------------------------------------------------------
# Kernel: one (time-block, batch-element) tile of hadamard attention.
# ----------------------------------------------------------------------------
def _hadamard_attention_kernel(x_ref, w_ref, out_ref, *att_refs):
    """
    x_ref:   (1, tT, P)     flattened input images for one batch element
    w_ref:   (tT, P, P)     attention-weight slab for this time block
    out_ref: (1, tT, P, 1)  attention-weighted output (trailing 1 dropped
                            by a free reshape outside the kernel)
    att_refs: optionally ((1, tT, P, P),) full normalized attention weights
    """
    x = x_ref[0]                       # (tT, P)
    w = w_ref[...]                     # (tT, P, P)
    tT, P = x.shape
    xb = x[:, None, :]                 # (tT, 1, P): broadcast over rows i

    scores = w * xb                    # (tT, P, P)  VPU
    m = jnp.max(scores, axis=-1, keepdims=True)        # the only XLU reduce
    e = jnp.exp(scores - m)            # (tT, P, P)  EUP

    # Offload both j-sums to the otherwise idle MXU with one batched matmul:
    #   rhs[t, 0, j] = x[t, j], rhs[t, 1, j] = 1, rhs[t, k>=2, j] = 0
    #   sums[t, i, 0] = sum_j e[t,i,j] * x[t,j]   (numerator)
    #   sums[t, i, 1] = sum_j e[t,i,j]            (softmax denominator)
    k_idx = jax.lax.broadcasted_iota(jnp.int32, (tT, 128, P), 1)
    rhs = jnp.where(k_idx == 0, xb, jnp.where(k_idx == 1, 1.0, 0.0))
    sums = jnp.einsum("tij,tkj->tik", e, rhs,
                      preferred_element_type=jnp.float32)   # (tT, P, 128)

    num = sums[:, :, 0:1]              # (tT, P, 1)
    den = sums[:, :, 1:2]              # (tT, P, 1)
    inv_den = pl.reciprocal(den)       # exact: attention rows sum to 1

    out_ref[0] = num * inv_den         # (tT, P, 1)
    if att_refs:
        # Only materialize the normalized attention matrix when requested.
        att_refs[0][0] = e * inv_den   # (tT, P, P)


# ----------------------------------------------------------------------------
# Wrapper
# ----------------------------------------------------------------------------
def _choose_t_block(T, P):
    """Largest t_block with T % t_block == 0 and (t_block % 8 == 0 or == T),
    with the (t_block, P, P) weight/att slab capped at ~2 MiB so the full
    working set (double-buffered weight + att blocks plus f32 temporaries)
    stays well under the 48 MiB VMEM limit (v7x has only 64 MiB physical)."""
    max_block_bytes = 2 * 1024 * 1024
    max_t = max(1, max_block_bytes // (P * P * 4))
    candidates = [b for b in range(1, T + 1)
                  if T % b == 0 and (b % 8 == 0 or b == T)]
    within = [b for b in candidates if b <= max_t]
    # TODO(synk): if T is large with no multiple-of-8 divisor this falls back
    # to the smallest legal block (possibly T itself) and may exceed the VMEM
    # budget; such T would need time-axis padding.
    return max(within) if within else min(candidates)


def hadamard_attention(weight, x_flat, *, t_block=None, return_attention=True):
    """out[n,t,i] = sum_j softmax_j(weight[t,i,j] * x[n,t,j]) * x[n,t,j]."""
    N, T, P = x_flat.shape
    assert weight.shape == (T, P, P)
    x_flat = x_flat.astype(jnp.float32)
    weight = weight.astype(jnp.float32)

    if t_block is None:
        t_block = _choose_t_block(T, P)
    assert T % t_block == 0
    assert t_block % 8 == 0 or t_block == T, (
        "t_block must be a multiple of 8 or equal to T (block-shape rule)")

    # Grid: time blocks outer, batch inner. The weight BlockSpec index is
    # constant across the inner (batch) axis, so Pallas skips its re-DMA.
    # Both axes are independent -> "parallel" (megacore shards them on v7x).
    grid = (T // t_block, N)

    # NOTE: stores are lane-dense (unmasked vst) when P % 128 == 0; other P
    # still work, with masked stores on the out/att writebacks.
    out_shapes = [jax.ShapeDtypeStruct((N, T, P, 1), jnp.float32)]
    out_specs = [pl.BlockSpec((1, t_block, P, 1), lambda t, n: (n, t, 0, 0))]
    if return_attention:
        out_shapes.append(jax.ShapeDtypeStruct((N, T, P, P), jnp.float32))
        out_specs.append(
            pl.BlockSpec((1, t_block, P, P), lambda t, n: (n, t, 0, 0)))
    # TODO(synk): optionally emit att in bfloat16 to halve its HBM writeback
    # on v5e (the PyTorch module returns float32, so f32 is kept here).

    results = pl.pallas_call(
        _hadamard_attention_kernel,
        out_shape=tuple(out_shapes),
        grid_spec=pltpu.PrefetchScalarGridSpec(
            num_scalar_prefetch=0,
            grid=grid,
            in_specs=[
                pl.BlockSpec((1, t_block, P), lambda t, n: (n, t, 0)),
                pl.BlockSpec((t_block, P, P), lambda t, n: (t, 0, 0)),
            ],
            out_specs=out_specs,
        ),
        compiler_params=pltpu.CompilerParams(
            dimension_semantics=("parallel", "parallel"),
            vmem_limit_bytes=48 * 1024 * 1024,
        ),
    )(x_flat, weight)

    out = results[0].reshape(N, T, P)            # free: drop the trailing 1
    att = results[1] if return_attention else None
    return out, att


def attention_block_forward(weight, x, *, t_block=None, return_attention=True):
    """Pallas equivalent of AttentionBlock.forward (method='hadamard')."""
    N, T, W, H = x.shape
    P = W * H
    x_flat = x.reshape(N, T, P)                  # free (row-major view)
    out_flat, att = hadamard_attention(
        weight, x_flat, t_block=t_block, return_attention=return_attention)
    out = out_flat.reshape(N, T, W, H)
    return out, att


# ----------------------------------------------------------------------------
# Pure-JAX reference (correctness check only)
# ----------------------------------------------------------------------------
def _reference(weight, x):
    N, T, W, H = x.shape
    P = W * H
    xf = x.reshape(N, T, P)
    scores = weight[None, :, :, :] * xf[:, :, None, :]       # (N, T, P, P)
    att = jax.nn.softmax(scores, axis=-1)
    out = jnp.einsum("ntij,ntj->nti", att, xf,
                     precision="highest").reshape(N, T, W, H)
    return out, att


if __name__ == "__main__":
    # Small shapes consistent with the module: batch=2, timesteps=8,
    # dim_x=16, dim_y=8  ->  P = dim_x * dim_y = 128 (lane-dense last dims).
    N, T, dim_x, dim_y = 2, 8, 16, 8
    P = dim_x * dim_y

    key = jax.random.PRNGKey(0)
    kx, kw = jax.random.split(key)
    x = jax.random.normal(kx, (N, T, dim_x, dim_y), jnp.float32)
    weight = 0.5 * jax.random.normal(kw, (T, P, P), jnp.float32)

    # Full forward (returns both the output and the attention matrix).
    out, att = attention_block_forward(weight, x)
    out = jax.block_until_ready(out)
    att = jax.block_until_ready(att)

    # Output-only path (skips the dominant HBM writeback entirely).
    out_only, _ = attention_block_forward(weight, x, return_attention=False)
    out_only = jax.block_until_ready(out_only)

    ref_out, ref_att = _reference(weight, x)
    assert out.shape == (N, T, dim_x, dim_y)
    assert att.shape == (N, T, P, P)
    # The softmax reciprocal is exact now; the remaining tolerance is only
    # headroom for MXU accumulation/pass ordering of the batched f32 matmul.
    assert jnp.allclose(out, ref_out, rtol=1e-2, atol=1e-4)
    assert jnp.allclose(att, ref_att, rtol=1e-2, atol=1e-4)
    assert jnp.allclose(out_only, ref_out, rtol=1e-2, atol=1e-4)
    # Exact normalization: attention rows sum to 1.
    assert jnp.allclose(jnp.sum(att, axis=-1), 1.0, atol=2e-3)
    print("KERNEL_OK")
</pallas_src>

<mosaic_0001>
module attributes {stable_mosaic.version = 11 : i64} {
  func.func @_hadamard_attention_kernel(%arg0: i32, %arg1: i32, %arg2: memref<1x8x128xf32, #tpu.memory_space<vmem>>, %arg3: memref<8x128x128xf32, #tpu.memory_space<vmem>>, %arg4: memref<1x8x128x1xf32, #tpu.memory_space<vmem>>, %arg5: memref<1x8x128x128xf32, #tpu.memory_space<vmem>>) attributes {dimension_semantics = [#tpu.dimension_semantics<parallel>, #tpu.dimension_semantics<parallel>], iteration_bounds = array<i64: 1, 2>, scalar_prefetch = 0 : i64, scratch_operands = 0 : i64, tpu.core_type = #tpu.core_type<tc>, window_params = [{transform_indices = @transform_0, window_bounds = array<i64: 1, 8, 128>}, {transform_indices = @transform_1, window_bounds = array<i64: 8, 128, 128>}, {transform_indices = @transform_2, window_bounds = array<i64: 1, 8, 128, 1>}, {transform_indices = @transform_3, window_bounds = array<i64: 1, 8, 128, 128>}]} {
    %c0 = arith.constant 0 : index
    %c0_0 = arith.constant 0 : index
    %c0_1 = arith.constant 0 : index
    %0 = vector.load %arg2[%c0, %c0_0, %c0_1] : memref<1x8x128xf32, #tpu.memory_space<vmem>>, vector<1x8x128xf32>
    %1 = vector.shape_cast %0 : vector<1x8x128xf32> to vector<8x128xf32>
    %c0_2 = arith.constant 0 : index
    %c0_3 = arith.constant 0 : index
    %c0_4 = arith.constant 0 : index
    %2 = vector.load %arg3[%c0_2, %c0_3, %c0_4] : memref<8x128x128xf32, #tpu.memory_space<vmem>>, vector<8x128x128xf32>
    %3 = vector.shape_cast %1 : vector<8x128xf32> to vector<8x1x128xf32>
    %4 = vector.broadcast %3 : vector<8x1x128xf32> to vector<8x128x128xf32>
    %5 = arith.mulf %2, %4 : vector<8x128x128xf32>
    %cst = arith.constant dense<0xFF800000> : vector<8x128xf32>
    %6 = vector.multi_reduction <maximumf>, %5, %cst [2] : vector<8x128x128xf32> to vector<8x128xf32>
    %7 = vector.shape_cast %6 : vector<8x128xf32> to vector<8x128x1xf32>
    %8 = vector.broadcast %7 : vector<8x128x1xf32> to vector<8x128x128xf32>
    %9 = arith.subf %5, %8 : vector<8x128x128xf32>
    %10 = math.exp %9 : vector<8x128x128xf32>
    %11 = tpu.iota {dimensions = array<i32: 1>} : vector<8x128x128xi32>
    %c0_i32 = arith.constant 0 : i32
    %12 = vector.broadcast %c0_i32 : i32 to vector<8x128x128xi32>
    %13 = arith.cmpi eq, %11, %12 : vector<8x128x128xi32>
    %c1_i32 = arith.constant 1 : i32
    %14 = vector.broadcast %c1_i32 : i32 to vector<8x128x128xi32>
    %15 = arith.cmpi eq, %11, %14 : vector<8x128x128xi32>
    %cst_5 = arith.constant 1.000000e+00 : f32
    %cst_6 = arith.constant 0.000000e+00 : f32
    %16 = vector.broadcast %cst_5 : f32 to vector<8x128x128xf32>
    %17 = vector.broadcast %cst_6 : f32 to vector<8x128x128xf32>
    %18 = arith.select %15, %16, %17 : vector<8x128x128xi1>, vector<8x128x128xf32>
    %19 = vector.shape_cast %3 : vector<8x1x128xf32> to vector<8x1x128xf32>
    %20 = vector.broadcast %19 : vector<8x1x128xf32> to vector<8x128x128xf32>
    %21 = arith.select %13, %20, %18 : vector<8x128x128xi1>, vector<8x128x128xf32>
    "tpu.trace_start"() <{level = 10 : i32, message = "tij,tkj->tik"}> : () -> ()
    %cst_7 = arith.constant dense<0.000000e+00> : vector<8x128x128xf32>
    %22 = tpu.matmul %10, %21, %cst_7 {dimension_numbers = #tpu.dot_dimension_numbers<[2], [2], [1], [1], [0, 0, 0, 1, 1, 1], [0], [0]>} : vector<8x128x128xf32>, vector<8x128x128xf32>, vector<8x128x128xf32> -> vector<8x128x128xf32>
    "tpu.trace_stop"() : () -> ()
    %23 = vector.extract_strided_slice %22 {offsets = [0, 0, 0], sizes = [8, 128, 1], strides = [1, 1, 1]} : vector<8x128x128xf32> to vector<8x128x1xf32>
    %24 = vector.extract_strided_slice %22 {offsets = [0, 0, 1], sizes = [8, 128, 1], strides = [1, 1, 1]} : vector<8x128x128xf32> to vector<8x128x1xf32>
    %25 = tpu.reciprocal %24 : vector<8x128x1xf32> -> vector<8x128x1xf32>
    %26 = arith.mulf %23, %25 : vector<8x128x1xf32>
    %c0_8 = arith.constant 0 : index
    %c0_9 = arith.constant 0 : index
    %c0_10 = arith.constant 0 : index
    %c0_11 = arith.constant 0 : index
    %27 = vector.load %arg4[%c0_8, %c0_9, %c0_10, %c0_11] : memref<1x8x128x1xf32, #tpu.memory_space<vmem>>, vector<1x8x128x1xf32>
    %28 = vector.shape_cast %27 : vector<1x8x128x1xf32> to vector<8x128x1xf32>
    %29 = vector.shape_cast %26 : vector<8x128x1xf32> to vector<1x8x128x1xf32>
    tpu.vector_store %arg4[%c0_8, %c0_9, %c0_10, %c0_11], %29 {strides = array<i32>} : memref<1x8x128x1xf32, #tpu.memory_space<vmem>>, vector<1x8x128x1xf32>,
    %30 = vector.broadcast %25 : vector<8x128x1xf32> to vector<8x128x128xf32>
    %31 = arith.mulf %10, %30 : vector<8x128x128xf32>
    %c0_12 = arith.constant 0 : index
    %c0_13 = arith.constant 0 : index
    %c0_14 = arith.constant 0 : index
    %c0_15 = arith.constant 0 : index
    %32 = vector.load %arg5[%c0_12, %c0_13, %c0_14, %c0_15] : memref<1x8x128x128xf32, #tpu.memory_space<vmem>>, vector<1x8x128x128xf32>
    %33 = vector.shape_cast %32 : vector<1x8x128x128xf32> to vector<8x128x128xf32>
    %34 = vector.shape_cast %31 : vector<8x128x128xf32> to vector<1x8x128x128xf32>
    tpu.vector_store %arg5[%c0_12, %c0_13, %c0_14, %c0_15], %34 {strides = array<i32>} : memref<1x8x128x128xf32, #tpu.memory_space<vmem>>, vector<1x8x128x128xf32>,
    return
  }
  func.func @transform_0(%arg0: i32, %arg1: i32) -> (i32, i32, i32) {
    %c0_i32 = arith.constant 0 : i32
    %c0_i32_0 = arith.constant 0 : i32
    return %arg1, %arg0, %c0_i32 : i32, i32, i32
  }
  func.func @transform_1(%arg0: i32, %arg1: i32) -> (i32, i32, i32) {
    %c0_i32 = arith.constant 0 : i32
    %c0_i32_0 = arith.constant 0 : i32
    %c0_i32_1 = arith.constant 0 : i32
    return %arg0, %c0_i32, %c0_i32_0 : i32, i32, i32
  }
  func.func @transform_2(%arg0: i32, %arg1: i32) -> (i32, i32, i32, i32) {
    %c0_i32 = arith.constant 0 : i32
    %c0_i32_0 = arith.constant 0 : i32
    %c0_i32_1 = arith.constant 0 : i32
    return %arg1, %arg0, %c0_i32, %c0_i32_0 : i32, i32, i32, i32
  }
  func.func @transform_3(%arg0: i32, %arg1: i32) -> (i32, i32, i32, i32) {
    %c0_i32 = arith.constant 0 : i32
    %c0_i32_0 = arith.constant 0 : i32
    %c0_i32_1 = arith.constant 0 : i32
    return %arg1, %arg0, %c0_i32, %c0_i32_0 : i32, i32, i32, i32
  }
}

</mosaic_0001>

<llo_original>
// kernel: tpu_custom_call.1
$region0: #{tpu_custom_call.1}
  #allocation0 [shape = 'u32[]', space=smem, size = 0x4, offset = 0x4, fixed_abs, tag = 'smem constant byte address 0x4 - core index']
  #allocation1 [shape = 'u32[144,128]{1,0:T(1,128)}', space=vmem, size = 0x12000, scoped, tag = 'internal scratch']
  %s0 = inlined_call_operand.hbm [shape: f32[2,8,128], index: 0, kind: input, shape index: {}]
  %s1 = inlined_call_operand.hbm [shape: f32[8,128,128], index: 1, kind: input, shape index: {}]
  %s2 = inlined_call_operand.vmem [shape: f32[2,8,128,1], index: 2, kind: output, shape index: {0}]
  %s3 = inlined_call_operand.hbm [shape: f32[2,8,128,128], index: 3, kind: output, shape index: {1}]
  %4 = xla_tuple %s2, %s3
  %s5 = sld [smem:[#allocation0]]
  $region57: #{tpu_custom_call.1} parent=0
    _
  %s7 = ssub.s32 1, %s5
  %s8 = scalar_select 0, %s7, %s5
  $region1: #{tpu_custom_call.1} parent=0
    #allocation2 [shape = 'u8[8192]{0}', space=vmem, size = 0x2000, scoped, tag = 'input window, operand 0']
    #allocation3 [shape = 's32[2]{0}', space=sflag, size = 0x8, scoped, tag = 'scoped memory for tpu_custom_call.1']
    #allocation4 [shape = 's32[2]{0}', space=sflag, size = 0x8, scoped, tag = 'scoped memory for tpu_custom_call.1']
    #allocation5 [shape = 'u8[524288]{0}', space=vmem, size = 0x80000, scoped, tag = 'input window, operand 1, single buffered']
    #allocation6 [shape = 's32[1]{0}', space=sflag, size = 0x4, scoped, tag = 'scoped memory for tpu_custom_call.1']
    #allocation7 [shape = 'u8[1048576]{0}', space=vmem, size = 0x100000, scoped, tag = 'output window, operand 1']
    %9 = vsyncpa [#allocation3], 0
    %s10 = scalar_lea.sflag [#allocation3], 1
    %11 = vsyncpa %s10, 0
    %12 = vsyncpa [#allocation6], 0
    %13 = vsyncpa [#allocation4], 0
    %s14 = scalar_lea.sflag [#allocation4], 1
    %15 = vsyncpa %s14, 0
    loop: start=0, step=1, limit=4
    $region2: #{tpu_custom_call.1} parent=1 // loop_pre_header
      _
    $region3: #{tpu_custom_call.1} parent=1 // loop_header
      %s17 = sphi 0, %s21
      %p18 = scmp.ge.s32.totalorder %s17, 4
      %s24 = sphi 0, %s36
      %s25 = sphi 0, %s32
      %s26 = sphi 0, %s24
      %s27 = sphi 0, %s25
      %s28 = sphi 0, %s26
      %s29 = sphi 0, %s27
      %s41 = sphi 0, %s43
      %s44 = sphi 0, %s41
      %s45 = sphi 0, %s44
      %s61 = sphi 0, %s45
      %s67 = sphi 0, %s69
      %s70 = sphi 0, %s67
      %s71 = sphi 0, %s70
      %s87 = sphi 0, %s71
      %s95 = sphi 0, %s97
      %s98 = sphi 0, %s95
      %s99 = sphi 0, %s98
      %s115 = sphi 0, %s99
      %s123 = sphi 0, %s125
      %s126 = sphi 0, %s123
      %s127 = sphi 0, %s126
      %s143 = sphi 0, %s127
    $region4: #{tpu_custom_call.1} parent=1 // loop_header_branch
      %20 = sbr.rel (%p18) target = $region8
    $region5: #{tpu_custom_call.1} parent=1 // loop_body
      %s22 = ssub.s32 %s17, 1
      %s23 = ssub.s32 %s17, 2
      %s30 = sadd.s32 1, %s25
      %p31 = scmp.ge.s32.totalorder %s30, 2
      %s32 = scalar_select %p31, 0, %s30
      %s33 = sadd.s32 1, %s24
      %s34 = scalar_select %p31, %s33, %s24
      %p35 = scmp.ge.s32.totalorder %s34, 1
      %s36 = scalar_select %p35, 0, %s34
      %s37 = ssub.s32 %s25, %s32
      %s38 = ssub.s32 %s24, %s36
      %s39 = sor.u32 %s37, %s38
      %p40 = scmp.eq.s32.totalorder %s39, 0
      %s42 = sadd.s32 %s41, 1
      %s43 = scalar_select %p40, %s41, %s42
      %p46 = pneg %p40
      %p47 = scmp.eq.s32.totalorder %s17, 1
      %p48 = por %p46, %p47
      %p49 = scmp.ne.s32.totalorder %s41, %s44
      %p50 = scmp.eq.s32.totalorder %s17, 0
      %p51 = por %p49, %p50
      %p52 = scmp.ne.s32.totalorder %s41, %s44
      %p53 = scmp.eq.s32.totalorder %s22, 1
      %p54 = por %p52, %p53
      %p55 = scmp.ne.s32.totalorder %s44, %s45
      %p56 = scmp.eq.s32.totalorder %s22, 0
      %p57 = por %p55, %p56
      %p58 = scmp.ne.s32.totalorder %s44, %s45
      %p59 = scmp.eq.s32.totalorder %s23, 1
      %p60 = por %p58, %p59
      %p62 = scmp.ne.s32.totalorder %s45, %s61
      %p63 = scmp.eq.s32.totalorder %s23, 0
      %p64 = por %p62, %p63
      %s65 = ssub.s32 %s24, %s36
      %p66 = scmp.eq.s32.totalorder %s65, 0
      %s68 = sadd.s32 %s67, 1
      %s69 = scalar_select %p66, %s67, %s68
      %p72 = pneg %p66
      %p73 = scmp.eq.s32.totalorder %s17, 1
      %p74 = por %p72, %p73
      %p75 = scmp.ne.s32.totalorder %s67, %s70
      %p76 = scmp.eq.s32.totalorder %s17, 0
      %p77 = por %p75, %p76
      %p78 = scmp.ne.s32.totalorder %s67, %s70
      %p79 = scmp.eq.s32.totalorder %s22, 1
      %p80 = por %p78, %p79
      %p81 = scmp.ne.s32.totalorder %s70, %s71
      %p82 = scmp.eq.s32.totalorder %s22, 0
      %p83 = por %p81, %p82
      %p84 = scmp.ne.s32.totalorder %s70, %s71
      %p85 = scmp.eq.s32.totalorder %s23, 1
      %p86 = por %p84, %p85
      %p88 = scmp.ne.s32.totalorder %s71, %s87
      %p89 = scmp.eq.s32.totalorder %s23, 0
      %p90 = por %p88, %p89
      %s91 = ssub.s32 %s25, %s32
      %s92 = ssub.s32 %s24, %s36
      %s93 = sor.u32 %s91, %s92
      %p94 = scmp.eq.s32.totalorder %s93, 0
      %s96 = sadd.s32 %s95, 1
      %s97 = scalar_select %p94, %s95, %s96
      %p100 = pneg %p94
      %p101 = scmp.eq.s32.totalorder %s17, 1
      %p102 = por %p100, %p101
      %p103 = scmp.ne.s32.totalorder %s95, %s98
      %p104 = scmp.eq.s32.totalorder %s17, 0
      %p105 = por %p103, %p104
      %p106 = scmp.ne.s32.totalorder %s95, %s98
      %p107 = scmp.eq.s32.totalorder %s22, 1
      %p108 = por %p106, %p107
      %p109 = scmp.ne.s32.totalorder %s98, %s99
      %p110 = scmp.eq.s32.totalorder %s22, 0
      %p111 = por %p109, %p110
      %p112 = scmp.ne.s32.totalorder %s98, %s99
      %p113 = scmp.eq.s32.totalorder %s23, 1
      %p114 = por %p112, %p113
      %p116 = scmp.ne.s32.totalorder %s99, %s115
      %p117 = scmp.eq.s32.totalorder %s23, 0
      %p118 = por %p116, %p117
      %s119 = ssub.s32 %s25, %s32
      %s120 = ssub.s32 %s24, %s36
      %s121 = sor.u32 %s119, %s120
      %p122 = scmp.eq.s32.totalorder %s121, 0
      %s124 = sadd.s32 %s123, 1
      %s125 = scalar_select %p122, %s123, %s124
      %p128 = pneg %p122
      %p129 = scmp.eq.s32.totalorder %s17, 1
      %p130 = por %p128, %p129
      %p131 = scmp.ne.s32.totalorder %s123, %s126
      %p132 = scmp.eq.s32.totalorder %s17, 0
      %p133 = por %p131, %p132
      %p134 = scmp.ne.s32.totalorder %s123, %s126
      %p135 = scmp.eq.s32.totalorder %s22, 1
      %p136 = por %p134, %p135
      %p137 = scmp.ne.s32.totalorder %s126, %s127
      %p138 = scmp.eq.s32.totalorder %s22, 0
      %p139 = por %p137, %p138
      %p140 = scmp.ne.s32.totalorder %s126, %s127
      %p141 = scmp.eq.s32.totalorder %s23, 1
      %p142 = por %p140, %p141
      %p144 = scmp.ne.s32.totalorder %s127, %s143
      %p145 = scmp.eq.s32.totalorder %s23, 0
      %p146 = por %p144, %p145
      %p147 = scmp.le.s32.totalorder 1, %s17
      %p148 = scmp.lt.s32.totalorder %s17, 3
      %p149 = pnand %p147, %p148
      %p150 = pneg %p149
      // Predicated region
      $region9: #{tpu_custom_call.1} parent=5 // pred_check
        _
      $region10: #{tpu_custom_call.1} parent=5 // pred_check_branch
        %152 = sbr.rel (%p149) target = $region12
      $region11: #{tpu_custom_call.1} parent=5 // pred_region
        %s153 = ssub.s32 %s17, 1
        // Predicated region
        $region13: #{tpu_custom_call.1} parent=11 // pred_check
          %p154 = pneg %p83
        $region14: #{tpu_custom_call.1} parent=11 // pred_check_branch
          %156 = sbr.rel (%p154) target = $region16
        $region15: #{tpu_custom_call.1} parent=11 // pred_region
          %s157 = smul.u32 8, %s26
          %s159 = ssub.s32 16384, 16384
          %160 = vsyncadd [#allocation6], %s159
          %s161 = smul.addr %s157, 16
          %s162 = smul.addr %s161, 128
          %s163 = scalar_lea.hbm %s1, %s162
          %s164 = sshll.u32 [#allocation5], 4
          %s165 = int_to_ptr.vmem [resolvable:$true] %s164
          %170 = dma.hbm_to_vmem [thread:$0]  %s163, 16384, %s165, [#allocation6], 128, 128, 8
        $region16: #{tpu_custom_call.1} parent=11 // pred_fallthru
          _
      $region12: #{tpu_custom_call.1} parent=5 // pred_fallthru
        _
      %p171 = scmp.lt.s32.totalorder %s17, 2
      // Predicated region
      $region17: #{tpu_custom_call.1} parent=5 // pred_check
        %p172 = pneg %p171
      $region18: #{tpu_custom_call.1} parent=5 // pred_check_branch
        %174 = sbr.rel (%p172) target = $region20
      $region19: #{tpu_custom_call.1} parent=5 // pred_region
        // Predicated region
        $region21: #{tpu_custom_call.1} parent=19 // pred_check
          %p175 = pneg %p51
        $region22: #{tpu_custom_call.1} parent=19 // pred_check_branch
          %177 = sbr.rel (%p175) target = $region24
        $region23: #{tpu_custom_call.1} parent=19 // pred_region
          %s178 = sand.u32 %s41, 1
          %s179 = scalar_lea.sflag [#allocation3], %s178
          %s180 = sand.u32 %s41, 1
          %s181 = smul.addr %s180, 8
          %s182 = scalar_lea.vmem [#allocation2], %s181
          %s184 = ssub.s32 128, 128
          %185 = vsyncadd %s179, %s184
          %s186 = sadd.s32 %s24, %s25
          %s187 = smul.addr %s186, 128
          %s188 = scalar_lea.hbm %s0, %s187
          %s190 = sshll.u32 %s182, 4
          %s191 = int_to_ptr.vmem [resolvable:$true] %s190
          %193 = dma.hbm_to_vmem [thread:$0]  %s188, 128, %s191, %s179
        $region24: #{tpu_custom_call.1} parent=19 // pred_fallthru
          _
      $region20: #{tpu_custom_call.1} parent=5 // pred_fallthru
        _
      %p194 = scmp.le.s32.totalorder 1, %s17
      %p195 = scmp.lt.s32.totalorder %s17, 3
      %p196 = pnand %p194, %p195
      %p197 = pneg %p196
      // Predicated region
      $region25: #{tpu_custom_call.1} parent=5 // pred_check
        _
      $region26: #{tpu_custom_call.1} parent=5 // pred_check_branch
        %199 = sbr.rel (%p196) target = $region28
      $region27: #{tpu_custom_call.1} parent=5 // pred_region
        %s200 = ssub.s32 %s17, 1
        %s201 = sand.u32 %s44, 1
        %s202 = scalar_lea.sflag [#allocation3], %s201
        %s203 = sand.u32 %s44, 1
        %s204 = smul.addr %s203, 8
        %s205 = scalar_lea.vmem [#allocation2], %s204
        // Predicated region
        $region29: #{tpu_custom_call.1} parent=27 // pred_check
          %p206 = pneg %p57
        $region30: #{tpu_custom_call.1} parent=27 // pred_check_branch
          %208 = sbr.rel (%p206) target = $region32
        $region31: #{tpu_custom_call.1} parent=27 // pred_region
          %209 = dma.done %s202, 128
        $region32: #{tpu_custom_call.1} parent=27 // pred_fallthru
          _
        // Predicated region
        $region33: #{tpu_custom_call.1} parent=27 // pred_check
          %p210 = pneg %p83
        $region34: #{tpu_custom_call.1} parent=27 // pred_check_branch
          %212 = sbr.rel (%p210) target = $region36
        $region35: #{tpu_custom_call.1} parent=27 // pred_region
          %213 = dma.done [#allocation6], 16384
        $region36: #{tpu_custom_call.1} parent=27 // pred_fallthru
          _
        %s214 = sand.u32 %s44, 1
        %s215 = scalar_lea.sflag [#allocation3], %s214
        %s216 = sand.u32 %s44, 1
        %s217 = smul.addr %s216, 8
        %s218 = scalar_lea.vmem [#allocation2], %s217
        %p219 = pneg %p57
        %p220 = pneg %p54
        %p221 = pneg %p83
        %p222 = pneg %p80
        %p223 = pneg %p111
        %p224 = pneg %p108
        %s225 = smul.u32 8, %s26
        %p226 = scmp.lt.s32.totalorder %s27, 1
        %s227 = scalar_select %p226, %s27, 1
        %p228 = scmp.lt.s32.totalorder %s225, 7
        %s229 = scalar_select %p228, %s225, 7
        %s230 = smul.addr %s229, 16
        %s231 = smul.addr %s227, 128
        %s232 = sadd.s32 %s230, %s231
        %s233 = smul.addr %s232, 8
        %s234 = scalar_lea.vmem %s2, %s233
        %p235 = pneg %p139
        %p236 = pneg %p136
        %s237 = sand.u32 %s126, 1
        %s238 = scalar_lea.sflag [#allocation4], %s237
        %s239 = sand.u32 %s126, 1
        %s240 = smul.addr %s239, 1024
        %s241 = scalar_lea.vmem [#allocation7], %s240
        %s242 = smul.u32 8, %s26
        %s243 = smul.u32 8, %s26
        %p244 = scmp.lt.s32.totalorder %s27, 1
        %s245 = scalar_select %p244, %s27, 1
        %p246 = scmp.lt.s32.totalorder %s243, 7
        %s247 = scalar_select %p246, %s243, 7
        %s248 = smul.addr %s247, 16
        %s249 = smul.addr %s245, 128
        %s250 = sadd.s32 %s248, %s249
        %s251 = smul.addr %s250, 8
        %s252 = scalar_lea.vmem %s2, %s251
        %s253 = smul.u32 8, %s26
        %s254 = smul.u32 8, %s26
        %v255 = vld [vmem:[%s205] sm:$0xff]
        %v256 = vld [vmem:[#allocation5] sm:$0xff]
        %v257 = vld [vmem:[#allocation5 + $0x8] sm:$0xff]
        %v258 = vld [vmem:[#allocation5 + $0x10] sm:$0xff]
        %v259 = vld [vmem:[#allocation5 + $0x18] sm:$0xff]
        %v260 = vld [vmem:[#allocation5 + $0x20] sm:$0xff]
        %v261 = vld [vmem:[#allocation5 + $0x28] sm:$0xff]
        %v262 = vld [vmem:[#allocation5 + $0x30] sm:$0xff]
        %v263 = vld [vmem:[#allocation5 + $0x38] sm:$0xff]
        %v264 = vld [vmem:[#allocation5 + $0x40] sm:$0xff]
        %v265 = vld [vmem:[#allocation5 + $0x48] sm:$0xff]
        %v266 = vld [vmem:[#allocation5 + $0x50] sm:$0xff]
        %v267 = vld [vmem:[#allocation5 + $0x58] sm:$0xff]
        %v268 = vld [vmem:[#allocation5 + $0x60] sm:$0xff]
        %v269 = vld [vmem:[#allocation5 + $0x68] sm:$0xff]
        %v270 = vld [vmem:[#allocation5 + $0x70] sm:$0xff]
        %v271 = vld [vmem:[#allocation5 + $0x78] sm:$0xff]
        %v272 = vld [vmem:[#allocation5 + $0x80] sm:$0xff]
        %v273 = vld [vmem:[#allocation5 + $0x88] sm:$0xff]
        %v274 = vld [vmem:[#allocation5 + $0x90] sm:$0xff]
        %v275 = vld [vmem:[#allocation5 + $0x98] sm:$0xff]
        %v276 = vld [vmem:[#allocation5 + $0xa0] sm:$0xff]
        %v277 = vld [vmem:[#allocation5 + $0xa8] sm:$0xff]
        %v278 = vld [vmem:[#allocation5 + $0xb0] sm:$0xff]
        %v279 = vld [vmem:[#allocation5 + $0xb8] sm:$0xff]
        %v280 = vld [vmem:[#allocation5 + $0xc0] sm:$0xff]
        %v281 = vld [vmem:[#allocation5 + $0xc8] sm:$0xff]
        %v282 = vld [vmem:[#allocation5 + $0xd0] sm:$0xff]
        %v283 = vld [vmem:[#allocation5 + $0xd8] sm:$0xff]
        %v284 = vld [vmem:[#allocation5 + $0xe0] sm:$0xff]
        %v285 = vld [vmem:[#allocation5 + $0xe8] sm:$0xff]
        %v286 = vld [vmem:[#allocation5 + $0xf0] sm:$0xff]
        %v287 = vld [vmem:[#allocation5 + $0xf8] sm:$0xff]
        %v288 = vld [vmem:[#allocation5 + $0x100] sm:$0xff]
        %v289 = vld [vmem:[#allocation5 + $0x108] sm:$0xff]
        %v290 = vld [vmem:[#allocation5 + $0x110] sm:$0xff]
        %v291 = vld [vmem:[#allocation5 + $0x118] sm:$0xff]
        %v292 = vld [vmem:[#allocation5 + $0x120] sm:$0xff]
        %v293 = vld [vmem:[#allocation5 + $0x128] sm:$0xff]
        %v294 = vld [vmem:[#allocation5 + $0x130] sm:$0xff]
        %v295 = vld [vmem:[#allocation5 + $0x138] sm:$0xff]
        %v296 = vld [vmem:[#allocation5 + $0x140] sm:$0xff]
        %v297 = vld [vmem:[#allocation5 + $0x148] sm:$0xff]
        %v298 = vld [vmem:[#allocation5 + $0x150] sm:$0xff]
        %v299 = vld [vmem:[#allocation5 + $0x158] sm:$0xff]
        %v300 = vld [vmem:[#allocation5 + $0x160] sm:$0xff]
        %v301 = vld [vmem:[#allocation5 + $0x168] sm:$0xff]
        %v302 = vld [vmem:[#allocation5 + $0x170] sm:$0xff]
        %v303 = vld [vmem:[#allocation5 + $0x178] sm:$0xff]
        %v304 = vld [vmem:[#allocation5 + $0x180] sm:$0xff]
        %v305 = vld [vmem:[#allocation5 + $0x188] sm:$0xff]
        %v306 = vld [vmem:[#allocation5 + $0x190] sm:$0xff]
        %v307 = vld [vmem:[#allocation5 + $0x198] sm:$0xff]
        %v308 = vld [vmem:[#allocation5 + $0x1a0] sm:$0xff]
        %v309 = vld [vmem:[#allocation5 + $0x1a8] sm:$0xff]
        %v310 = vld [vmem:[#allocation5 + $0x1b0] sm:$0xff]
        %v311 = vld [vmem:[#allocation5 + $0x1b8] sm:$0xff]
        %v312 = vld [vmem:[#allocation5 + $0x1c0] sm:$0xff]
        %v313 = vld [vmem:[#allocation5 + $0x1c8] sm:$0xff]
        %v314 = vld [vmem:[#allocation5 + $0x1d0] sm:$0xff]
        %v315 = vld [vmem:[#allocation5 + $0x1d8] sm:$0xff]
        %v316 = vld [vmem:[#allocation5 + $0x1e0] sm:$0xff]
        %v317 = vld [vmem:[#allocation5 + $0x1e8] sm:$0xff]
        %v318 = vld [vmem:[#allocation5 + $0x1f0] sm:$0xff]
        %v319 = vld [vmem:[#allocation5 + $0x1f8] sm:$0xff]
        %v320 = vld [vmem:[#allocation5 + $0x200] sm:$0xff]
        %v321 = vld [vmem:[#allocation5 + $0x208] sm:$0xff]
        %v322 = vld [vmem:[#allocation5 + $0x210] sm:$0xff]
        %v323 = vld [vmem:[#allocation5 + $0x218] sm:$0xff]
        %v324 = vld [vmem:[#allocation5 + $0x220] sm:$0xff]
        %v325 = vld [vmem:[#allocation5 + $0x228] sm:$0xff]
        %v326 = vld [vmem:[#allocation5 + $0x230] sm:$0xff]
        %v327 = vld [vmem:[#allocation5 + $0x238] sm:$0xff]
        %v328 = vld [vmem:[#allocation5 + $0x240] sm:$0xff]
        %v329 = vld [vmem:[#allocation5 + $0x248] sm:$0xff]
        %v330 = vld [vmem:[#allocation5 + $0x250] sm:$0xff]
        %v331 = vld [vmem:[#allocation5 + $0x258] sm:$0xff]
        %v332 = vld [vmem:[#allocation5 + $0x260] sm:$0xff]
        %v333 = vld [vmem:[#allocation5 + $0x268] sm:$0xff]
        %v334 = vld [vmem:[#allocation5 + $0x270] sm:$0xff]
        %v335 = vld [vmem:[#allocation5 + $0x278] sm:$0xff]
        %v336 = vld [vmem:[#allocation5 + $0x280] sm:$0xff]
        %v337 = vld [vmem:[#allocation5 + $0x288] sm:$0xff]
        %v338 = vld [vmem:[#allocation5 + $0x290] sm:$0xff]
        %v339 = vld [vmem:[#allocation5 + $0x298] sm:$0xff]
        %v340 = vld [vmem:[#allocation5 + $0x2a0] sm:$0xff]
        %v341 = vld [vmem:[#allocation5 + $0x2a8] sm:$0xff]
        %v342 = vld [vmem:[#allocation5 + $0x2b0] sm:$0xff]
        %v343 = vld [vmem:[#allocation5 + $0x2b8] sm:$0xff]
        %v344 = vld [vmem:[#allocation5 + $0x2c0] sm:$0xff]
        %v345 = vld [vmem:[#allocation5 + $0x2c8] sm:$0xff]
        %v346 = vld [vmem:[#allocation5 + $0x2d0] sm:$0xff]
        %v347 = vld [vmem:[#allocation5 + $0x2d8] sm:$0xff]
        %v348 = vld [vmem:[#allocation5 + $0x2e0] sm:$0xff]
        %v349 = vld [vmem:[#allocation5 + $0x2e8] sm:$0xff]
        %v350 = vld [vmem:[#allocation5 + $0x2f0] sm:$0xff]
        %v351 = vld [vmem:[#allocation5 + $0x2f8] sm:$0xff]
        %v352 = vld [vmem:[#allocation5 + $0x300] sm:$0xff]
        %v353 = vld [vmem:[#allocation5 + $0x308] sm:$0xff]
        %v354 = vld [vmem:[#allocation5 + $0x310] sm:$0xff]
        %v355 = vld [vmem:[#allocation5 + $0x318] sm:$0xff]
        %v356 = vld [vmem:[#allocation5 + $0x320] sm:$0xff]
        %v357 = vld [vmem:[#allocation5 + $0x328] sm:$0xff]
        %v358 = vld [vmem:[#allocation5 + $0x330] sm:$0xff]
        %v359 = vld [vmem:[#allocation5 + $0x338] sm:$0xff]
        %v360 = vld [vmem:[#allocation5 + $0x340] sm:$0xff]
        %v361 = vld [vmem:[#allocation5 + $0x348] sm:$0xff]
        %v362 = vld [vmem:[#allocation5 + $0x350] sm:$0xff]
        %v363 = vld [vmem:[#allocation5 + $0x358] sm:$0xff]
        %v364 = vld [vmem:[#allocation5 + $0x360] sm:$0xff]
        %v365 = vld [vmem:[#allocation5 + $0x368] sm:$0xff]
        %v366 = vld [vmem:[#allocation5 + $0x370] sm:$0xff]
        %v367 = vld [vmem:[#allocation5 + $0x378] sm:$0xff]
        %v368 = vld [vmem:[#allocation5 + $0x380] sm:$0xff]
        %v369 = vld [vmem:[#allocation5 + $0x388] sm:$0xff]
        %v370 = vld [vmem:[#allocation5 + $0x390] sm:$0xff]
        %v371 = vld [vmem:[#allocation5 + $0x398] sm:$0xff]
        %v372 = vld [vmem:[#allocation5 + $0x3a0] sm:$0xff]
        %v373 = vld [vmem:[#allocation5 + $0x3a8] sm:$0xff]
        %v374 = vld [vmem:[#allocation5 + $0x3b0] sm:$0xff]
        %v375 = vld [vmem:[#allocation5 + $0x3b8] sm:$0xff]
        %v376 = vld [vmem:[#allocation5 + $0x3c0] sm:$0xff]
        %v377 = vld [vmem:[#allocation5 + $0x3c8] sm:$0xff]
        %v378 = vld [vmem:[#allocation5 + $0x3d0] sm:$0xff]
        %v379 = vld [vmem:[#allocation5 + $0x3d8] sm:$0xff]
        %v380 = vld [vmem:[#allocation5 + $0x3e0] sm:$0xff]
        %v381 = vld [vmem:[#allocation5 + $0x3e8] sm:$0xff]
        %v382 = vld [vmem:[#allocation5 + $0x3f0] sm:$0xff]
        %v383 = vld [vmem:[#allocation5 + $0x3f8] sm:$0xff]
        %v385 = vcombine.high %v255, %v255
        %v387 = vunpack.c.l.s4 1966171168
        %v388 = vunpack.c.0.s8 %v387
        %v389 = vlaneseq
        %v390 = vshrl.u32 %v389, 7
        %v391 = vsub.s32 %v388, %v390
        %v392 = vrot.slane %v255, %v391
        %v394 = vunpack.c.l.s4 1966171168
        %v395 = vunpack.c.0.s8 %v394
        %v396 = vlaneseq
        %v397 = vshrl.u32 %v396, 7
        %v398 = vsub.s32 %v395, %v397
        %v399 = vrot.slane %v385, %v398
        %v400 = vcombine.high %v392, %v392
        %v401 = vcombine.high %v399, %v399
        %v403 = vunpack.c.l.s4 1966171168
        %v404 = vunpack.c.0.s8 %v403
        %v405 = vlaneseq
        %v406 = vshrl.u32 %v405, 7
        %v407 = vsub.s32 %v404, %v406
        %v408 = vrot.slane %v392, %v407
        %v410 = vunpack.c.l.s4 1966171168
        %v411 = vunpack.c.0.s8 %v410
        %v412 = vlaneseq
        %v413 = vshrl.u32 %v412, 7
        %v414 = vsub.s32 %v411, %v413
        %v415 = vrot.slane %v399, %v414
        %v417 = vunpack.c.l.s4 1966171168
        %v418 = vunpack.c.0.s8 %v417
        %v419 = vlaneseq
        %v420 = vshrl.u32 %v419, 7
        %v421 = vsub.s32 %v418, %v420
        %v422 = vrot.slane %v400, %v421
        %v424 = vunpack.c.l.s4 1966171168
        %v425 = vunpack.c.0.s8 %v424
        %v426 = vlaneseq
        %v427 = vshrl.u32 %v426, 7
        %v428 = vsub.s32 %v425, %v427
        %v429 = vrot.slane %v401, %v428
        %v430 = vcombine.high %v408, %v408
        %v431 = vcombine.high %v415, %v415
        %v432 = vcombine.high %v422, %v422
        %v433 = vcombine.high %v429, %v429
        %v434 = vlaneseq
        %v435 = vshrl.u32 %v434, 7
        %v436 = vsub.s32 0, %v435
        %v437 = vrot.slane %v408, %v436
        %v438 = vlaneseq
        %v439 = vshrl.u32 %v438, 7
        %v440 = vsub.s32 0, %v439
        %v441 = vrot.slane %v422, %v440
        %v442 = vlaneseq
        %v443 = vshrl.u32 %v442, 7
        %v444 = vsub.s32 0, %v443
        %v445 = vrot.slane %v430, %v444
        %v446 = vlaneseq
        %v447 = vshrl.u32 %v446, 7
        %v448 = vsub.s32 0, %v447
        %v449 = vrot.slane %v432, %v448
        %v450 = vlaneseq
        %v451 = vshrl.u32 %v450, 7
        %v452 = vsub.s32 0, %v451
        %v453 = vrot.slane %v415, %v452
        %v454 = vlaneseq
        %v455 = vshrl.u32 %v454, 7
        %v456 = vsub.s32 0, %v455
        %v457 = vrot.slane %v429, %v456
        %v458 = vlaneseq
        %v459 = vshrl.u32 %v458, 7
        %v460 = vsub.s32 0, %v459
        %v461 = vrot.slane %v431, %v460
        %v462 = vlaneseq
        %v463 = vshrl.u32 %v462, 7
        %v464 = vsub.s32 0, %v463
        %v465 = vrot.slane %v433, %v464
        %v474 = vmul.f32 %v256, %v437
        %v475 = vmul.f32 %v257, %v437
        %v476 = vmul.f32 %v258, %v437
        %v477 = vmul.f32 %v259, %v437
        %v478 = vmul.f32 %v260, %v437
        %v479 = vmul.f32 %v261, %v437
        %v480 = vmul.f32 %v262, %v437
        %v481 = vmul.f32 %v263, %v437
        %v482 = vmul.f32 %v264, %v437
        %v483 = vmul.f32 %v265, %v437
        %v484 = vmul.f32 %v266, %v437
        %v485 = vmul.f32 %v267, %v437
        %v486 = vmul.f32 %v268, %v437
        %v487 = vmul.f32 %v269, %v437
        %v488 = vmul.f32 %v270, %v437
        %v489 = vmul.f32 %v271, %v437
        %v490 = vmul.f32 %v272, %v441
        %v491 = vmul.f32 %v273, %v441
        %v492 = vmul.f32 %v274, %v441
        %v493 = vmul.f32 %v275, %v441
        %v494 = vmul.f32 %v276, %v441
        %v495 = vmul.f32 %v277, %v441
        %v496 = vmul.f32 %v278, %v441
        %v497 = vmul.f32 %v279, %v441
        %v498 = vmul.f32 %v280, %v441
        %v499 = vmul.f32 %v281, %v441
        %v500 = vmul.f32 %v282, %v441
        %v501 = vmul.f32 %v283, %v441
        %v502 = vmul.f32 %v284, %v441
        %v503 = vmul.f32 %v285, %v441
        %v504 = vmul.f32 %v286, %v441
        %v505 = vmul.f32 %v287, %v441
        %v506 = vmul.f32 %v288, %v445
        %v507 = vmul.f32 %v289, %v445
        %v508 = vmul.f32 %v290, %v445
        %v509 = vmul.f32 %v291, %v445
        %v510 = vmul.f32 %v292, %v445
        %v511 = vmul.f32 %v293, %v445
        %v512 = vmul.f32 %v294, %v445
        %v513 = vmul.f32 %v295, %v445
        %v514 = vmul.f32 %v296, %v445
        %v515 = vmul.f32 %v297, %v445
        %v516 = vmul.f32 %v298, %v445
        %v517 = vmul.f32 %v299, %v445
        %v518 = vmul.f32 %v300, %v445
        %v519 = vmul.f32 %v301, %v445
        %v520 = vmul.f32 %v302, %v445
        %v521 = vmul.f32 %v303, %v445
        %v522 = vmul.f32 %v304, %v449
        %v523 = vmul.f32 %v305, %v449
        %v524 = vmul.f32 %v306, %v449
        %v525 = vmul.f32 %v307, %v449
        %v526 = vmul.f32 %v308, %v449
        %v527 = vmul.f32 %v309, %v449
        %v528 = vmul.f32 %v310, %v449
        %v529 = vmul.f32 %v311, %v449
        %v530 = vmul.f32 %v312, %v449
        %v531 = vmul.f32 %v313, %v449
        %v532 = vmul.f32 %v314, %v449
        %v533 = vmul.f32 %v315, %v449
        %v534 = vmul.f32 %v316, %v449
        %v535 = vmul.f32 %v317, %v449
        %v536 = vmul.f32 %v318, %v449
        %v537 = vmul.f32 %v319, %v449
        %v538 = vmul.f32 %v320, %v453
        %v539 = vmul.f32 %v321, %v453
        %v540 = vmul.f32 %v322, %v453
        %v541 = vmul.f32 %v323, %v453
        %v542 = vmul.f32 %v324, %v453
        %v543 = vmul.f32 %v325, %v453
        %v544 = vmul.f32 %v326, %v453
        %v545 = vmul.f32 %v327, %v453
        %v546 = vmul.f32 %v328, %v453
        %v547 = vmul.f32 %v329, %v453
        %v548 = vmul.f32 %v330, %v453
        %v549 = vmul.f32 %v331, %v453
        %v550 = vmul.f32 %v332, %v453
        %v551 = vmul.f32 %v333, %v453
        %v552 = vmul.f32 %v334, %v453
        %v553 = vmul.f32 %v335, %v453
        %v554 = vmul.f32 %v336, %v457
        %v555 = vmul.f32 %v337, %v457
        %v556 = vmul.f32 %v338, %v457
        %v557 = vmul.f32 %v339, %v457
        %v558 = vmul.f32 %v340, %v457
        %v559 = vmul.f32 %v341, %v457
        %v560 = vmul.f32 %v342, %v457
        %v561 = vmul.f32 %v343, %v457
        %v562 = vmul.f32 %v344, %v457
        %v563 = vmul.f32 %v345, %v457
        %v564 = vmul.f32 %v346, %v457
        %v565 = vmul.f32 %v347, %v457
        %v566 = vmul.f32 %v348, %v457
        %v567 = vmul.f32 %v349, %v457
        %v568 = vmul.f32 %v350, %v457
        %v569 = vmul.f32 %v351, %v457
        %v570 = vmul.f32 %v352, %v461
        %v571 = vmul.f32 %v353, %v461
        %v572 = vmul.f32 %v354, %v461
        %v573 = vmul.f32 %v355, %v461
        %v574 = vmul.f32 %v356, %v461
        %v575 = vmul.f32 %v357, %v461
        %v576 = vmul.f32 %v358, %v461
        %v577 = vmul.f32 %v359, %v461
        %v578 = vmul.f32 %v360, %v461
        %v579 = vmul.f32 %v361, %v461
        %v580 = vmul.f32 %v362, %v461
        %v581 = vmul.f32 %v363, %v461
        %v582 = vmul.f32 %v364, %v461
        %v583 = vmul.f32 %v365, %v461
        %v584 = vmul.f32 %v366, %v461
        %v585 = vmul.f32 %v367, %v461
        %v586 = vmul.f32 %v368, %v465
        %v587 = vmul.f32 %v369, %v465
        %v588 = vmul.f32 %v370, %v465
        %v589 = vmul.f32 %v371, %v465
        %v590 = vmul.f32 %v372, %v465
        %v591 = vmul.f32 %v373, %v465
        %v592 = vmul.f32 %v374, %v465
        %v593 = vmul.f32 %v375, %v465
        %v594 = vmul.f32 %v376, %v465
        %v595 = vmul.f32 %v377, %v465
        %v596 = vmul.f32 %v378, %v465
        %v597 = vmul.f32 %v379, %v465
        %v598 = vmul.f32 %v380, %v465
        %v599 = vmul.f32 %v381, %v465
        %v600 = vmul.f32 %v382, %v465
        %v601 = vmul.f32 %v383, %v465
        %602 = vmax.xlane.f32.xlu0 %v474
        %v603 = vpop.xlane.xlu0 %602
        %604 = vmax.xlane.f32.xlu0 %v475
        %v605 = vpop.xlane.xlu0 %604
        %606 = vmax.xlane.f32.xlu0 %v476
        %v607 = vpop.xlane.xlu0 %606
        %608 = vmax.xlane.f32.xlu0 %v477
        %v609 = vpop.xlane.xlu0 %608
        %610 = vmax.xlane.f32.xlu0 %v478
        %v611 = vpop.xlane.xlu0 %610
        %612 = vmax.xlane.f32.xlu0 %v479
        %v613 = vpop.xlane.xlu0 %612
        %614 = vmax.xlane.f32.xlu0 %v480
        %v615 = vpop.xlane.xlu0 %614
        %616 = vmax.xlane.f32.xlu0 %v481
        %v617 = vpop.xlane.xlu0 %616
        %618 = vmax.xlane.f32.xlu0 %v482
        %v619 = vpop.xlane.xlu0 %618
        %620 = vmax.xlane.f32.xlu0 %v483
        %v621 = vpop.xlane.xlu0 %620
        %622 = vmax.xlane.f32.xlu0 %v484
        %v623 = vpop.xlane.xlu0 %622
        %624 = vmax.xlane.f32.xlu0 %v485
        %v625 = vpop.xlane.xlu0 %624
        %626 = vmax.xlane.f32.xlu0 %v486
        %v627 = vpop.xlane.xlu0 %626
        %628 = vmax.xlane.f32.xlu0 %v487
        %v629 = vpop.xlane.xlu0 %628
        %630 = vmax.xlane.f32.xlu0 %v488
        %v631 = vpop.xlane.xlu0 %630
        %632 = vmax.xlane.f32.xlu0 %v489
        %v633 = vpop.xlane.xlu0 %632
        %634 = vmax.xlane.f32.xlu0 %v490
        %v635 = vpop.xlane.xlu0 %634
        %636 = vmax.xlane.f32.xlu0 %v491
        %v637 = vpop.xlane.xlu0 %636
        %638 = vmax.xlane.f32.xlu0 %v492
        %v639 = vpop.xlane.xlu0 %638
        %640 = vmax.xlane.f32.xlu0 %v493
        %v641 = vpop.xlane.xlu0 %640
        %642 = vmax.xlane.f32.xlu0 %v494
        %v643 = vpop.xlane.xlu0 %642
        %644 = vmax.xlane.f32.xlu0 %v495
        %v645 = vpop.xlane.xlu0 %644
        %646 = vmax.xlane.f32.xlu0 %v496
        %v647 = vpop.xlane.xlu0 %646
        %648 = vmax.xlane.f32.xlu0 %v497
        %v649 = vpop.xlane.xlu0 %648
        %650 = vmax.xlane.f32.xlu0 %v498
        %v651 = vpop.xlane.xlu0 %650
        %652 = vmax.xlane.f32.xlu0 %v499
        %v653 = vpop.xlane.xlu0 %652
        %654 = vmax.xlane.f32.xlu0 %v500
        %v655 = vpop.xlane.xlu0 %654
        %656 = vmax.xlane.f32.xlu0 %v501
        %v657 = vpop.xlane.xlu0 %656
        %658 = vmax.xlane.f32.xlu0 %v502
        %v659 = vpop.xlane.xlu0 %658
        %660 = vmax.xlane.f32.xlu0 %v503
        %v661 = vpop.xlane.xlu0 %660
        %662 = vmax.xlane.f32.xlu0 %v504
        %v663 = vpop.xlane.xlu0 %662
        %664 = vmax.xlane.f32.xlu0 %v505
        %v665 = vpop.xlane.xlu0 %664
        %666 = vmax.xlane.f32.xlu0 %v506
        %v667 = vpop.xlane.xlu0 %666
        %668 = vmax.xlane.f32.xlu0 %v507
        %v669 = vpop.xlane.xlu0 %668
        %670 = vmax.xlane.f32.xlu0 %v508
        %v671 = vpop.xlane.xlu0 %670
        %672 = vmax.xlane.f32.xlu0 %v509
        %v673 = vpop.xlane.xlu0 %672
        %674 = vmax.xlane.f32.xlu0 %v510
        %v675 = vpop.xlane.xlu0 %674
        %676 = vmax.xlane.f32.xlu0 %v511
        %v677 = vpop.xlane.xlu0 %676
        %678 = vmax.xlane.f32.xlu0 %v512
        %v679 = vpop.xlane.xlu0 %678
        %680 = vmax.xlane.f32.xlu0 %v513
        %v681 = vpop.xlane.xlu0 %680
        %682 = vmax.xlane.f32.xlu0 %v514
        %v683 = vpop.xlane.xlu0 %682
        %684 = vmax.xlane.f32.xlu0 %v515
        %v685 = vpop.xlane.xlu0 %684
        %686 = vmax.xlane.f32.xlu0 %v516
        %v687 = vpop.xlane.xlu0 %686
        %688 = vmax.xlane.f32.xlu0 %v517
        %v689 = vpop.xlane.xlu0 %688
        %690 = vmax.xlane.f32.xlu0 %v518
        %v691 = vpop.xlane.xlu0 %690
        %692 = vmax.xlane.f32.xlu0 %v519
        %v693 = vpop.xlane.xlu0 %692
        %694 = vmax.xlane.f32.xlu0 %v520
        %v695 = vpop.xlane.xlu0 %694
        %696 = vmax.xlane.f32.xlu0 %v521
        %v697 = vpop.xlane.xlu0 %696
        %698 = vmax.xlane.f32.xlu0 %v522
        %v699 = vpop.xlane.xlu0 %698
        %700 = vmax.xlane.f32.xlu0 %v523
        %v701 = vpop.xlane.xlu0 %700
        %702 = vmax.xlane.f32.xlu0 %v524
        %v703 = vpop.xlane.xlu0 %702
        %704 = vmax.xlane.f32.xlu0 %v525
        %v705 = vpop.xlane.xlu0 %704
        %706 = vmax.xlane.f32.xlu0 %v526
        %v707 = vpop.xlane.xlu0 %706
        %708 = vmax.xlane.f32.xlu0 %v527
        %v709 = vpop.xlane.xlu0 %708
        %710 = vmax.xlane.f32.xlu0 %v528
        %v711 = vpop.xlane.xlu0 %710
        %712 = vmax.xlane.f32.xlu0 %v529
        %v713 = vpop.xlane.xlu0 %712
        %714 = vmax.xlane.f32.xlu0 %v530
        %v715 = vpop.xlane.xlu0 %714
        %716 = vmax.xlane.f32.xlu0 %v531
        %v717 = vpop.xlane.xlu0 %716
        %718 = vmax.xlane.f32.xlu0 %v532
        %v719 = vpop.xlane.xlu0 %718
        %720 = vmax.xlane.f32.xlu0 %v533
        %v721 = vpop.xlane.xlu0 %720
        %722 = vmax.xlane.f32.xlu0 %v534
        %v723 = vpop.xlane.xlu0 %722
        %724 = vmax.xlane.f32.xlu0 %v535
        %v725 = vpop.xlane.xlu0 %724
        %726 = vmax.xlane.f32.xlu0 %v536
        %v727 = vpop.xlane.xlu0 %726
        %728 = vmax.xlane.f32.xlu0 %v537
        %v729 = vpop.xlane.xlu0 %728
        %730 = vmax.xlane.f32.xlu0 %v538
        %v731 = vpop.xlane.xlu0 %730
        %732 = vmax.xlane.f32.xlu0 %v539
        %v733 = vpop.xlane.xlu0 %732
        %734 = vmax.xlane.f32.xlu0 %v540
        %v735 = vpop.xlane.xlu0 %734
        %736 = vmax.xlane.f32.xlu0 %v541
        %v737 = vpop.xlane.xlu0 %736
        %738 = vmax.xlane.f32.xlu0 %v542
        %v739 = vpop.xlane.xlu0 %738
        %740 = vmax.xlane.f32.xlu0 %v543
        %v741 = vpop.xlane.xlu0 %740
        %742 = vmax.xlane.f32.xlu0 %v544
        %v743 = vpop.xlane.xlu0 %742
        %744 = vmax.xlane.f32.xlu0 %v545
        %v745 = vpop.xlane.xlu0 %744
        %746 = vmax.xlane.f32.xlu0 %v546
        %v747 = vpop.xlane.xlu0 %746
        %748 = vmax.xlane.f32.xlu0 %v547
        %v749 = vpop.xlane.xlu0 %748
        %750 = vmax.xlane.f32.xlu0 %v548
        %v751 = vpop.xlane.xlu0 %750
        %752 = vmax.xlane.f32.xlu0 %v549
        %v753 = vpop.xlane.xlu0 %752
        %754 = vmax.xlane.f32.xlu0 %v550
        %v755 = vpop.xlane.xlu0 %754
        %756 = vmax.xlane.f32.xlu0 %v551
        %v757 = vpop.xlane.xlu0 %756
        %758 = vmax.xlane.f32.xlu0 %v552
        %v759 = vpop.xlane.xlu0 %758
        %760 = vmax.xlane.f32.xlu0 %v553
        %v761 = vpop.xlane.xlu0 %760
        %762 = vmax.xlane.f32.xlu0 %v554
        %v763 = vpop.xlane.xlu0 %762
        %764 = vmax.xlane.f32.xlu0 %v555
        %v765 = vpop.xlane.xlu0 %764
        %766 = vmax.xlane.f32.xlu0 %v556
        %v767 = vpop.xlane.xlu0 %766
        %768 = vmax.xlane.f32.xlu0 %v557
        %v769 = vpop.xlane.xlu0 %768
        %770 = vmax.xlane.f32.xlu0 %v558
        %v771 = vpop.xlane.xlu0 %770
        %772 = vmax.xlane.f32.xlu0 %v559
        %v773 = vpop.xlane.xlu0 %772
        %774 = vmax.xlane.f32.xlu0 %v560
        %v775 = vpop.xlane.xlu0 %774
        %776 = vmax.xlane.f32.xlu0 %v561
        %v777 = vpop.xlane.xlu0 %776
        %778 = vmax.xlane.f32.xlu0 %v562
        %v779 = vpop.xlane.xlu0 %778
        %780 = vmax.xlane.f32.xlu0 %v563
        %v781 = vpop.xlane.xlu0 %780
        %782 = vmax.xlane.f32.xlu0 %v564
        %v783 = vpop.xlane.xlu0 %782
        %784 = vmax.xlane.f32.xlu0 %v565
        %v785 = vpop.xlane.xlu0 %784
        %786 = vmax.xlane.f32.xlu0 %v566
        %v787 = vpop.xlane.xlu0 %786
        %788 = vmax.xlane.f32.xlu0 %v567
        %v789 = vpop.xlane.xlu0 %788
        %790 = vmax.xlane.f32.xlu0 %v568
        %v791 = vpop.xlane.xlu0 %790
        %792 = vmax.xlane.f32.xlu0 %v569
        %v793 = vpop.xlane.xlu0 %792
        %794 = vmax.xlane.f32.xlu0 %v570
        %v795 = vpop.xlane.xlu0 %794
        %796 = vmax.xlane.f32.xlu0 %v571
        %v797 = vpop.xlane.xlu0 %796
        %798 = vmax.xlane.f32.xlu0 %v572
        %v799 = vpop.xlane.xlu0 %798
        %800 = vmax.xlane.f32.xlu0 %v573
        %v801 = vpop.xlane.xlu0 %800
        %802 = vmax.xlane.f32.xlu0 %v574
        %v803 = vpop.xlane.xlu0 %802
        %804 = vmax.xlane.f32.xlu0 %v575
        %v805 = vpop.xlane.xlu0 %804
        %806 = vmax.xlane.f32.xlu0 %v576
        %v807 = vpop.xlane.xlu0 %806
        %808 = vmax.xlane.f32.xlu0 %v577
        %v809 = vpop.xlane.xlu0 %808
        %810 = vmax.xlane.f32.xlu0 %v578
        %v811 = vpop.xlane.xlu0 %810
        %812 = vmax.xlane.f32.xlu0 %v579
        %v813 = vpop.xlane.xlu0 %812
        %814 = vmax.xlane.f32.xlu0 %v580
        %v815 = vpop.xlane.xlu0 %814
        %816 = vmax.xlane.f32.xlu0 %v581
        %v817 = vpop.xlane.xlu0 %816
        %818 = vmax.xlane.f32.xlu0 %v582
        %v819 = vpop.xlane.xlu0 %818
        %820 = vmax.xlane.f32.xlu0 %v583
        %v821 = vpop.xlane.xlu0 %820
        %822 = vmax.xlane.f32.xlu0 %v584
        %v823 = vpop.xlane.xlu0 %822
        %824 = vmax.xlane.f32.xlu0 %v585
        %v825 = vpop.xlane.xlu0 %824
        %826 = vmax.xlane.f32.xlu0 %v586
        %v827 = vpop.xlane.xlu0 %826
        %828 = vmax.xlane.f32.xlu0 %v587
        %v829 = vpop.xlane.xlu0 %828
        %830 = vmax.xlane.f32.xlu0 %v588
        %v831 = vpop.xlane.xlu0 %830
        %832 = vmax.xlane.f32.xlu0 %v589
        %v833 = vpop.xlane.xlu0 %832
        %834 = vmax.xlane.f32.xlu0 %v590
        %v835 = vpop.xlane.xlu0 %834
        %836 = vmax.xlane.f32.xlu0 %v591
        %v837 = vpop.xlane.xlu0 %836
        %838 = vmax.xlane.f32.xlu0 %v592
        %v839 = vpop.xlane.xlu0 %838
        %840 = vmax.xlane.f32.xlu0 %v593
        %v841 = vpop.xlane.xlu0 %840
        %842 = vmax.xlane.f32.xlu0 %v594
        %v843 = vpop.xlane.xlu0 %842
        %844 = vmax.xlane.f32.xlu0 %v595
        %v845 = vpop.xlane.xlu0 %844
        %846 = vmax.xlane.f32.xlu0 %v596
        %v847 = vpop.xlane.xlu0 %846
        %848 = vmax.xlane.f32.xlu0 %v597
        %v849 = vpop.xlane.xlu0 %848
        %850 = vmax.xlane.f32.xlu0 %v598
        %v851 = vpop.xlane.xlu0 %850
        %852 = vmax.xlane.f32.xlu0 %v599
        %v853 = vpop.xlane.xlu0 %852
        %854 = vmax.xlane.f32.xlu0 %v600
        %v855 = vpop.xlane.xlu0 %854
        %856 = vmax.xlane.f32.xlu0 %v601
        %v857 = vpop.xlane.xlu0 %856
        %v858 = vsub.f32 %v474, %v603
        %v859 = vsub.f32 %v475, %v605
        %v860 = vsub.f32 %v476, %v607
        %v861 = vsub.f32 %v477, %v609
        %v862 = vsub.f32 %v478, %v611
        %v863 = vsub.f32 %v479, %v613
        %v864 = vsub.f32 %v480, %v615
        %v865 = vsub.f32 %v481, %v617
        %v866 = vsub.f32 %v482, %v619
        %v867 = vsub.f32 %v483, %v621
        %v868 = vsub.f32 %v484, %v623
        %v869 = vsub.f32 %v485, %v625
        %v870 = vsub.f32 %v486, %v627
        %v871 = vsub.f32 %v487, %v629
        %v872 = vsub.f32 %v488, %v631
        %v873 = vsub.f32 %v489, %v633
        %v874 = vsub.f32 %v490, %v635
        %v875 = vsub.f32 %v491, %v637
        %v876 = vsub.f32 %v492, %v639
        %v877 = vsub.f32 %v493, %v641
        %v878 = vsub.f32 %v494, %v643
        %v879 = vsub.f32 %v495, %v645
        %v880 = vsub.f32 %v496, %v647
        %v881 = vsub.f32 %v497, %v649
        %v882 = vsub.f32 %v498, %v651
        %v883 = vsub.f32 %v499, %v653
        %v884 = vsub.f32 %v500, %v655
        %v885 = vsub.f32 %v501, %v657
        %v886 = vsub.f32 %v502, %v659
        %v887 = vsub.f32 %v503, %v661
        %v888 = vsub.f32 %v504, %v663
        %v889 = vsub.f32 %v505, %v665
        %v890 = vsub.f32 %v506, %v667
        %v891 = vsub.f32 %v507, %v669
        %v892 = vsub.f32 %v508, %v671
        %v893 = vsub.f32 %v509, %v673
        %v894 = vsub.f32 %v510, %v675
        %v895 = vsub.f32 %v511, %v677
        %v896 = vsub.f32 %v512, %v679
        %v897 = vsub.f32 %v513, %v681
        %v898 = vsub.f32 %v514, %v683
        %v899 = vsub.f32 %v515, %v685
        %v900 = vsub.f32 %v516, %v687
        %v901 = vsub.f32 %v517, %v689
        %v902 = vsub.f32 %v518, %v691
        %v903 = vsub.f32 %v519, %v693
        %v904 = vsub.f32 %v520, %v695
        %v905 = vsub.f32 %v521, %v697
        %v906 = vsub.f32 %v522, %v699
        %v907 = vsub.f32 %v523, %v701
        %v908 = vsub.f32 %v524, %v703
        %v909 = vsub.f32 %v525, %v705
        %v910 = vsub.f32 %v526, %v707
        %v911 = vsub.f32 %v527, %v709
        %v912 = vsub.f32 %v528, %v711
        %v913 = vsub.f32 %v529, %v713
        %v914 = vsub.f32 %v530, %v715
        %v915 = vsub.f32 %v531, %v717
        %v916 = vsub.f32 %v532, %v719
        %v917 = vsub.f32 %v533, %v721
        %v918 = vsub.f32 %v534, %v723
        %v919 = vsub.f32 %v535, %v725
        %v920 = vsub.f32 %v536, %v727
        %v921 = vsub.f32 %v537, %v729
        %v922 = vsub.f32 %v538, %v731
        %v923 = vsub.f32 %v539, %v733
        %v924 = vsub.f32 %v540, %v735
        %v925 = vsub.f32 %v541, %v737
        %v926 = vsub.f32 %v542, %v739
        %v927 = vsub.f32 %v543, %v741
        %v928 = vsub.f32 %v544, %v743
        %v929 = vsub.f32 %v545, %v745
        %v930 = vsub.f32 %v546, %v747
        %v931 = vsub.f32 %v547, %v749
        %v932 = vsub.f32 %v548, %v751
        %v933 = vsub.f32 %v549, %v753
        %v934 = vsub.f32 %v550, %v755
        %v935 = vsub.f32 %v551, %v757
        %v936 = vsub.f32 %v552, %v759
        %v937 = vsub.f32 %v553, %v761
        %v938 = vsub.f32 %v554, %v763
        %v939 = vsub.f32 %v555, %v765
        %v940 = vsub.f32 %v556, %v767
        %v941 = vsub.f32 %v557, %v769
        %v942 = vsub.f32 %v558, %v771
        %v943 = vsub.f32 %v559, %v773
        %v944 = vsub.f32 %v560, %v775
        %v945 = vsub.f32 %v561, %v777
        %v946 = vsub.f32 %v562, %v779
        %v947 = vsub.f32 %v563, %v781
        %v948 = vsub.f32 %v564, %v783
        %v949 = vsub.f32 %v565, %v785
        %v950 = vsub.f32 %v566, %v787
        %v951 = vsub.f32 %v567, %v789
        %v952 = vsub.f32 %v568, %v791
        %v953 = vsub.f32 %v569, %v793
        %v954 = vsub.f32 %v570, %v795
        %v955 = vsub.f32 %v571, %v797
        %v956 = vsub.f32 %v572, %v799
        %v957 = vsub.f32 %v573, %v801
        %v958 = vsub.f32 %v574, %v803
        %v959 = vsub.f32 %v575, %v805
        %v960 = vsub.f32 %v576, %v807
        %v961 = vsub.f32 %v577, %v809
        %v962 = vsub.f32 %v578, %v811
        %v963 = vsub.f32 %v579, %v813
        %v964 = vsub.f32 %v580, %v815
        %v965 = vsub.f32 %v581, %v817
        %v966 = vsub.f32 %v582, %v819
        %v967 = vsub.f32 %v583, %v821
        %v968 = vsub.f32 %v584, %v823
        %v969 = vsub.f32 %v585, %v825
        %v970 = vsub.f32 %v586, %v827
        %v971 = vsub.f32 %v587, %v829
        %v972 = vsub.f32 %v588, %v831
        %v973 = vsub.f32 %v589, %v833
        %v974 = vsub.f32 %v590, %v835
        %v975 = vsub.f32 %v591, %v837
        %v976 = vsub.f32 %v592, %v839
        %v977 = vsub.f32 %v593, %v841
        %v978 = vsub.f32 %v594, %v843
        %v979 = vsub.f32 %v595, %v845
        %v980 = vsub.f32 %v596, %v847
        %v981 = vsub.f32 %v597, %v849
        %v982 = vsub.f32 %v598, %v851
        %v983 = vsub.f32 %v599, %v853
        %v984 = vsub.f32 %v600, %v855
        %v985 = vsub.f32 %v601, %v857
        %v986 = vmul.f32 %v858, 1.442695
        %v987 = vpow.pop %v986
        %v988 = vmul.f32 %v859, 1.442695
        %v989 = vpow.pop %v988
        %v990 = vmul.f32 %v860, 1.442695
        %v991 = vpow.pop %v990
        %v992 = vmul.f32 %v861, 1.442695
        %v993 = vpow.pop %v992
        %v994 = vmul.f32 %v862, 1.442695
        %v995 = vpow.pop %v994
        %v996 = vmul.f32 %v863, 1.442695
        %v997 = vpow.pop %v996
        %v998 = vmul.f32 %v864, 1.442695
        %v999 = vpow.pop %v998
        %v1000 = vmul.f32 %v865, 1.442695
        %v1001 = vpow.pop %v1000
        %v1002 = vmul.f32 %v866, 1.442695
        %v1003 = vpow.pop %v1002
        %v1004 = vmul.f32 %v867, 1.442695
        %v1005 = vpow.pop %v1004
        %v1006 = vmul.f32 %v868, 1.442695
        %v1007 = vpow.pop %v1006
        %v1008 = vmul.f32 %v869, 1.442695
        %v1009 = vpow.pop %v1008
        %v1010 = vmul.f32 %v870, 1.442695
        %v1011 = vpow.pop %v1010
        %v1012 = vmul.f32 %v871, 1.442695
        %v1013 = vpow.pop %v1012
        %v1014 = vmul.f32 %v872, 1.442695
        %v1015 = vpow.pop %v1014
        %v1016 = vmul.f32 %v873, 1.442695
        %v1017 = vpow.pop %v1016
        %v1018 = vmul.f32 %v874, 1.442695
        %v1019 = vpow.pop %v1018
        %v1020 = vmul.f32 %v875, 1.442695
        %v1021 = vpow.pop %v1020
        %v1022 = vmul.f32 %v876, 1.442695
        %v1023 = vpow.pop %v1022
        %v1024 = vmul.f32 %v877, 1.442695
        %v1025 = vpow.pop %v1024
        %v1026 = vmul.f32 %v878, 1.442695
        %v1027 = vpow.pop %v1026
        %v1028 = vmul.f32 %v879, 1.442695
        %v1029 = vpow.pop %v1028
        %v1030 = vmul.f32 %v880, 1.442695
        %v1031 = vpow.pop %v1030
        %v1032 = vmul.f32 %v881, 1.442695
        %v1033 = vpow.pop %v1032
        %v1034 = vmul.f32 %v882, 1.442695
        %v1035 = vpow.pop %v1034
        %v1036 = vmul.f32 %v883, 1.442695
        %v1037 = vpow.pop %v1036
        %v1038 = vmul.f32 %v884, 1.442695
        %v1039 = vpow.pop %v1038
        %v1040 = vmul.f32 %v885, 1.442695
        %v1041 = vpow.pop %v1040
        %v1042 = vmul.f32 %v886, 1.442695
        %v1043 = vpow.pop %v1042
        %v1044 = vmul.f32 %v887, 1.442695
        %v1045 = vpow.pop %v1044
        %v1046 = vmul.f32 %v888, 1.442695
        %v1047 = vpow.pop %v1046
        %v1048 = vmul.f32 %v889, 1.442695
        %v1049 = vpow.pop %v1048
        %v1050 = vmul.f32 %v890, 1.442695
        %v1051 = vpow.pop %v1050
        %v1052 = vmul.f32 %v891, 1.442695
        %v1053 = vpow.pop %v1052
        %v1054 = vmul.f32 %v892, 1.442695
        %v1055 = vpow.pop %v1054
        %v1056 = vmul.f32 %v893, 1.442695
        %v1057 = vpow.pop %v1056
        %v1058 = vmul.f32 %v894, 1.442695
        %v1059 = vpow.pop %v1058
        %v1060 = vmul.f32 %v895, 1.442695
        %v1061 = vpow.pop %v1060
        %v1062 = vmul.f32 %v896, 1.442695
        %v1063 = vpow.pop %v1062
        %v1064 = vmul.f32 %v897, 1.442695
        %v1065 = vpow.pop %v1064
        %v1066 = vmul.f32 %v898, 1.442695
        %v1067 = vpow.pop %v1066
        %v1068 = vmul.f32 %v899, 1.442695
        %v1069 = vpow.pop %v1068
        %v1070 = vmul.f32 %v900, 1.442695
        %v1071 = vpow.pop %v1070
        %v1072 = vmul.f32 %v901, 1.442695
        %v1073 = vpow.pop %v1072
        %v1074 = vmul.f32 %v902, 1.442695
        %v1075 = vpow.pop %v1074
        %v1076 = vmul.f32 %v903, 1.442695
        %v1077 = vpow.pop %v1076
        %v1078 = vmul.f32 %v904, 1.442695
        %v1079 = vpow.pop %v1078
        %v1080 = vmul.f32 %v905, 1.442695
        %v1081 = vpow.pop %v1080
        %v1082 = vmul.f32 %v906, 1.442695
        %v1083 = vpow.pop %v1082
        %v1084 = vmul.f32 %v907, 1.442695
        %v1085 = vpow.pop %v1084
        %v1086 = vmul.f32 %v908, 1.442695
        %v1087 = vpow.pop %v1086
        %v1088 = vmul.f32 %v909, 1.442695
        %v1089 = vpow.pop %v1088
        %v1090 = vmul.f32 %v910, 1.442695
        %v1091 = vpow.pop %v1090
        %v1092 = vmul.f32 %v911, 1.442695
        %v1093 = vpow.pop %v1092
        %v1094 = vmul.f32 %v912, 1.442695
        %v1095 = vpow.pop %v1094
        %v1096 = vmul.f32 %v913, 1.442695
        %v1097 = vpow.pop %v1096
        %v1098 = vmul.f32 %v914, 1.442695
        %v1099 = vpow.pop %v1098
        %v1100 = vmul.f32 %v915, 1.442695
        %v1101 = vpow.pop %v1100
        %v1102 = vmul.f32 %v916, 1.442695
        %v1103 = vpow.pop %v1102
        %v1104 = vmul.f32 %v917, 1.442695
        %v1105 = vpow.pop %v1104
        %v1106 = vmul.f32 %v918, 1.442695
        %v1107 = vpow.pop %v1106
        %v1108 = vmul.f32 %v919, 1.442695
        %v1109 = vpow.pop %v1108
        %v1110 = vmul.f32 %v920, 1.442695
        %v1111 = vpow.pop %v1110
        %v1112 = vmul.f32 %v921, 1.442695
        %v1113 = vpow.pop %v1112
        %v1114 = vmul.f32 %v922, 1.442695
        %v1115 = vpow.pop %v1114
        %v1116 = vmul.f32 %v923, 1.442695
        %v1117 = vpow.pop %v1116
        %v1118 = vmul.f32 %v924, 1.442695
        %v1119 = vpow.pop %v1118
        %v1120 = vmul.f32 %v925, 1.442695
        %v1121 = vpow.pop %v1120
        %v1122 = vmul.f32 %v926, 1.442695
        %v1123 = vpow.pop %v1122
        %v1124 = vmul.f32 %v927, 1.442695
        %v1125 = vpow.pop %v1124
        %v1126 = vmul.f32 %v928, 1.442695
        %v1127 = vpow.pop %v1126
        %v1128 = vmul.f32 %v929, 1.442695
        %v1129 = vpow.pop %v1128
        %v1130 = vmul.f32 %v930, 1.442695
        %v1131 = vpow.pop %v1130
        %v1132 = vmul.f32 %v931, 1.442695
        %v1133 = vpow.pop %v1132
        %v1134 = vmul.f32 %v932, 1.442695
        %v1135 = vpow.pop %v1134
        %v1136 = vmul.f32 %v933, 1.442695
        %v1137 = vpow.pop %v1136
        %v1138 = vmul.f32 %v934, 1.442695
        %v1139 = vpow.pop %v1138
        %v1140 = vmul.f32 %v935, 1.442695
        %v1141 = vpow.pop %v1140
        %v1142 = vmul.f32 %v936, 1.442695
        %v1143 = vpow.pop %v1142
        %v1144 = vmul.f32 %v937, 1.442695
        %v1145 = vpow.pop %v1144
        %v1146 = vmul.f32 %v938, 1.442695
        %v1147 = vpow.pop %v1146
        %v1148 = vmul.f32 %v939, 1.442695
        %v1149 = vpow.pop %v1148
        %v1150 = vmul.f32 %v940, 1.442695
        %v1151 = vpow.pop %v1150
        %v1152 = vmul.f32 %v941, 1.442695
        %v1153 = vpow.pop %v1152
        %v1154 = vmul.f32 %v942, 1.442695
        %v1155 = vpow.pop %v1154
        %v1156 = vmul.f32 %v943, 1.442695
        %v1157 = vpow.pop %v1156
        %v1158 = vmul.f32 %v944, 1.442695
        %v1159 = vpow.pop %v1158
        %v1160 = vmul.f32 %v945, 1.442695
        %v1161 = vpow.pop %v1160
        %v1162 = vmul.f32 %v946, 1.442695
        %v1163 = vpow.pop %v1162
        %v1164 = vmul.f32 %v947, 1.442695
        %v1165 = vpow.pop %v1164
        %v1166 = vmul.f32 %v948, 1.442695
        %v1167 = vpow.pop %v1166
        %v1168 = vmul.f32 %v949, 1.442695
        %v1169 = vpow.pop %v1168
        %v1170 = vmul.f32 %v950, 1.442695
        %v1171 = vpow.pop %v1170
        %v1172 = vmul.f32 %v951, 1.442695
        %v1173 = vpow.pop %v1172
        %v1174 = vmul.f32 %v952, 1.442695
        %v1175 = vpow.pop %v1174
        %v1176 = vmul.f32 %v953, 1.442695
        %v1177 = vpow.pop %v1176
        %v1178 = vmul.f32 %v954, 1.442695
        %v1179 = vpow.pop %v1178
        %v1180 = vmul.f32 %v955, 1.442695
        %v1181 = vpow.pop %v1180
        %v1182 = vmul.f32 %v956, 1.442695
        %v1183 = vpow.pop %v1182
        %v1184 = vmul.f32 %v957, 1.442695
        %v1185 = vpow.pop %v1184
        %v1186 = vmul.f32 %v958, 1.442695
        %v1187 = vpow.pop %v1186
        %v1188 = vmul.f32 %v959, 1.442695
        %v1189 = vpow.pop %v1188
        %v1190 = vmul.f32 %v960, 1.442695
        %v1191 = vpow.pop %v1190
        %v1192 = vmul.f32 %v961, 1.442695
        %v1193 = vpow.pop %v1192
        %v1194 = vmul.f32 %v962, 1.442695
        %v1195 = vpow.pop %v1194
        %v1196 = vmul.f32 %v963, 1.442695
        %v1197 = vpow.pop %v1196
        %v1198 = vmul.f32 %v964, 1.442695
        %v1199 = vpow.pop %v1198
        %v1200 = vmul.f32 %v965, 1.442695
        %v1201 = vpow.pop %v1200
        %v1202 = vmul.f32 %v966, 1.442695
        %v1203 = vpow.pop %v1202
        %v1204 = vmul.f32 %v967, 1.442695
        %v1205 = vpow.pop %v1204
        %v1206 = vmul.f32 %v968, 1.442695
        %v1207 = vpow.pop %v1206
        %v1208 = vmul.f32 %v969, 1.442695
        %v1209 = vpow.pop %v1208
        %v1210 = vmul.f32 %v970, 1.442695
        %v1211 = vpow.pop %v1210
        %v1212 = vmul.f32 %v971, 1.442695
        %v1213 = vpow.pop %v1212
        %v1214 = vmul.f32 %v972, 1.442695
        %v1215 = vpow.pop %v1214
        %v1216 = vmul.f32 %v973, 1.442695
        %v1217 = vpow.pop %v1216
        %v1218 = vmul.f32 %v974, 1.442695
        %v1219 = vpow.pop %v1218
        %v1220 = vmul.f32 %v975, 1.442695
        %v1221 = vpow.pop %v1220
        %v1222 = vmul.f32 %v976, 1.442695
        %v1223 = vpow.pop %v1222
        %v1224 = vmul.f32 %v977, 1.442695
        %v1225 = vpow.pop %v1224
        %v1226 = vmul.f32 %v978, 1.442695
        %v1227 = vpow.pop %v1226
        %v1228 = vmul.f32 %v979, 1.442695
        %v1229 = vpow.pop %v1228
        %v1230 = vmul.f32 %v980, 1.442695
        %v1231 = vpow.pop %v1230
        %v1232 = vmul.f32 %v981, 1.442695
        %v1233 = vpow.pop %v1232
        %v1234 = vmul.f32 %v982, 1.442695
        %v1235 = vpow.pop %v1234
        %v1236 = vmul.f32 %v983, 1.442695
        %v1237 = vpow.pop %v1236
        %v1238 = vmul.f32 %v984, 1.442695
        %v1239 = vpow.pop %v1238
        %v1240 = vmul.f32 %v985, 1.442695
        %v1241 = vpow.pop %v1240
        %v1242 = vlaneseq
        %v1243 = vshrl.u32 %v1242, 7
        %v1244 = vadd.s32 %v1243, 8
        %v1245 = vadd.s32 %v1243, 16
        %v1246 = vadd.s32 %v1243, 24
        %v1247 = vadd.s32 %v1243, 32
        %v1248 = vadd.s32 %v1243, 40
        %v1249 = vadd.s32 %v1243, 48
        %v1250 = vadd.s32 %v1243, 56
        %v1251 = vadd.s32 %v1243, 64
        %v1252 = vadd.s32 %v1243, 72
        %v1253 = vadd.s32 %v1243, 80
        %v1254 = vadd.s32 %v1243, 88
        %v1255 = vadd.s32 %v1243, 96
        %v1256 = vadd.s32 %v1243, 104
        %v1257 = vadd.s32 %v1243, 112
        %v1258 = vadd.s32 %v1243, 120
        %vm1259 = vcmp.eq.s32.totalorder %v1243, 0
        %vm1260 = vcmp.eq.s32.totalorder %v1244, 0
        %vm1261 = vcmp.eq.s32.totalorder %v1245, 0
        %vm1262 = vcmp.eq.s32.totalorder %v1246, 0
        %vm1263 = vcmp.eq.s32.totalorder %v1247, 0
        %vm1264 = vcmp.eq.s32.totalorder %v1248, 0
        %vm1265 = vcmp.eq.s32.totalorder %v1249, 0
        %vm1266 = vcmp.eq.s32.totalorder %v1250, 0
        %vm1267 = vcmp.eq.s32.totalorder %v1251, 0
        %vm1268 = vcmp.eq.s32.totalorder %v1252, 0
        %vm1269 = vcmp.eq.s32.totalorder %v1253, 0
        %vm1270 = vcmp.eq.s32.totalorder %v1254, 0
        %vm1271 = vcmp.eq.s32.totalorder %v1255, 0
        %vm1272 = vcmp.eq.s32.totalorder %v1256, 0
        %vm1273 = vcmp.eq.s32.totalorder %v1257, 0
        %vm1274 = vcmp.eq.s32.totalorder %v1258, 0
        %vm1275 = vcmp.eq.s32.totalorder %v1243, 1
        %vm1276 = vcmp.eq.s32.totalorder %v1244, 1
        %vm1277 = vcmp.eq.s32.totalorder %v1245, 1
        %vm1278 = vcmp.eq.s32.totalorder %v1246, 1
        %vm1279 = vcmp.eq.s32.totalorder %v1247, 1
        %vm1280 = vcmp.eq.s32.totalorder %v1248, 1
        %vm1281 = vcmp.eq.s32.totalorder %v1249, 1
        %vm1282 = vcmp.eq.s32.totalorder %v1250, 1
        %vm1283 = vcmp.eq.s32.totalorder %v1251, 1
        %vm1284 = vcmp.eq.s32.totalorder %v1252, 1
        %vm1285 = vcmp.eq.s32.totalorder %v1253, 1
        %vm1286 = vcmp.eq.s32.totalorder %v1254, 1
        %vm1287 = vcmp.eq.s32.totalorder %v1255, 1
        %vm1288 = vcmp.eq.s32.totalorder %v1256, 1
        %vm1289 = vcmp.eq.s32.totalorder %v1257, 1
        %vm1290 = vcmp.eq.s32.totalorder %v1258, 1
        %v1291 = vsel %vm1275, 1.0, 0.0
        %v1292 = vsel %vm1276, 1.0, 0.0
        %v1293 = vsel %vm1277, 1.0, 0.0
        %v1294 = vsel %vm1278, 1.0, 0.0
        %v1295 = vsel %vm1279, 1.0, 0.0
        %v1296 = vsel %vm1280, 1.0, 0.0
        %v1297 = vsel %vm1281, 1.0, 0.0
        %v1298 = vsel %vm1282, 1.0, 0.0
        %v1299 = vsel %vm1283, 1.0, 0.0
        %v1300 = vsel %vm1284, 1.0, 0.0
        %v1301 = vsel %vm1285, 1.0, 0.0
        %v1302 = vsel %vm1286, 1.0, 0.0
        %v1303 = vsel %vm1287, 1.0, 0.0
        %v1304 = vsel %vm1288, 1.0, 0.0
        %v1305 = vsel %vm1289, 1.0, 0.0
        %v1306 = vsel %vm1290, 1.0, 0.0
        %v1307 = vsel %vm1259, %v437, %v1291
        %v1308 = vsel %vm1260, %v437, %v1292
        %v1309 = vsel %vm1261, %v437, %v1293
        %v1310 = vsel %vm1262, %v437, %v1294
        %v1311 = vsel %vm1263, %v437, %v1295
        %v1312 = vsel %vm1264, %v437, %v1296
        %v1313 = vsel %vm1265, %v437, %v1297
        %v1314 = vsel %vm1266, %v437, %v1298
        %v1315 = vsel %vm1267, %v437, %v1299
        %v1316 = vsel %vm1268, %v437, %v1300
        %v1317 = vsel %vm1269, %v437, %v1301
        %v1318 = vsel %vm1270, %v437, %v1302
        %v1319 = vsel %vm1271, %v437, %v1303
        %v1320 = vsel %vm1272, %v437, %v1304
        %v1321 = vsel %vm1273, %v437, %v1305
        %v1322 = vsel %vm1274, %v437, %v1306
        %v1323 = vsel %vm1259, %v441, %v1291
        %v1324 = vsel %vm1260, %v441, %v1292
        %v1325 = vsel %vm1261, %v441, %v1293
        %v1326 = vsel %vm1262, %v441, %v1294
        %v1327 = vsel %vm1263, %v441, %v1295
        %v1328 = vsel %vm1264, %v441, %v1296
        %v1329 = vsel %vm1265, %v441, %v1297
        %v1330 = vsel %vm1266, %v441, %v1298
        %v1331 = vsel %vm1267, %v441, %v1299
        %v1332 = vsel %vm1268, %v441, %v1300
        %v1333 = vsel %vm1269, %v441, %v1301
        %v1334 = vsel %vm1270, %v441, %v1302
        %v1335 = vsel %vm1271, %v441, %v1303
        %v1336 = vsel %vm1272, %v441, %v1304
        %v1337 = vsel %vm1273, %v441, %v1305
        %v1338 = vsel %vm1274, %v441, %v1306
        %v1339 = vsel %vm1259, %v445, %v1291
        %v1340 = vsel %vm1260, %v445, %v1292
        %v1341 = vsel %vm1261, %v445, %v1293
        %v1342 = vsel %vm1262, %v445, %v1294
        %v1343 = vsel %vm1263, %v445, %v1295
        %v1344 = vsel %vm1264, %v445, %v1296
        %v1345 = vsel %vm1265, %v445, %v1297
        %v1346 = vsel %vm1266, %v445, %v1298
        %v1347 = vsel %vm1267, %v445, %v1299
        %v1348 = vsel %vm1268, %v445, %v1300
        %v1349 = vsel %vm1269, %v445, %v1301
        %v1350 = vsel %vm1270, %v445, %v1302
        %v1351 = vsel %vm1271, %v445, %v1303
        %v1352 = vsel %vm1272, %v445, %v1304
        %v1353 = vsel %vm1273, %v445, %v1305
        %v1354 = vsel %vm1274, %v445, %v1306
        %v1355 = vsel %vm1259, %v449, %v1291
        %v1356 = vsel %vm1260, %v449, %v1292
        %v1357 = vsel %vm1261, %v449, %v1293
        %v1358 = vsel %vm1262, %v449, %v1294
        %v1359 = vsel %vm1263, %v449, %v1295
        %v1360 = vsel %vm1264, %v449, %v1296
        %v1361 = vsel %vm1265, %v449, %v1297
        %v1362 = vsel %vm1266, %v449, %v1298
        %v1363 = vsel %vm1267, %v449, %v1299
        %v1364 = vsel %vm1268, %v449, %v1300
        %v1365 = vsel %vm1269, %v449, %v1301
        %v1366 = vsel %vm1270, %v449, %v1302
        %v1367 = vsel %vm1271, %v449, %v1303
        %v1368 = vsel %vm1272, %v449, %v1304
        %v1369 = vsel %vm1273, %v449, %v1305
        %v1370 = vsel %vm1274, %v449, %v1306
        %v1371 = vsel %vm1259, %v453, %v1291
        %v1372 = vsel %vm1260, %v453, %v1292
        %v1373 = vsel %vm1261, %v453, %v1293
        %v1374 = vsel %vm1262, %v453, %v1294
        %v1375 = vsel %vm1263, %v453, %v1295
        %v1376 = vsel %vm1264, %v453, %v1296
        %v1377 = vsel %vm1265, %v453, %v1297
        %v1378 = vsel %vm1266, %v453, %v1298
        %v1379 = vsel %vm1267, %v453, %v1299
        %v1380 = vsel %vm1268, %v453, %v1300
        %v1381 = vsel %vm1269, %v453, %v1301
        %v1382 = vsel %vm1270, %v453, %v1302
        %v1383 = vsel %vm1271, %v453, %v1303
        %v1384 = vsel %vm1272, %v453, %v1304
        %v1385 = vsel %vm1273, %v453, %v1305
        %v1386 = vsel %vm1274, %v453, %v1306
        %v1387 = vsel %vm1259, %v457, %v1291
        %v1388 = vsel %vm1260, %v457, %v1292
        %v1389 = vsel %vm1261, %v457, %v1293
        %v1390 = vsel %vm1262, %v457, %v1294
        %v1391 = vsel %vm1263, %v457, %v1295
        %v1392 = vsel %vm1264, %v457, %v1296
        %v1393 = vsel %vm1265, %v457, %v1297
        %v1394 = vsel %vm1266, %v457, %v1298
        %v1395 = vsel %vm1267, %v457, %v1299
        %v1396 = vsel %vm1268, %v457, %v1300
        %v1397 = vsel %vm1269, %v457, %v1301
        %v1398 = vsel %vm1270, %v457, %v1302
        %v1399 = vsel %vm1271, %v457, %v1303
        %v1400 = vsel %vm1272, %v457, %v1304
        %v1401 = vsel %vm1273, %v457, %v1305
        %v1402 = vsel %vm1274, %v457, %v1306
        %v1403 = vsel %vm1259, %v461, %v1291
        %v1404 = vsel %vm1260, %v461, %v1292
        %v1405 = vsel %vm1261, %v461, %v1293
        %v1406 = vsel %vm1262, %v461, %v1294
        %v1407 = vsel %vm1263, %v461, %v1295
        %v1408 = vsel %vm1264, %v461, %v1296
        %v1409 = vsel %vm1265, %v461, %v1297
        %v1410 = vsel %vm1266, %v461, %v1298
        %v1411 = vsel %vm1267, %v461, %v1299
        %v1412 = vsel %vm1268, %v461, %v1300
        %v1413 = vsel %vm1269, %v461, %v1301
        %v1414 = vsel %vm1270, %v461, %v1302
        %v1415 = vsel %vm1271, %v461, %v1303
        %v1416 = vsel %vm1272, %v461, %v1304
        %v1417 = vsel %vm1273, %v461, %v1305
        %v1418 = vsel %vm1274, %v461, %v1306
        %v1419 = vsel %vm1259, %v465, %v1291
        %v1420 = vsel %vm1260, %v465, %v1292
        %v1421 = vsel %vm1261, %v465, %v1293
        %v1422 = vsel %vm1262, %v465, %v1294
        %v1423 = vsel %vm1263, %v465, %v1295
        %v1424 = vsel %vm1264, %v465, %v1296
        %v1425 = vsel %vm1265, %v465, %v1297
        %v1426 = vsel %vm1266, %v465, %v1298
        %v1427 = vsel %vm1267, %v465, %v1299
        %v1428 = vsel %vm1268, %v465, %v1300
        %v1429 = vsel %vm1269, %v465, %v1301
        %v1430 = vsel %vm1270, %v465, %v1302
        %v1431 = vsel %vm1271, %v465, %v1303
        %v1432 = vsel %vm1272, %v465, %v1304
        %v1433 = vsel %vm1273, %v465, %v1305
        %v1434 = vsel %vm1274, %v465, %v1306
        %1435 = vmatprep.subr.mxu0 0.0
        %1436 = vmatpush1.xpose.msra.mxu0 %v1307
        %1437 = vmatprep.subr.mxu0 0.0
        %1438 = vmatpush1.xpose.msra.mxu0 %v1308
        %1439 = vmatprep.subr.mxu0 0.0
        %1440 = vmatpush1.xpose.msra.mxu0 %v1309
        %1441 = vmatprep.subr.mxu0 0.0
        %1442 = vmatpush1.xpose.msra.mxu0 %v1310
        %1443 = vmatprep.subr.mxu0 0.0
        %1444 = vmatpush1.xpose.msra.mxu0 %v1311
        %1445 = vmatprep.subr.mxu0 0.0
        %1446 = vmatpush1.xpose.msra.mxu0 %v1312
        %1447 = vmatprep.subr.mxu0 0.0
        %1448 = vmatpush1.xpose.msra.mxu0 %v1313
        %1449 = vmatprep.subr.mxu0 0.0
        %1450 = vmatpush1.xpose.msra.mxu0 %v1314
        %1451 = vmatprep.subr.mxu0 0.0
        %1452 = vmatpush1.xpose.msra.mxu0 %v1315
        %1453 = vmatprep.subr.mxu0 0.0
        %1454 = vmatpush1.xpose.msra.mxu0 %v1316
        %1455 = vmatprep.subr.mxu0 0.0
        %1456 = vmatpush1.xpose.msra.mxu0 %v1317
        %1457 = vmatprep.subr.mxu0 0.0
        %1458 = vmatpush1.xpose.msra.mxu0 %v1318
        %1459 = vmatprep.subr.mxu0 0.0
        %1460 = vmatpush1.xpose.msra.mxu0 %v1319
        %1461 = vmatprep.subr.mxu0 0.0
        %1462 = vmatpush1.xpose.msra.mxu0 %v1320
        %1463 = vmatprep.subr.mxu0 0.0
        %1464 = vmatpush1.xpose.msra.mxu0 %v1321
        %1465 = vmatprep.subr.mxu0 0.0
        %1466 = vmatpush1.xpose.msra.mxu0 %v1322
        %1467 = vmatprep.subr.mxu0 0.0
        %1468 = vmatpush1.xpose.msra.mxu0 0.0
        %1469 = vmatprep.subr.mxu0 0.0
        %1470 = vmatpush1.xpose.msra.mxu0 0.0
        %1471 = vmatprep.subr.mxu0 0.0
        %1472 = vmatpush1.xpose.msra.mxu0 0.0
        %1473 = vmatprep.subr.mxu0 0.0
        %1474 = vmatpush1.xpose.msra.mxu0 0.0
        %1475 = vmatprep.subr.mxu0 0.0
        %1476 = vmatpush1.xpose.msra.mxu0 0.0
        %1477 = vmatprep.subr.mxu0 0.0
        %1478 = vmatpush1.xpose.msra.mxu0 0.0
        %1479 = vmatprep.subr.mxu0 0.0
        %1480 = vmatpush1.xpose.msra.mxu0 0.0
        %1481 = vmatprep.subr.mxu0 0.0
        %1482 = vmatpush1.xpose.msra.mxu0 0.0
        %1483 = vmatprep.subr.mxu0 0.0
        %1484 = vmatpush1.xpose.msra.mxu0 0.0
        %1485 = vmatprep.subr.mxu0 0.0
        %1486 = vmatpush1.xpose.msra.mxu0 0.0
        %1487 = vmatprep.subr.mxu0 0.0
        %1488 = vmatpush1.xpose.msra.mxu0 0.0
        %1489 = vmatprep.subr.mxu0 0.0
        %1490 = vmatpush1.xpose.msra.mxu0 0.0
        %1491 = vmatprep.subr.mxu0 0.0
        %1492 = vmatpush1.xpose.msra.mxu0 0.0
        %1493 = vmatprep.subr.mxu0 0.0
        %1494 = vmatpush1.xpose.msra.mxu0 0.0
        %1495 = vmatprep.subr.mxu0 0.0
        %1496 = vmatpush1.xpose.msra.mxu0 0.0
        %1497 = vmatprep.subr.mxu0 0.0
        %1498 = vmatpush1.xpose.msra.mxu0 0.0
        %1499 = vmatprep.mubr.f32.mxu0 0.0
        %1500 = vmatmul.mubr.f32.gmra.mrb[0].mxu0 %v987
        %v1501 = vpop.f32.mrb[0].mxu0
        %v1502 = vadd.f32 0.0, %v1501
        %v1503 = vpop.f32.mrb[0].mxu0
        %1504 = vmatprep.mubr.f32.mxu0 0.0
        %1505 = vmatmul.mubr.f32.gmra.mrb[0].mxu0 %v989
        %v1506 = vpop.f32.mrb[0].mxu0
        %v1507 = vadd.f32 0.0, %v1506
        %v1508 = vpop.f32.mrb[0].mxu0
        %1509 = vmatprep.mubr.f32.mxu0 0.0
        %1510 = vmatmul.mubr.f32.gmra.mrb[0].mxu0 %v991
        %v1511 = vpop.f32.mrb[0].mxu0
        %v1512 = vadd.f32 0.0, %v1511
        %v1513 = vpop.f32.mrb[0].mxu0
        %1514 = vmatprep.mubr.f32.mxu0 0.0
        %1515 = vmatmul.mubr.f32.gmra.mrb[0].mxu0 %v993
        %v1516 = vpop.f32.mrb[0].mxu0
        %v1517 = vadd.f32 0.0, %v1516
        %v1518 = vpop.f32.mrb[0].mxu0
        %1519 = vmatprep.mubr.f32.mxu0 0.0
        %1520 = vmatmul.mubr.f32.gmra.mrb[0].mxu0 %v995
        %v1521 = vpop.f32.mrb[0].mxu0
        %v1522 = vadd.f32 0.0, %v1521
        %v1523 = vpop.f32.mrb[0].mxu0
        %1524 = vmatprep.mubr.f32.mxu0 0.0
        %1525 = vmatmul.mubr.f32.gmra.mrb[0].mxu0 %v997
        %v1526 = vpop.f32.mrb[0].mxu0
        %v1527 = vadd.f32 0.0, %v1526
        %v1528 = vpop.f32.mrb[0].mxu0
        %1529 = vmatprep.mubr.f32.mxu0 0.0
        %1530 = vmatmul.mubr.f32.gmra.mrb[0].mxu0 %v999
        %v1531 = vpop.f32.mrb[0].mxu0
        %v1532 = vadd.f32 0.0, %v1531
        %v1533 = vpop.f32.mrb[0].mxu0
        %1534 = vmatprep.mubr.f32.mxu0 0.0
        %1535 = vmatmul.mubr.f32.gmra.mrb[0].mxu0 %v1001
        %v1536 = vpop.f32.mrb[0].mxu0
        %v1537 = vadd.f32 0.0, %v1536
        %v1538 = vpop.f32.mrb[0].mxu0
        %1539 = vmatprep.mubr.f32.mxu0 0.0
        %1540 = vmatmul.mubr.f32.gmra.mrb[0].mxu0 %v1003
        %v1541 = vpop.f32.mrb[0].mxu0
        %v1542 = vadd.f32 0.0, %v1541
        %v1543 = vpop.f32.mrb[0].mxu0
        %1544 = vmatprep.mubr.f32.mxu0 0.0
        %1545 = vmatmul.mubr.f32.gmra.mrb[0].mxu0 %v1005
        %v1546 = vpop.f32.mrb[0].mxu0
        %v1547 = vadd.f32 0.0, %v1546
        %v1548 = vpop.f32.mrb[0].mxu0
        %1549 = vmatprep.mubr.f32.mxu0 0.0
        %1550 = vmatmul.mubr.f32.gmra.mrb[0].mxu0 %v1007
        %v1551 = vpop.f32.mrb[0].mxu0
        %v1552 = vadd.f32 0.0, %v1551
        %v1553 = vpop.f32.mrb[0].mxu0
        %1554 = vmatprep.mubr.f32.mxu0 0.0
        %1555 = vmatmul.mubr.f32.gmra.mrb[0].mxu0 %v1009
        %v1556 = vpop.f32.mrb[0].mxu0
        %v1557 = vadd.f32 0.0, %v1556
        %v1558 = vpop.f32.mrb[0].mxu0
        %1559 = vmatprep.mubr.f32.mxu0 0.0
        %1560 = vmatmul.mubr.f32.gmra.mrb[0].mxu0 %v1011
        %v1561 = vpop.f32.mrb[0].mxu0
        %v1562 = vadd.f32 0.0, %v1561
        %v1563 = vpop.f32.mrb[0].mxu0
        %1564 = vmatprep.mubr.f32.mxu0 0.0
        %1565 = vmatmul.mubr.f32.gmra.mrb[0].mxu0 %v1013
        %v1566 = vpop.f32.mrb[0].mxu0
        %v1567 = vadd.f32 0.0, %v1566
        %v1568 = vpop.f32.mrb[0].mxu0
        %1569 = vmatprep.mubr.f32.mxu0 0.0
        %1570 = vmatmul.mubr.f32.gmra.mrb[0].mxu0 %v1015
        %v1571 = vpop.f32.mrb[0].mxu0
        %v1572 = vadd.f32 0.0, %v1571
        %v1573 = vpop.f32.mrb[0].mxu0
        %1574 = vmatprep.mubr.f32.mxu0 0.0
        %1575 = vmatmul.mubr.f32.gmra.mrb[0].mxu0 %v1017
        %v1576 = vpop.f32.mrb[0].mxu0
        %v1577 = vadd.f32 0.0, %v1576
        %v1578 = vpop.f32.mrb[0].mxu0
        %1579 = vdwg.mxu0
        %1580 = vmatprep.subr.mxu0 0.0
        %1581 = vmatpush1.xpose.msra.mxu0 %v1323
        %1582 = vmatprep.subr.mxu0 0.0
        %1583 = vmatpush1.xpose.msra.mxu0 %v1324
        %1584 = vmatprep.subr.mxu0 0.0
        %1585 = vmatpush1.xpose.msra.mxu0 %v1325
        %1586 = vmatprep.subr.mxu0 0.0
        %1587 = vmatpush1.xpose.msra.mxu0 %v1326
        %1588 = vmatprep.subr.mxu0 0.0
        %1589 = vmatpush1.xpose.msra.mxu0 %v1327
        %1590 = vmatprep.subr.mxu0 0.0
        %1591 = vmatpush1.xpose.msra.mxu0 %v1328
        %1592 = vmatprep.subr.mxu0 0.0
        %1593 = vmatpush1.xpose.msra.mxu0 %v1329
        %1594 = vmatprep.subr.mxu0 0.0
        %1595 = vmatpush1.xpose.msra.mxu0 %v1330
        %1596 = vmatprep.subr.mxu0 0.0
        %1597 = vmatpush1.xpose.msra.mxu0 %v1331
        %1598 = vmatprep.subr.mxu0 0.0
        %1599 = vmatpush1.xpose.msra.mxu0 %v1332
        %1600 = vmatprep.subr.mxu0 0.0
        %1601 = vmatpush1.xpose.msra.mxu0 %v1333
        %1602 = vmatprep.subr.mxu0 0.0
        %1603 = vmatpush1.xpose.msra.mxu0 %v1334
        %1604 = vmatprep.subr.mxu0 0.0
        %1605 = vmatpush1.xpose.msra.mxu0 %v1335
        %1606 = vmatprep.subr.mxu0 0.0
        %1607 = vmatpush1.xpose.msra.mxu0 %v1336
        %1608 = vmatprep.subr.mxu0 0.0
        %1609 = vmatpush1.xpose.msra.mxu0 %v1337
        %1610 = vmatprep.subr.mxu0 0.0
        %1611 = vmatpush1.xpose.msra.mxu0 %v1338
        %1612 = vmatprep.subr.mxu0 0.0
        %1613 = vmatpush1.xpose.msra.mxu0 0.0
        %1614 = vmatprep.subr.mxu0 0.0
        %1615 = vmatpush1.xpose.msra.mxu0 0.0
        %1616 = vmatprep.subr.mxu0 0.0
        %1617 = vmatpush1.xpose.msra.mxu0 0.0
        %1618 = vmatprep.subr.mxu0 0.0
        %1619 = vmatpush1.xpose.msra.mxu0 0.0
        %1620 = vmatprep.subr.mxu0 0.0
        %1621 = vmatpush1.xpose.msra.mxu0 0.0
        %1622 = vmatprep.subr.mxu0 0.0
        %1623 = vmatpush1.xpose.msra.mxu0 0.0
        %1624 = vmatprep.subr.mxu0 0.0
        %1625 = vmatpush1.xpose.msra.mxu0 0.0
        %1626 = vmatprep.subr.mxu0 0.0
        %1627 = vmatpush1.xpose.msra.mxu0 0.0
        %1628 = vmatprep.subr.mxu0 0.0
        %1629 = vmatpush1.xpose.msra.mxu0 0.0
        %1630 = vmatprep.subr.mxu0 0.0
        %1631 = vmatpush1.xpose.msra.mxu0 0.0
        %1632 = vmatprep.subr.mxu0 0.0
        %1633 = vmatpush1.xpose.msra.mxu0 0.0
        %1634 = vmatprep.subr.mxu0 0.0
        %1635 = vmatpush1.xpose.msra.mxu0 0.0
        %1636 = vmatprep.subr.mxu0 0.0
        %1637 = vmatpush1.xpose.msra.mxu0 0.0
        %1638 = vmatprep.subr.mxu0 0.0
        %1639 = vmatpush1.xpose.msra.mxu0 0.0
        %1640 = vmatprep.subr.mxu0 0.0
        %1641 = vmatpush1.xpose.msra.mxu0 0.0
        %1642 = vmatprep.subr.mxu0 0.0
        %1643 = vmatpush1.xpose.msra.mxu0 0.0
        %1644 = vmatprep.mubr.f32.mxu0 0.0
        %1645 = vmatmul.mubr.f32.gmra.mrb[0].mxu0 %v1019
        %v1646 = vpop.f32.mrb[0].mxu0
        %v1647 = vadd.f32 0.0, %v1646
        %v1648 = vpop.f32.mrb[0].mxu0
        %1649 = vmatprep.mubr.f32.mxu0 0.0
        %1650 = vmatmul.mubr.f32.gmra.mrb[0].mxu0 %v1021
        %v1651 = vpop.f32.mrb[0].mxu0
        %v1652 = vadd.f32 0.0, %v1651
        %v1653 = vpop.f32.mrb[0].mxu0
        %1654 = vmatprep.mubr.f32.mxu0 0.0
        %1655 = vmatmul.mubr.f32.gmra.mrb[0].mxu0 %v1023
        %v1656 = vpop.f32.mrb[0].mxu0
        %v1657 = vadd.f32 0.0, %v1656
        %v1658 = vpop.f32.mrb[0].mxu0
        %1659 = vmatprep.mubr.f32.mxu0 0.0
        %1660 = vmatmul.mubr.f32.gmra.mrb[0].mxu0 %v1025
        %v1661 = vpop.f32.mrb[0].mxu0
        %v1662 = vadd.f32 0.0, %v1661
        %v1663 = vpop.f32.mrb[0].mxu0
        %1664 = vmatprep.mubr.f32.mxu0 0.0
        %1665 = vmatmul.mubr.f32.gmra.mrb[0].mxu0 %v1027
        %v1666 = vpop.f32.mrb[0].mxu0
        %v1667 = vadd.f32 0.0, %v1666
        %v1668 = vpop.f32.mrb[0].mxu0
        %1669 = vmatprep.mubr.f32.mxu0 0.0
        %1670 = vmatmul.mubr.f32.gmra.mrb[0].mxu0 %v1029
        %v1671 = vpop.f32.mrb[0].mxu0
        %v1672 = vadd.f32 0.0, %v1671
        %v1673 = vpop.f32.mrb[0].mxu0
        %1674 = vmatprep.mubr.f32.mxu0 0.0
        %1675 = vmatmul.mubr.f32.gmra.mrb[0].mxu0 %v1031
        %v1676 = vpop.f32.mrb[0].mxu0
        %v1677 = vadd.f32 0.0, %v1676
        %v1678 = vpop.f32.mrb[0].mxu0
        %1679 = vmatprep.mubr.f32.mxu0 0.0
        %1680 = vmatmul.mubr.f32.gmra.mrb[0].mxu0 %v1033
        %v1681 = vpop.f32.mrb[0].mxu0
        %v1682 = vadd.f32 0.0, %v1681
        %v1683 = vpop.f32.mrb[0].mxu0
        %1684 = vmatprep.mubr.f32.mxu0 0.0
        %1685 = vmatmul.mubr.f32.gmra.mrb[0].mxu0 %v1035
        %v1686 = vpop.f32.mrb[0].mxu0
        %v1687 = vadd.f32 0.0, %v1686
        %v1688 = vpop.f32.mrb[0].mxu0
        %1689 = vmatprep.mubr.f32.mxu0 0.0
        %1690 = vmatmul.mubr.f32.gmra.mrb[0].mxu0 %v1037
        %v1691 = vpop.f32.mrb[0].mxu0
        %v1692 = vadd.f32 0.0, %v1691
        %v1693 = vpop.f32.mrb[0].mxu0
        %1694 = vmatprep.mubr.f32.mxu0 0.0
        %1695 = vmatmul.mubr.f32.gmra.mrb[0].mxu0 %v1039
        %v1696 = vpop.f32.mrb[0].mxu0
        %v1697 = vadd.f32 0.0, %v1696
        %v1698 = vpop.f32.mrb[0].mxu0
        %1699 = vmatprep.mubr.f32.mxu0 0.0
        %1700 = vmatmul.mubr.f32.gmra.mrb[0].mxu0 %v1041
        %v1701 = vpop.f32.mrb[0].mxu0
        %v1702 = vadd.f32 0.0, %v1701
        %v1703 = vpop.f32.mrb[0].mxu0
        %1704 = vmatprep.mubr.f32.mxu0 0.0
        %1705 = vmatmul.mubr.f32.gmra.mrb[0].mxu0 %v1043
        %v1706 = vpop.f32.mrb[0].mxu0
        %v1707 = vadd.f32 0.0, %v1706
        %v1708 = vpop.f32.mrb[0].mxu0
        %1709 = vmatprep.mubr.f32.mxu0 0.0
        %1710 = vmatmul.mubr.f32.gmra.mrb[0].mxu0 %v1045
        %v1711 = vpop.f32.mrb[0].mxu0
        %v1712 = vadd.f32 0.0, %v1711
        %v1713 = vpop.f32.mrb[0].mxu0
        %1714 = vmatprep.mubr.f32.mxu0 0.0
        %1715 = vmatmul.mubr.f32.gmra.mrb[0].mxu0 %v1047
        %v1716 = vpop.f32.mrb[0].mxu0
        %v1717 = vadd.f32 0.0, %v1716
        %v1718 = vpop.f32.mrb[0].mxu0
        %1719 = vmatprep.mubr.f32.mxu0 0.0
        %1720 = vmatmul.mubr.f32.gmra.mrb[0].mxu0 %v1049
        %v1721 = vpop.f32.mrb[0].mxu0
        %v1722 = vadd.f32 0.0, %v1721
        %v1723 = vpop.f32.mrb[0].mxu0
        %1724 = vdwg.mxu0
        %1725 = vmatprep.subr.mxu0 0.0
        %1726 = vmatpush1.xpose.msra.mxu0 %v1339
        %1727 = vmatprep.subr.mxu0 0.0
        %1728 = vmatpush1.xpose.msra.mxu0 %v1340
        %1729 = vmatprep.subr.mxu0 0.0
        %1730 = vmatpush1.xpose.msra.mxu0 %v1341
        %1731 = vmatprep.subr.mxu0 0.0
        %1732 = vmatpush1.xpose.msra.mxu0 %v1342
        %1733 = vmatprep.subr.mxu0 0.0
        %1734 = vmatpush1.xpose.msra.mxu0 %v1343
        %1735 = vmatprep.subr.mxu0 0.0
        %1736 = vmatpush1.xpose.msra.mxu0 %v1344
        %1737 = vmatprep.subr.mxu0 0.0
        %1738 = vmatpush1.xpose.msra.mxu0 %v1345
        %1739 = vmatprep.subr.mxu0 0.0
        %1740 = vmatpush1.xpose.msra.mxu0 %v1346
        %1741 = vmatprep.subr.mxu0 0.0
        %1742 = vmatpush1.xpose.msra.mxu0 %v1347
        %1743 = vmatprep.subr.mxu0 0.0
        %1744 = vmatpush1.xpose.msra.mxu0 %v1348
        %1745 = vmatprep.subr.mxu0 0.0
        %1746 = vmatpush1.xpose.msra.mxu0 %v1349
        %1747 = vmatprep.subr.mxu0 0.0
        %1748 = vmatpush1.xpose.msra.mxu0 %v1350
        %1749 = vmatprep.subr.mxu0 0.0
        %1750 = vmatpush1.xpose.msra.mxu0 %v1351
        %1751 = vmatprep.subr.mxu0 0.0
        %1752 = vmatpush1.xpose.msra.mxu0 %v1352
        %1753 = vmatprep.subr.mxu0 0.0
        %1754 = vmatpush1.xpose.msra.mxu0 %v1353
        %1755 = vmatprep.subr.mxu0 0.0
        %1756 = vmatpush1.xpose.msra.mxu0 %v1354
        %1757 = vmatprep.subr.mxu0 0.0
        %1758 = vmatpush1.xpose.msra.mxu0 0.0
        %1759 = vmatprep.subr.mxu0 0.0
        %1760 = vmatpush1.xpose.msra.mxu0 0.0
        %1761 = vmatprep.subr.mxu0 0.0
        %1762 = vmatpush1.xpose.msra.mxu0 0.0
        %1763 = vmatprep.subr.mxu0 0.0
        %1764 = vmatpush1.xpose.msra.mxu0 0.0
        %1765 = vmatprep.subr.mxu0 0.0
        %1766 = vmatpush1.xpose.msra.mxu0 0.0
        %1767 = vmatprep.subr.mxu0 0.0
        %1768 = vmatpush1.xpose.msra.mxu0 0.0
        %1769 = vmatprep.subr.mxu0 0.0
        %1770 = vmatpush1.xpose.msra.mxu0 0.0
        %1771 = vmatprep.subr.mxu0 0.0
        %1772 = vmatpush1.xpose.msra.mxu0 0.0
        %1773 = vmatprep.subr.mxu0 0.0
        %1774 = vmatpush1.xpose.msra.mxu0 0.0
        %1775 = vmatprep.subr.mxu0 0.0
        %1776 = vmatpush1.xpose.msra.mxu0 0.0
        %1777 = vmatprep.subr.mxu0 0.0
        %1778 = vmatpush1.xpose.msra.mxu0 0.0
        %1779 = vmatprep.subr.mxu0 0.0
        %1780 = vmatpush1.xpose.msra.mxu0 0.0
        %1781 = vmatprep.subr.mxu0 0.0
        %1782 = vmatpush1.xpose.msra.mxu0 0.0
        %1783 = vmatprep.subr.mxu0 0.0
        %1784 = vmatpush1.xpose.msra.mxu0 0.0
        %1785 = vmatprep.subr.mxu0 0.0
        %1786 = vmatpush1.xpose.msra.mxu0 0.0
        %1787 = vmatprep.subr.mxu0 0.0
        %1788 = vmatpush1.xpose.msra.mxu0 0.0
        %1789 = vmatprep.mubr.f32.mxu0 0.0
        %1790 = vmatmul.mubr.f32.gmra.mrb[0].mxu0 %v1051
        %v1791 = vpop.f32.mrb[0].mxu0
        %v1792 = vadd.f32 0.0, %v1791
        %v1793 = vpop.f32.mrb[0].mxu0
        %1794 = vmatprep.mubr.f32.mxu0 0.0
        %1795 = vmatmul.mubr.f32.gmra.mrb[0].mxu0 %v1053
        %v1796 = vpop.f32.mrb[0].mxu0
        %v1797 = vadd.f32 0.0, %v1796
        %v1798 = vpop.f32.mrb[0].mxu0
        %1799 = vmatprep.mubr.f32.mxu0 0.0
        %1800 = vmatmul.mubr.f32.gmra.mrb[0].mxu0 %v1055
        %v1801 = vpop.f32.mrb[0].mxu0
        %v1802 = vadd.f32 0.0, %v1801
        %v1803 = vpop.f32.mrb[0].mxu0
        %1804 = vmatprep.mubr.f32.mxu0 0.0
        %1805 = vmatmul.mubr.f32.gmra.mrb[0].mxu0 %v1057
        %v1806 = vpop.f32.mrb[0].mxu0
        %v1807 = vadd.f32 0.0, %v1806
        %v1808 = vpop.f32.mrb[0].mxu0
        %1809 = vmatprep.mubr.f32.mxu0 0.0
        %1810 = vmatmul.mubr.f32.gmra.mrb[0].mxu0 %v1059
        %v1811 = vpop.f32.mrb[0].mxu0
        %v1812 = vadd.f32 0.0, %v1811
        %v1813 = vpop.f32.mrb[0].mxu0
        %1814 = vmatprep.mubr.f32.mxu0 0.0
        %1815 = vmatmul.mubr.f32.gmra.mrb[0].mxu0 %v1061
        %v1816 = vpop.f32.mrb[0].mxu0
        %v1817 = vadd.f32 0.0, %v1816
        %v1818 = vpop.f32.mrb[0].mxu0
        %1819 = vmatprep.mubr.f32.mxu0 0.0
        %1820 = vmatmul.mubr.f32.gmra.mrb[0].mxu0 %v1063
        %v1821 = vpop.f32.mrb[0].mxu0
        %v1822 = vadd.f32 0.0, %v1821
        %v1823 = vpop.f32.mrb[0].mxu0
        %1824 = vmatprep.mubr.f32.mxu0 0.0
        %1825 = vmatmul.mubr.f32.gmra.mrb[0].mxu0 %v1065
        %v1826 = vpop.f32.mrb[0].mxu0
        %v1827 = vadd.f32 0.0, %v1826
        %v1828 = vpop.f32.mrb[0].mxu0
        %1829 = vmatprep.mubr.f32.mxu0 0.0
        %1830 = vmatmul.mubr.f32.gmra.mrb[0].mxu0 %v1067
        %v1831 = vpop.f32.mrb[0].mxu0
        %v1832 = vadd.f32 0.0, %v1831
        %v1833 = vpop.f32.mrb[0].mxu0
        %1834 = vmatprep.mubr.f32.mxu0 0.0
        %1835 = vmatmul.mubr.f32.gmra.mrb[0].mxu0 %v1069
        %v1836 = vpop.f32.mrb[0].mxu0
        %v1837 = vadd.f32 0.0, %v1836
        %v1838 = vpop.f32.mrb[0].mxu0
        %1839 = vmatprep.mubr.f32.mxu0 0.0
        %1840 = vmatmul.mubr.f32.gmra.mrb[0].mxu0 %v1071
        %v1841 = vpop.f32.mrb[0].mxu0
        %v1842 = vadd.f32 0.0, %v1841
        %v1843 = vpop.f32.mrb[0].mxu0
        %1844 = vmatprep.mubr.f32.mxu0 0.0
        %1845 = vmatmul.mubr.f32.gmra.mrb[0].mxu0 %v1073
        %v1846 = vpop.f32.mrb[0].mxu0
        %v1847 = vadd.f32 0.0, %v1846
        %v1848 = vpop.f32.mrb[0].mxu0
        %1849 = vmatprep.mubr.f32.mxu0 0.0
        %1850 = vmatmul.mubr.f32.gmra.mrb[0].mxu0 %v1075
        %v1851 = vpop.f32.mrb[0].mxu0
        %v1852 = vadd.f32 0.0, %v1851
        %v1853 = vpop.f32.mrb[0].mxu0
        %1854 = vmatprep.mubr.f32.mxu0 0.0
        %1855 = vmatmul.mubr.f32.gmra.mrb[0].mxu0 %v1077
        %v1856 = vpop.f32.mrb[0].mxu0
        %v1857 = vadd.f32 0.0, %v1856
        %v1858 = vpop.f32.mrb[0].mxu0
        %1859 = vmatprep.mubr.f32.mxu0 0.0
        %1860 = vmatmul.mubr.f32.gmra.mrb[0].mxu0 %v1079
        %v1861 = vpop.f32.mrb[0].mxu0
        %v1862 = vadd.f32 0.0, %v1861
        %v1863 = vpop.f32.mrb[0].mxu0
        %1864 = vmatprep.mubr.f32.mxu0 0.0
        %1865 = vmatmul.mubr.f32.gmra.mrb[0].mxu0 %v1081
        %v1866 = vpop.f32.mrb[0].mxu0
        %v1867 = vadd.f32 0.0, %v1866
        %v1868 = vpop.f32.mrb[0].mxu0
        %1869 = vdwg.mxu0
        %1870 = vmatprep.subr.mxu0 0.0
        %1871 = vmatpush1.xpose.msra.mxu0 %v1355
        %1872 = vmatprep.subr.mxu0 0.0
        %1873 = vmatpush1.xpose.msra.mxu0 %v1356
        %1874 = vmatprep.subr.mxu0 0.0
        %1875 = vmatpush1.xpose.msra.mxu0 %v1357
        %1876 = vmatprep.subr.mxu0 0.0
        %1877 = vmatpush1.xpose.msra.mxu0 %v1358
        %1878 = vmatprep.subr.mxu0 0.0
        %1879 = vmatpush1.xpose.msra.mxu0 %v1359
        %1880 = vmatprep.subr.mxu0 0.0
        %1881 = vmatpush1.xpose.msra.mxu0 %v1360
        %1882 = vmatprep.subr.mxu0 0.0
        %1883 = vmatpush1.xpose.msra.mxu0 %v1361
        %1884 = vmatprep.subr.mxu0 0.0
        %1885 = vmatpush1.xpose.msra.mxu0 %v1362
        %1886 = vmatprep.subr.mxu0 0.0
        %1887 = vmatpush1.xpose.msra.mxu0 %v1363
        %1888 = vmatprep.subr.mxu0 0.0
        %1889 = vmatpush1.xpose.msra.mxu0 %v1364
        %1890 = vmatprep.subr.mxu0 0.0
        %1891 = vmatpush1.xpose.msra.mxu0 %v1365
        %1892 = vmatprep.subr.mxu0 0.0
        %1893 = vmatpush1.xpose.msra.mxu0 %v1366
        %1894 = vmatprep.subr.mxu0 0.0
        %1895 = vmatpush1.xpose.msra.mxu0 %v1367
        %1896 = vmatprep.subr.mxu0 0.0
        %1897 = vmatpush1.xpose.msra.mxu0 %v1368
        %1898 = vmatprep.subr.mxu0 0.0
        %1899 = vmatpush1.xpose.msra.mxu0 %v1369
        %1900 = vmatprep.subr.mxu0 0.0
        %1901 = vmatpush1.xpose.msra.mxu0 %v1370
        %1902 = vmatprep.subr.mxu0 0.0
        %1903 = vmatpush1.xpose.msra.mxu0 0.0
        %1904 = vmatprep.subr.mxu0 0.0
        %1905 = vmatpush1.xpose.msra.mxu0 0.0
        %1906 = vmatprep.subr.mxu0 0.0
        %1907 = vmatpush1.xpose.msra.mxu0 0.0
        %1908 = vmatprep.subr.mxu0 0.0
        %1909 = vmatpush1.xpose.msra.mxu0 0.0
        %1910 = vmatprep.subr.mxu0 0.0
        %1911 = vmatpush1.xpose.msra.mxu0 0.0
        %1912 = vmatprep.subr.mxu0 0.0
        %1913 = vmatpush1.xpose.msra.mxu0 0.0
        %1914 = vmatprep.subr.mxu0 0.0
        %1915 = vmatpush1.xpose.msra.mxu0 0.0
        %1916 = vmatprep.subr.mxu0 0.0
        %1917 = vmatpush1.xpose.msra.mxu0 0.0
        %1918 = vmatprep.subr.mxu0 0.0
        %1919 = vmatpush1.xpose.msra.mxu0 0.0
        %1920 = vmatprep.subr.mxu0 0.0
        %1921 = vmatpush1.xpose.msra.mxu0 0.0
        %1922 = vmatprep.subr.mxu0 0.0
        %1923 = vmatpush1.xpose.msra.mxu0 0.0
        %1924 = vmatprep.subr.mxu0 0.0
        %1925 = vmatpush1.xpose.msra.mxu0 0.0
        %1926 = vmatprep.subr.mxu0 0.0
        %1927 = vmatpush1.xpose.msra.mxu0 0.0
        %1928 = vmatprep.subr.mxu0 0.0
        %1929 = vmatpush1.xpose.msra.mxu0 0.0
        %1930 = vmatprep.subr.mxu0 0.0
        %1931 = vmatpush1.xpose.msra.mxu0 0.0
        %1932 = vmatprep.subr.mxu0 0.0
        %1933 = vmatpush1.xpose.msra.mxu0 0.0
        %1934 = vmatprep.mubr.f32.mxu0 0.0
        %1935 = vmatmul.mubr.f32.gmra.mrb[0].mxu0 %v1083
        %v1936 = vpop.f32.mrb[0].mxu0
        %v1937 = vadd.f32 0.0, %v1936
        %v1938 = vpop.f32.mrb[0].mxu0
        %1939 = vmatprep.mubr.f32.mxu0 0.0
        %1940 = vmatmul.mubr.f32.gmra.mrb[0].mxu0 %v1085
        %v1941 = vpop.f32.mrb[0].mxu0
        %v1942 = vadd.f32 0.0, %v1941
        %v1943 = vpop.f32.mrb[0].mxu0
        %1944 = vmatprep.mubr.f32.mxu0 0.0
        %1945 = vmatmul.mubr.f32.gmra.mrb[0].mxu0 %v1087
        %v1946 = vpop.f32.mrb[0].mxu0
        %v1947 = vadd.f32 0.0, %v1946
        %v1948 = vpop.f32.mrb[0].mxu0
        %1949 = vmatprep.mubr.f32.mxu0 0.0
        %1950 = vmatmul.mubr.f32.gmra.mrb[0].mxu0 %v1089
        %v1951 = vpop.f32.mrb[0].mxu0
        %v1952 = vadd.f32 0.0, %v1951
        %v1953 = vpop.f32.mrb[0].mxu0
        %1954 = vmatprep.mubr.f32.mxu0 0.0
        %1955 = vmatmul.mubr.f32.gmra.mrb[0].mxu0 %v1091
        %v1956 = vpop.f32.mrb[0].mxu0
        %v1957 = vadd.f32 0.0, %v1956
        %v1958 = vpop.f32.mrb[0].mxu0
        %1959 = vmatprep.mubr.f32.mxu0 0.0
        %1960 = vmatmul.mubr.f32.gmra.mrb[0].mxu0 %v1093
        %v1961 = vpop.f32.mrb[0].mxu0
        %v1962 = vadd.f32 0.0, %v1961
        %v1963 = vpop.f32.mrb[0].mxu0
        %1964 = vmatprep.mubr.f32.mxu0 0.0
        %1965 = vmatmul.mubr.f32.gmra.mrb[0].mxu0 %v1095
        %v1966 = vpop.f32.mrb[0].mxu0
        %v1967 = vadd.f32 0.0, %v1966
        %v1968 = vpop.f32.mrb[0].mxu0
        %1969 = vmatprep.mubr.f32.mxu0 0.0
        %1970 = vmatmul.mubr.f32.gmra.mrb[0].mxu0 %v1097
        %v1971 = vpop.f32.mrb[0].mxu0
        %v1972 = vadd.f32 0.0, %v1971
        %v1973 = vpop.f32.mrb[0].mxu0
        %1974 = vmatprep.mubr.f32.mxu0 0.0
        %1975 = vmatmul.mubr.f32.gmra.mrb[0].mxu0 %v1099
        %v1976 = vpop.f32.mrb[0].mxu0
        %v1977 = vadd.f32 0.0, %v1976
        %v1978 = vpop.f32.mrb[0].mxu0
        %1979 = vmatprep.mubr.f32.mxu0 0.0
        %1980 = vmatmul.mubr.f32.gmra.mrb[0].mxu0 %v1101
        %v1981 = vpop.f32.mrb[0].mxu0
        %v1982 = vadd.f32 0.0, %v1981
        %v1983 = vpop.f32.mrb[0].mxu0
        %1984 = vmatprep.mubr.f32.mxu0 0.0
        %1985 = vmatmul.mubr.f32.gmra.mrb[0].mxu0 %v1103
        %v1986 = vpop.f32.mrb[0].mxu0
        %v1987 = vadd.f32 0.0, %v1986
        %v1988 = vpop.f32.mrb[0].mxu0
        %1989 = vmatprep.mubr.f32.mxu0 0.0
        %1990 = vmatmul.mubr.f32.gmra.mrb[0].mxu0 %v1105
        %v1991 = vpop.f32.mrb[0].mxu0
        %v1992 = vadd.f32 0.0, %v1991
        %v1993 = vpop.f32.mrb[0].mxu0
        %1994 = vmatprep.mubr.f32.mxu0 0.0
        %1995 = vmatmul.mubr.f32.gmra.mrb[0].mxu0 %v1107
        %v1996 = vpop.f32.mrb[0].mxu0
        %v1997 = vadd.f32 0.0, %v1996
        %v1998 = vpop.f32.mrb[0].mxu0
        %1999 = vmatprep.mubr.f32.mxu0 0.0
        %2000 = vmatmul.mubr.f32.gmra.mrb[0].mxu0 %v1109
        %v2001 = vpop.f32.mrb[0].mxu0
        %v2002 = vadd.f32 0.0, %v2001
        %v2003 = vpop.f32.mrb[0].mxu0
        %2004 = vmatprep.mubr.f32.mxu0 0.0
        %2005 = vmatmul.mubr.f32.gmra.mrb[0].mxu0 %v1111
        %v2006 = vpop.f32.mrb[0].mxu0
        %v2007 = vadd.f32 0.0, %v2006
        %v2008 = vpop.f32.mrb[0].mxu0
        %2009 = vmatprep.mubr.f32.mxu0 0.0
        %2010 = vmatmul.mubr.f32.gmra.mrb[0].mxu0 %v1113
        %v2011 = vpop.f32.mrb[0].mxu0
        %v2012 = vadd.f32 0.0, %v2011
        %v2013 = vpop.f32.mrb[0].mxu0
        %2014 = vdwg.mxu0
        %2015 = vmatprep.subr.mxu0 0.0
        %2016 = vmatpush1.xpose.msra.mxu0 %v1371
        %2017 = vmatprep.subr.mxu0 0.0
        %2018 = vmatpush1.xpose.msra.mxu0 %v1372
        %2019 = vmatprep.subr.mxu0 0.0
        %2020 = vmatpush1.xpose.msra.mxu0 %v1373
        %2021 = vmatprep.subr.mxu0 0.0
        %2022 = vmatpush1.xpose.msra.mxu0 %v1374
        %2023 = vmatprep.subr.mxu0 0.0
        %2024 = vmatpush1.xpose.msra.mxu0 %v1375
        %2025 = vmatprep.subr.mxu0 0.0
        %2026 = vmatpush1.xpose.msra.mxu0 %v1376
        %2027 = vmatprep.subr.mxu0 0.0
        %2028 = vmatpush1.xpose.msra.mxu0 %v1377
        %2029 = vmatprep.subr.mxu0 0.0
        %2030 = vmatpush1.xpose.msra.mxu0 %v1378
        %2031 = vmatprep.subr.mxu0 0.0
        %2032 = vmatpush1.xpose.msra.mxu0 %v1379
        %2033 = vmatprep.subr.mxu0 0.0
        %2034 = vmatpush1.xpose.msra.mxu0 %v1380
        %2035 = vmatprep.subr.mxu0 0.0
        %2036 = vmatpush1.xpose.msra.mxu0 %v1381
        %2037 = vmatprep.subr.mxu0 0.0
        %2038 = vmatpush1.xpose.msra.mxu0 %v1382
        %2039 = vmatprep.subr.mxu0 0.0
        %2040 = vmatpush1.xpose.msra.mxu0 %v1383
        %2041 = vmatprep.subr.mxu0 0.0
        %2042 = vmatpush1.xpose.msra.mxu0 %v1384
        %2043 = vmatprep.subr.mxu0 0.0
        %2044 = vmatpush1.xpose.msra.mxu0 %v1385
        %2045 = vmatprep.subr.mxu0 0.0
        %2046 = vmatpush1.xpose.msra.mxu0 %v1386
        %2047 = vmatprep.subr.mxu0 0.0
        %2048 = vmatpush1.xpose.msra.mxu0 0.0
        %2049 = vmatprep.subr.mxu0 0.0
        %2050 = vmatpush1.xpose.msra.mxu0 0.0
        %2051 = vmatprep.subr.mxu0 0.0
        %2052 = vmatpush1.xpose.msra.mxu0 0.0
        %2053 = vmatprep.subr.mxu0 0.0
        %2054 = vmatpush1.xpose.msra.mxu0 0.0
        %2055 = vmatprep.subr.mxu0 0.0
        %2056 = vmatpush1.xpose.msra.mxu0 0.0
        %2057 = vmatprep.subr.mxu0 0.0
        %2058 = vmatpush1.xpose.msra.mxu0 0.0
        %2059 = vmatprep.subr.mxu0 0.0
        %2060 = vmatpush1.xpose.msra.mxu0 0.0
        %2061 = vmatprep.subr.mxu0 0.0
        %2062 = vmatpush1.xpose.msra.mxu0 0.0
        %2063 = vmatprep.subr.mxu0 0.0
        %2064 = vmatpush1.xpose.msra.mxu0 0.0
        %2065 = vmatprep.subr.mxu0 0.0
        %2066 = vmatpush1.xpose.msra.mxu0 0.0
        %2067 = vmatprep.subr.mxu0 0.0
        %2068 = vmatpush1.xpose.msra.mxu0 0.0
        %2069 = vmatprep.subr.mxu0 0.0
        %2070 = vmatpush1.xpose.msra.mxu0 0.0
        %2071 = vmatprep.subr.mxu0 0.0
        %2072 = vmatpush1.xpose.msra.mxu0 0.0
        %2073 = vmatprep.subr.mxu0 0.0
        %2074 = vmatpush1.xpose.msra.mxu0 0.0
        %2075 = vmatprep.subr.mxu0 0.0
        %2076 = vmatpush1.xpose.msra.mxu0 0.0
        %2077 = vmatprep.subr.mxu0 0.0
        %2078 = vmatpush1.xpose.msra.mxu0 0.0
        %2079 = vmatprep.mubr.f32.mxu0 0.0
        %2080 = vmatmul.mubr.f32.gmra.mrb[0].mxu0 %v1115
        %v2081 = vpop.f32.mrb[0].mxu0
        %v2082 = vadd.f32 0.0, %v2081
        %v2083 = vpop.f32.mrb[0].mxu0
        %2084 = vmatprep.mubr.f32.mxu0 0.0
        %2085 = vmatmul.mubr.f32.gmra.mrb[0].mxu0 %v1117
        %v2086 = vpop.f32.mrb[0].mxu0
        %v2087 = vadd.f32 0.0, %v2086
        %v2088 = vpop.f32.mrb[0].mxu0
        %2089 = vmatprep.mubr.f32.mxu0 0.0
        %2090 = vmatmul.mubr.f32.gmra.mrb[0].mxu0 %v1119
        %v2091 = vpop.f32.mrb[0].mxu0
        %v2092 = vadd.f32 0.0, %v2091
        %v2093 = vpop.f32.mrb[0].mxu0
        %2094 = vmatprep.mubr.f32.mxu0 0.0
        %2095 = vmatmul.mubr.f32.gmra.mrb[0].mxu0 %v1121
        %v2096 = vpop.f32.mrb[0].mxu0
        %v2097 = vadd.f32 0.0, %v2096
        %v2098 = vpop.f32.mrb[0].mxu0
        %2099 = vmatprep.mubr.f32.mxu0 0.0
        %2100 = vmatmul.mubr.f32.gmra.mrb[0].mxu0 %v1123
        %v2101 = vpop.f32.mrb[0].mxu0
        %v2102 = vadd.f32 0.0, %v2101
        %v2103 = vpop.f32.mrb[0].mxu0
        %2104 = vmatprep.mubr.f32.mxu0 0.0
        %2105 = vmatmul.mubr.f32.gmra.mrb[0].mxu0 %v1125
        %v2106 = vpop.f32.mrb[0].mxu0
        %v2107 = vadd.f32 0.0, %v2106
        %v2108 = vpop.f32.mrb[0].mxu0
        %2109 = vmatprep.mubr.f32.mxu0 0.0
        %2110 = vmatmul.mubr.f32.gmra.mrb[0].mxu0 %v1127
        %v2111 = vpop.f32.mrb[0].mxu0
        %v2112 = vadd.f32 0.0, %v2111
        %v2113 = vpop.f32.mrb[0].mxu0
        %2114 = vmatprep.mubr.f32.mxu0 0.0
        %2115 = vmatmul.mubr.f32.gmra.mrb[0].mxu0 %v1129
        %v2116 = vpop.f32.mrb[0].mxu0
        %v2117 = vadd.f32 0.0, %v2116
        %v2118 = vpop.f32.mrb[0].mxu0
        %2119 = vmatprep.mubr.f32.mxu0 0.0
        %2120 = vmatmul.mubr.f32.gmra.mrb[0].mxu0 %v1131
        %v2121 = vpop.f32.mrb[0].mxu0
        %v2122 = vadd.f32 0.0, %v2121
        %v2123 = vpop.f32.mrb[0].mxu0
        %2124 = vmatprep.mubr.f32.mxu0 0.0
        %2125 = vmatmul.mubr.f32.gmra.mrb[0].mxu0 %v1133
        %v2126 = vpop.f32.mrb[0].mxu0
        %v2127 = vadd.f32 0.0, %v2126
        %v2128 = vpop.f32.mrb[0].mxu0
        %2129 = vmatprep.mubr.f32.mxu0 0.0
        %2130 = vmatmul.mubr.f32.gmra.mrb[0].mxu0 %v1135
        %v2131 = vpop.f32.mrb[0].mxu0
        %v2132 = vadd.f32 0.0, %v2131
        %v2133 = vpop.f32.mrb[0].mxu0
        %2134 = vmatprep.mubr.f32.mxu0 0.0
        %2135 = vmatmul.mubr.f32.gmra.mrb[0].mxu0 %v1137
        %v2136 = vpop.f32.mrb[0].mxu0
        %v2137 = vadd.f32 0.0, %v2136
        %v2138 = vpop.f32.mrb[0].mxu0
        %2139 = vmatprep.mubr.f32.mxu0 0.0
        %2140 = vmatmul.mubr.f32.gmra.mrb[0].mxu0 %v1139
        %v2141 = vpop.f32.mrb[0].mxu0
        %v2142 = vadd.f32 0.0, %v2141
        %v2143 = vpop.f32.mrb[0].mxu0
        %2144 = vmatprep.mubr.f32.mxu0 0.0
        %2145 = vmatmul.mubr.f32.gmra.mrb[0].mxu0 %v1141
        %v2146 = vpop.f32.mrb[0].mxu0
        %v2147 = vadd.f32 0.0, %v2146
        %v2148 = vpop.f32.mrb[0].mxu0
        %2149 = vmatprep.mubr.f32.mxu0 0.0
        %2150 = vmatmul.mubr.f32.gmra.mrb[0].mxu0 %v1143
        %v2151 = vpop.f32.mrb[0].mxu0
        %v2152 = vadd.f32 0.0, %v2151
        %v2153 = vpop.f32.mrb[0].mxu0
        %2154 = vmatprep.mubr.f32.mxu0 0.0
        %2155 = vmatmul.mubr.f32.gmra.mrb[0].mxu0 %v1145
        %v2156 = vpop.f32.mrb[0].mxu0
        %v2157 = vadd.f32 0.0, %v2156
        %v2158 = vpop.f32.mrb[0].mxu0
        %2159 = vdwg.mxu0
        %2160 = vmatprep.subr.mxu0 0.0
        %2161 = vmatpush1.xpose.msra.mxu0 %v1387
        %2162 = vmatprep.subr.mxu0 0.0
        %2163 = vmatpush1.xpose.msra.mxu0 %v1388
        %2164 = vmatprep.subr.mxu0 0.0
        %2165 = vmatpush1.xpose.msra.mxu0 %v1389
        %2166 = vmatprep.subr.mxu0 0.0
        %2167 = vmatpush1.xpose.msra.mxu0 %v1390
        %2168 = vmatprep.subr.mxu0 0.0
        %2169 = vmatpush1.xpose.msra.mxu0 %v1391
        %2170 = vmatprep.subr.mxu0 0.0
        %2171 = vmatpush1.xpose.msra.mxu0 %v1392
        %2172 = vmatprep.subr.mxu0 0.0
        %2173 = vmatpush1.xpose.msra.mxu0 %v1393
        %2174 = vmatprep.subr.mxu0 0.0
        %2175 = vmatpush1.xpose.msra.mxu0 %v1394
        %2176 = vmatprep.subr.mxu0 0.0
        %2177 = vmatpush1.xpose.msra.mxu0 %v1395
        %2178 = vmatprep.subr.mxu0 0.0
        %2179 = vmatpush1.xpose.msra.mxu0 %v1396
        %2180 = vmatprep.subr.mxu0 0.0
        %2181 = vmatpush1.xpose.msra.mxu0 %v1397
        %2182 = vmatprep.subr.mxu0 0.0
        %2183 = vmatpush1.xpose.msra.mxu0 %v1398
        %2184 = vmatprep.subr.mxu0 0.0
        %2185 = vmatpush1.xpose.msra.mxu0 %v1399
        %2186 = vmatprep.subr.mxu0 0.0
        %2187 = vmatpush1.xpose.msra.mxu0 %v1400
        %2188 = vmatprep.subr.mxu0 0.0
        %2189 = vmatpush1.xpose.msra.mxu0 %v1401
        %2190 = vmatprep.subr.mxu0 0.0
        %2191 = vmatpush1.xpose.msra.mxu0 %v1402
        %2192 = vmatprep.subr.mxu0 0.0
        %2193 = vmatpush1.xpose.msra.mxu0 0.0
        %2194 = vmatprep.subr.mxu0 0.0
        %2195 = vmatpush1.xpose.msra.mxu0 0.0
        %2196 = vmatprep.subr.mxu0 0.0
        %2197 = vmatpush1.xpose.msra.mxu0 0.0
        %2198 = vmatprep.subr.mxu0 0.0
        %2199 = vmatpush1.xpose.msra.mxu0 0.0
        %2200 = vmatprep.subr.mxu0 0.0
        %2201 = vmatpush1.xpose.msra.mxu0 0.0
        %2202 = vmatprep.subr.mxu0 0.0
        %2203 = vmatpush1.xpose.msra.mxu0 0.0
        %2204 = vmatprep.subr.mxu0 0.0
        %2205 = vmatpush1.xpose.msra.mxu0 0.0
        %2206 = vmatprep.subr.mxu0 0.0
        %2207 = vmatpush1.xpose.msra.mxu0 0.0
        %2208 = vmatprep.subr.mxu0 0.0
        %2209 = vmatpush1.xpose.msra.mxu0 0.0
        %2210 = vmatprep.subr.mxu0 0.0
        %2211 = vmatpush1.xpose.msra.mxu0 0.0
        %2212 = vmatprep.subr.mxu0 0.0
        %2213 = vmatpush1.xpose.msra.mxu0 0.0
        %2214 = vmatprep.subr.mxu0 0.0
        %2215 = vmatpush1.xpose.msra.mxu0 0.0
        %2216 = vmatprep.subr.mxu0 0.0
        %2217 = vmatpush1.xpose.msra.mxu0 0.0
        %2218 = vmatprep.subr.mxu0 0.0
        %2219 = vmatpush1.xpose.msra.mxu0 0.0
        %2220 = vmatprep.subr.mxu0 0.0
        %2221 = vmatpush1.xpose.msra.mxu0 0.0
        %2222 = vmatprep.subr.mxu0 0.0
        %2223 = vmatpush1.xpose.msra.mxu0 0.0
        %2224 = vmatprep.mubr.f32.mxu0 0.0
        %2225 = vmatmul.mubr.f32.gmra.mrb[0].mxu0 %v1147
        %v2226 = vpop.f32.mrb[0].mxu0
        %v2227 = vadd.f32 0.0, %v2226
        %v2228 = vpop.f32.mrb[0].mxu0
        %2229 = vmatprep.mubr.f32.mxu0 0.0
        %2230 = vmatmul.mubr.f32.gmra.mrb[0].mxu0 %v1149
        %v2231 = vpop.f32.mrb[0].mxu0
        %v2232 = vadd.f32 0.0, %v2231
        %v2233 = vpop.f32.mrb[0].mxu0
        %2234 = vmatprep.mubr.f32.mxu0 0.0
        %2235 = vmatmul.mubr.f32.gmra.mrb[0].mxu0 %v1151
        %v2236 = vpop.f32.mrb[0].mxu0
        %v2237 = vadd.f32 0.0, %v2236
        %v2238 = vpop.f32.mrb[0].mxu0
        %2239 = vmatprep.mubr.f32.mxu0 0.0
        %2240 = vmatmul.mubr.f32.gmra.mrb[0].mxu0 %v1153
        %v2241 = vpop.f32.mrb[0].mxu0
        %v2242 = vadd.f32 0.0, %v2241
        %v2243 = vpop.f32.mrb[0].mxu0
        %2244 = vmatprep.mubr.f32.mxu0 0.0
        %2245 = vmatmul.mubr.f32.gmra.mrb[0].mxu0 %v1155
        %v2246 = vpop.f32.mrb[0].mxu0
        %v2247 = vadd.f32 0.0, %v2246
        %v2248 = vpop.f32.mrb[0].mxu0
        %2249 = vmatprep.mubr.f32.mxu0 0.0
        %2250 = vmatmul.mubr.f32.gmra.mrb[0].mxu0 %v1157
        %v2251 = vpop.f32.mrb[0].mxu0
        %v2252 = vadd.f32 0.0, %v2251
        %v2253 = vpop.f32.mrb[0].mxu0
        %2254 = vmatprep.mubr.f32.mxu0 0.0
        %2255 = vmatmul.mubr.f32.gmra.mrb[0].mxu0 %v1159
        %v2256 = vpop.f32.mrb[0].mxu0
        %v2257 = vadd.f32 0.0, %v2256
        %v2258 = vpop.f32.mrb[0].mxu0
        %2259 = vmatprep.mubr.f32.mxu0 0.0
        %2260 = vmatmul.mubr.f32.gmra.mrb[0].mxu0 %v1161
        %v2261 = vpop.f32.mrb[0].mxu0
        %v2262 = vadd.f32 0.0, %v2261
        %v2263 = vpop.f32.mrb[0].mxu0
        %2264 = vmatprep.mubr.f32.mxu0 0.0
        %2265 = vmatmul.mubr.f32.gmra.mrb[0].mxu0 %v1163
        %v2266 = vpop.f32.mrb[0].mxu0
        %v2267 = vadd.f32 0.0, %v2266
        %v2268 = vpop.f32.mrb[0].mxu0
        %2269 = vmatprep.mubr.f32.mxu0 0.0
        %2270 = vmatmul.mubr.f32.gmra.mrb[0].mxu0 %v1165
        %v2271 = vpop.f32.mrb[0].mxu0
        %v2272 = vadd.f32 0.0, %v2271
        %v2273 = vpop.f32.mrb[0].mxu0
        %2274 = vmatprep.mubr.f32.mxu0 0.0
        %2275 = vmatmul.mubr.f32.gmra.mrb[0].mxu0 %v1167
        %v2276 = vpop.f32.mrb[0].mxu0
        %v2277 = vadd.f32 0.0, %v2276
        %v2278 = vpop.f32.mrb[0].mxu0
        %2279 = vmatprep.mubr.f32.mxu0 0.0
        %2280 = vmatmul.mubr.f32.gmra.mrb[0].mxu0 %v1169
        %v2281 = vpop.f32.mrb[0].mxu0
        %v2282 = vadd.f32 0.0, %v2281
        %v2283 = vpop.f32.mrb[0].mxu0
        %2284 = vmatprep.mubr.f32.mxu0 0.0
        %2285 = vmatmul.mubr.f32.gmra.mrb[0].mxu0 %v1171
        %v2286 = vpop.f32.mrb[0].mxu0
        %v2287 = vadd.f32 0.0, %v2286
        %v2288 = vpop.f32.mrb[0].mxu0
        %2289 = vmatprep.mubr.f32.mxu0 0.0
        %2290 = vmatmul.mubr.f32.gmra.mrb[0].mxu0 %v1173
        %v2291 = vpop.f32.mrb[0].mxu0
        %v2292 = vadd.f32 0.0, %v2291
        %v2293 = vpop.f32.mrb[0].mxu0
        %2294 = vmatprep.mubr.f32.mxu0 0.0
        %2295 = vmatmul.mubr.f32.gmra.mrb[0].mxu0 %v1175
        %v2296 = vpop.f32.mrb[0].mxu0
        %v2297 = vadd.f32 0.0, %v2296
        %v2298 = vpop.f32.mrb[0].mxu0
        %2299 = vmatprep.mubr.f32.mxu0 0.0
        %2300 = vmatmul.mubr.f32.gmra.mrb[0].mxu0 %v1177
        %v2301 = vpop.f32.mrb[0].mxu0
        %v2302 = vadd.f32 0.0, %v2301
        %v2303 = vpop.f32.mrb[0].mxu0
        %2304 = vdwg.mxu0
        %2305 = vmatprep.subr.mxu0 0.0
        %2306 = vmatpush1.xpose.msra.mxu0 %v1403
        %2307 = vmatprep.subr.mxu0 0.0
        %2308 = vmatpush1.xpose.msra.mxu0 %v1404
        %2309 = vmatprep.subr.mxu0 0.0
        %2310 = vmatpush1.xpose.msra.mxu0 %v1405
        %2311 = vmatprep.subr.mxu0 0.0
        %2312 = vmatpush1.xpose.msra.mxu0 %v1406
        %2313 = vmatprep.subr.mxu0 0.0
        %2314 = vmatpush1.xpose.msra.mxu0 %v1407
        %2315 = vmatprep.subr.mxu0 0.0
        %2316 = vmatpush1.xpose.msra.mxu0 %v1408
        %2317 = vmatprep.subr.mxu0 0.0
        %2318 = vmatpush1.xpose.msra.mxu0 %v1409
        %2319 = vmatprep.subr.mxu0 0.0
        %2320 = vmatpush1.xpose.msra.mxu0 %v1410
        %2321 = vmatprep.subr.mxu0 0.0
        %2322 = vmatpush1.xpose.msra.mxu0 %v1411
        %2323 = vmatprep.subr.mxu0 0.0
        %2324 = vmatpush1.xpose.msra.mxu0 %v1412
        %2325 = vmatprep.subr.mxu0 0.0
        %2326 = vmatpush1.xpose.msra.mxu0 %v1413
        %2327 = vmatprep.subr.mxu0 0.0
        %2328 = vmatpush1.xpose.msra.mxu0 %v1414
        %2329 = vmatprep.subr.mxu0 0.0
        %2330 = vmatpush1.xpose.msra.mxu0 %v1415
        %2331 = vmatprep.subr.mxu0 0.0
        %2332 = vmatpush1.xpose.msra.mxu0 %v1416
        %2333 = vmatprep.subr.mxu0 0.0
        %2334 = vmatpush1.xpose.msra.mxu0 %v1417
        %2335 = vmatprep.subr.mxu0 0.0
        %2336 = vmatpush1.xpose.msra.mxu0 %v1418
        %2337 = vmatprep.subr.mxu0 0.0
        %2338 = vmatpush1.xpose.msra.mxu0 0.0
        %2339 = vmatprep.subr.mxu0 0.0
        %2340 = vmatpush1.xpose.msra.mxu0 0.0
        %2341 = vmatprep.subr.mxu0 0.0
        %2342 = vmatpush1.xpose.msra.mxu0 0.0
        %2343 = vmatprep.subr.mxu0 0.0
        %2344 = vmatpush1.xpose.msra.mxu0 0.0
        %2345 = vmatprep.subr.mxu0 0.0
        %2346 = vmatpush1.xpose.msra.mxu0 0.0
        %2347 = vmatprep.subr.mxu0 0.0
        %2348 = vmatpush1.xpose.msra.mxu0 0.0
        %2349 = vmatprep.subr.mxu0 0.0
        %2350 = vmatpush1.xpose.msra.mxu0 0.0
        %2351 = vmatprep.subr.mxu0 0.0
        %2352 = vmatpush1.xpose.msra.mxu0 0.0
        %2353 = vmatprep.subr.mxu0 0.0
        %2354 = vmatpush1.xpose.msra.mxu0 0.0
        %2355 = vmatprep.subr.mxu0 0.0
        %2356 = vmatpush1.xpose.msra.mxu0 0.0
        %2357 = vmatprep.subr.mxu0 0.0
        %2358 = vmatpush1.xpose.msra.mxu0 0.0
        %2359 = vmatprep.subr.mxu0 0.0
        %2360 = vmatpush1.xpose.msra.mxu0 0.0
        %2361 = vmatprep.subr.mxu0 0.0
        %2362 = vmatpush1.xpose.msra.mxu0 0.0
        %2363 = vmatprep.subr.mxu0 0.0
        %2364 = vmatpush1.xpose.msra.mxu0 0.0
        %2365 = vmatprep.subr.mxu0 0.0
        %2366 = vmatpush1.xpose.msra.mxu0 0.0
        %2367 = vmatprep.subr.mxu0 0.0
        %2368 = vmatpush1.xpose.msra.mxu0 0.0
        %2369 = vmatprep.mubr.f32.mxu0 0.0
        %2370 = vmatmul.mubr.f32.gmra.mrb[0].mxu0 %v1179
        %v2371 = vpop.f32.mrb[0].mxu0
        %v2372 = vadd.f32 0.0, %v2371
        %v2373 = vpop.f32.mrb[0].mxu0
        %2374 = vmatprep.mubr.f32.mxu0 0.0
        %2375 = vmatmul.mubr.f32.gmra.mrb[0].mxu0 %v1181
        %v2376 = vpop.f32.mrb[0].mxu0
        %v2377 = vadd.f32 0.0, %v2376
        %v2378 = vpop.f32.mrb[0].mxu0
        %2379 = vmatprep.mubr.f32.mxu0 0.0
        %2380 = vmatmul.mubr.f32.gmra.mrb[0].mxu0 %v1183
        %v2381 = vpop.f32.mrb[0].mxu0
        %v2382 = vadd.f32 0.0, %v2381
        %v2383 = vpop.f32.mrb[0].mxu0
        %2384 = vmatprep.mubr.f32.mxu0 0.0
        %2385 = vmatmul.mubr.f32.gmra.mrb[0].mxu0 %v1185
        %v2386 = vpop.f32.mrb[0].mxu0
        %v2387 = vadd.f32 0.0, %v2386
        %v2388 = vpop.f32.mrb[0].mxu0
        %2389 = vmatprep.mubr.f32.mxu0 0.0
        %2390 = vmatmul.mubr.f32.gmra.mrb[0].mxu0 %v1187
        %v2391 = vpop.f32.mrb[0].mxu0
        %v2392 = vadd.f32 0.0, %v2391
        %v2393 = vpop.f32.mrb[0].mxu0
        %2394 = vmatprep.mubr.f32.mxu0 0.0
        %2395 = vmatmul.mubr.f32.gmra.mrb[0].mxu0 %v1189
        %v2396 = vpop.f32.mrb[0].mxu0
        %v2397 = vadd.f32 0.0, %v2396
        %v2398 = vpop.f32.mrb[0].mxu0
        %2399 = vmatprep.mubr.f32.mxu0 0.0
        %2400 = vmatmul.mubr.f32.gmra.mrb[0].mxu0 %v1191
        %v2401 = vpop.f32.mrb[0].mxu0
        %v2402 = vadd.f32 0.0, %v2401
        %v2403 = vpop.f32.mrb[0].mxu0
        %2404 = vmatprep.mubr.f32.mxu0 0.0
        %2405 = vmatmul.mubr.f32.gmra.mrb[0].mxu0 %v1193
        %v2406 = vpop.f32.mrb[0].mxu0
        %v2407 = vadd.f32 0.0, %v2406
        %v2408 = vpop.f32.mrb[0].mxu0
        %2409 = vmatprep.mubr.f32.mxu0 0.0
        %2410 = vmatmul.mubr.f32.gmra.mrb[0].mxu0 %v1195
        %v2411 = vpop.f32.mrb[0].mxu0
        %v2412 = vadd.f32 0.0, %v2411
        %v2413 = vpop.f32.mrb[0].mxu0
        %2414 = vmatprep.mubr.f32.mxu0 0.0
        %2415 = vmatmul.mubr.f32.gmra.mrb[0].mxu0 %v1197
        %v2416 = vpop.f32.mrb[0].mxu0
        %v2417 = vadd.f32 0.0, %v2416
        %v2418 = vpop.f32.mrb[0].mxu0
        %2419 = vmatprep.mubr.f32.mxu0 0.0
        %2420 = vmatmul.mubr.f32.gmra.mrb[0].mxu0 %v1199
        %v2421 = vpop.f32.mrb[0].mxu0
        %v2422 = vadd.f32 0.0, %v2421
        %v2423 = vpop.f32.mrb[0].mxu0
        %2424 = vmatprep.mubr.f32.mxu0 0.0
        %2425 = vmatmul.mubr.f32.gmra.mrb[0].mxu0 %v1201
        %v2426 = vpop.f32.mrb[0].mxu0
        %v2427 = vadd.f32 0.0, %v2426
        %v2428 = vpop.f32.mrb[0].mxu0
        %2429 = vmatprep.mubr.f32.mxu0 0.0
        %2430 = vmatmul.mubr.f32.gmra.mrb[0].mxu0 %v1203
        %v2431 = vpop.f32.mrb[0].mxu0
        %v2432 = vadd.f32 0.0, %v2431
        %v2433 = vpop.f32.mrb[0].mxu0
        %2434 = vmatprep.mubr.f32.mxu0 0.0
        %2435 = vmatmul.mubr.f32.gmra.mrb[0].mxu0 %v1205
        %v2436 = vpop.f32.mrb[0].mxu0
        %v2437 = vadd.f32 0.0, %v2436
        %v2438 = vpop.f32.mrb[0].mxu0
        %2439 = vmatprep.mubr.f32.mxu0 0.0
        %2440 = vmatmul.mubr.f32.gmra.mrb[0].mxu0 %v1207
        %v2441 = vpop.f32.mrb[0].mxu0
        %v2442 = vadd.f32 0.0, %v2441
        %v2443 = vpop.f32.mrb[0].mxu0
        %2444 = vmatprep.mubr.f32.mxu0 0.0
        %2445 = vmatmul.mubr.f32.gmra.mrb[0].mxu0 %v1209
        %v2446 = vpop.f32.mrb[0].mxu0
        %v2447 = vadd.f32 0.0, %v2446
        %v2448 = vpop.f32.mrb[0].mxu0
        %2449 = vdwg.mxu0
        %2450 = vmatprep.subr.mxu0 0.0
        %2451 = vmatpush1.xpose.msra.mxu0 %v1419
        %2452 = vmatprep.subr.mxu0 0.0
        %2453 = vmatpush1.xpose.msra.mxu0 %v1420
        %2454 = vmatprep.subr.mxu0 0.0
        %2455 = vmatpush1.xpose.msra.mxu0 %v1421
        %2456 = vmatprep.subr.mxu0 0.0
        %2457 = vmatpush1.xpose.msra.mxu0 %v1422
        %2458 = vmatprep.subr.mxu0 0.0
        %2459 = vmatpush1.xpose.msra.mxu0 %v1423
        %2460 = vmatprep.subr.mxu0 0.0
        %2461 = vmatpush1.xpose.msra.mxu0 %v1424
        %2462 = vmatprep.subr.mxu0 0.0
        %2463 = vmatpush1.xpose.msra.mxu0 %v1425
        %2464 = vmatprep.subr.mxu0 0.0
        %2465 = vmatpush1.xpose.msra.mxu0 %v1426
        %2466 = vmatprep.subr.mxu0 0.0
        %2467 = vmatpush1.xpose.msra.mxu0 %v1427
        %2468 = vmatprep.subr.mxu0 0.0
        %2469 = vmatpush1.xpose.msra.mxu0 %v1428
        %2470 = vmatprep.subr.mxu0 0.0
        %2471 = vmatpush1.xpose.msra.mxu0 %v1429
        %2472 = vmatprep.subr.mxu0 0.0
        %2473 = vmatpush1.xpose.msra.mxu0 %v1430
        %2474 = vmatprep.subr.mxu0 0.0
        %2475 = vmatpush1.xpose.msra.mxu0 %v1431
        %2476 = vmatprep.subr.mxu0 0.0
        %2477 = vmatpush1.xpose.msra.mxu0 %v1432
        %2478 = vmatprep.subr.mxu0 0.0
        %2479 = vmatpush1.xpose.msra.mxu0 %v1433
        %2480 = vmatprep.subr.mxu0 0.0
        %2481 = vmatpush1.xpose.msra.mxu0 %v1434
        %2482 = vmatprep.subr.mxu0 0.0
        %2483 = vmatpush1.xpose.msra.mxu0 0.0
        %2484 = vmatprep.subr.mxu0 0.0
        %2485 = vmatpush1.xpose.msra.mxu0 0.0
        %2486 = vmatprep.subr.mxu0 0.0
        %2487 = vmatpush1.xpose.msra.mxu0 0.0
        %2488 = vmatprep.subr.mxu0 0.0
        %2489 = vmatpush1.xpose.msra.mxu0 0.0
        %2490 = vmatprep.subr.mxu0 0.0
        %2491 = vmatpush1.xpose.msra.mxu0 0.0
        %2492 = vmatprep.subr.mxu0 0.0
        %2493 = vmatpush1.xpose.msra.mxu0 0.0
        %2494 = vmatprep.subr.mxu0 0.0
        %2495 = vmatpush1.xpose.msra.mxu0 0.0
        %2496 = vmatprep.subr.mxu0 0.0
        %2497 = vmatpush1.xpose.msra.mxu0 0.0
        %2498 = vmatprep.subr.mxu0 0.0
        %2499 = vmatpush1.xpose.msra.mxu0 0.0
        %2500 = vmatprep.subr.mxu0 0.0
        %2501 = vmatpush1.xpose.msra.mxu0 0.0
        %2502 = vmatprep.subr.mxu0 0.0
        %2503 = vmatpush1.xpose.msra.mxu0 0.0
        %2504 = vmatprep.subr.mxu0 0.0
        %2505 = vmatpush1.xpose.msra.mxu0 0.0
        %2506 = vmatprep.subr.mxu0 0.0
        %2507 = vmatpush1.xpose.msra.mxu0 0.0
        %2508 = vmatprep.subr.mxu0 0.0
        %2509 = vmatpush1.xpose.msra.mxu0 0.0
        %2510 = vmatprep.subr.mxu0 0.0
        %2511 = vmatpush1.xpose.msra.mxu0 0.0
        %2512 = vmatprep.subr.mxu0 0.0
        %2513 = vmatpush1.xpose.msra.mxu0 0.0
        %2514 = vmatprep.mubr.f32.mxu0 0.0
        %2515 = vmatmul.mubr.f32.gmra.mrb[0].mxu0 %v1211
        %v2516 = vpop.f32.mrb[0].mxu0
        %v2517 = vadd.f32 0.0, %v2516
        %v2518 = vpop.f32.mrb[0].mxu0
        %2519 = vmatprep.mubr.f32.mxu0 0.0
        %2520 = vmatmul.mubr.f32.gmra.mrb[0].mxu0 %v1213
        %v2521 = vpop.f32.mrb[0].mxu0
        %v2522 = vadd.f32 0.0, %v2521
        %v2523 = vpop.f32.mrb[0].mxu0
        %2524 = vmatprep.mubr.f32.mxu0 0.0
        %2525 = vmatmul.mubr.f32.gmra.mrb[0].mxu0 %v1215
        %v2526 = vpop.f32.mrb[0].mxu0
        %v2527 = vadd.f32 0.0, %v2526
        %v2528 = vpop.f32.mrb[0].mxu0
        %2529 = vmatprep.mubr.f32.mxu0 0.0
        %2530 = vmatmul.mubr.f32.gmra.mrb[0].mxu0 %v1217
        %v2531 = vpop.f32.mrb[0].mxu0
        %v2532 = vadd.f32 0.0, %v2531
        %v2533 = vpop.f32.mrb[0].mxu0
        %2534 = vmatprep.mubr.f32.mxu0 0.0
        %2535 = vmatmul.mubr.f32.gmra.mrb[0].mxu0 %v1219
        %v2536 = vpop.f32.mrb[0].mxu0
        %v2537 = vadd.f32 0.0, %v2536
        %v2538 = vpop.f32.mrb[0].mxu0
        %2539 = vmatprep.mubr.f32.mxu0 0.0
        %2540 = vmatmul.mubr.f32.gmra.mrb[0].mxu0 %v1221
        %v2541 = vpop.f32.mrb[0].mxu0
        %v2542 = vadd.f32 0.0, %v2541
        %v2543 = vpop.f32.mrb[0].mxu0
        %2544 = vmatprep.mubr.f32.mxu0 0.0
        %2545 = vmatmul.mubr.f32.gmra.mrb[0].mxu0 %v1223
        %v2546 = vpop.f32.mrb[0].mxu0
        %v2547 = vadd.f32 0.0, %v2546
        %v2548 = vpop.f32.mrb[0].mxu0
        %2549 = vmatprep.mubr.f32.mxu0 0.0
        %2550 = vmatmul.mubr.f32.gmra.mrb[0].mxu0 %v1225
        %v2551 = vpop.f32.mrb[0].mxu0
        %v2552 = vadd.f32 0.0, %v2551
        %v2553 = vpop.f32.mrb[0].mxu0
        %2554 = vmatprep.mubr.f32.mxu0 0.0
        %2555 = vmatmul.mubr.f32.gmra.mrb[0].mxu0 %v1227
        %v2556 = vpop.f32.mrb[0].mxu0
        %v2557 = vadd.f32 0.0, %v2556
        %v2558 = vpop.f32.mrb[0].mxu0
        %2559 = vmatprep.mubr.f32.mxu0 0.0
        %2560 = vmatmul.mubr.f32.gmra.mrb[0].mxu0 %v1229
        %v2561 = vpop.f32.mrb[0].mxu0
        %v2562 = vadd.f32 0.0, %v2561
        %v2563 = vpop.f32.mrb[0].mxu0
        %2564 = vmatprep.mubr.f32.mxu0 0.0
        %2565 = vmatmul.mubr.f32.gmra.mrb[0].mxu0 %v1231
        %v2566 = vpop.f32.mrb[0].mxu0
        %v2567 = vadd.f32 0.0, %v2566
        %v2568 = vpop.f32.mrb[0].mxu0
        %2569 = vmatprep.mubr.f32.mxu0 0.0
        %2570 = vmatmul.mubr.f32.gmra.mrb[0].mxu0 %v1233
        %v2571 = vpop.f32.mrb[0].mxu0
        %v2572 = vadd.f32 0.0, %v2571
        %v2573 = vpop.f32.mrb[0].mxu0
        %2574 = vmatprep.mubr.f32.mxu0 0.0
        %2575 = vmatmul.mubr.f32.gmra.mrb[0].mxu0 %v1235
        %v2576 = vpop.f32.mrb[0].mxu0
        %v2577 = vadd.f32 0.0, %v2576
        %v2578 = vpop.f32.mrb[0].mxu0
        %2579 = vmatprep.mubr.f32.mxu0 0.0
        %2580 = vmatmul.mubr.f32.gmra.mrb[0].mxu0 %v1237
        %v2581 = vpop.f32.mrb[0].mxu0
        %v2582 = vadd.f32 0.0, %v2581
        %v2583 = vpop.f32.mrb[0].mxu0
        %2584 = vmatprep.mubr.f32.mxu0 0.0
        %2585 = vmatmul.mubr.f32.gmra.mrb[0].mxu0 %v1239
        %v2586 = vpop.f32.mrb[0].mxu0
        %v2587 = vadd.f32 0.0, %v2586
        %v2588 = vpop.f32.mrb[0].mxu0
        %2589 = vmatprep.mubr.f32.mxu0 0.0
        %2590 = vmatmul.mubr.f32.gmra.mrb[0].mxu0 %v1241
        %v2591 = vpop.f32.mrb[0].mxu0
        %v2592 = vadd.f32 0.0, %v2591
        %v2593 = vpop.f32.mrb[0].mxu0
        %2594 = vdwg.mxu0
        %v2595 = vrcp.pop %v1502
        %v2596 = vrcp.pop %v1507
        %v2597 = vrcp.pop %v1512
        %v2598 = vrcp.pop %v1517
        %v2599 = vrcp.pop %v1522
        %v2600 = vrcp.pop %v1527
        %v2601 = vrcp.pop %v1532
        %v2602 = vrcp.pop %v1537
        %v2603 = vrcp.pop %v1542
        %v2604 = vrcp.pop %v1547
        %v2605 = vrcp.pop %v1552
        %v2606 = vrcp.pop %v1557
        %v2607 = vrcp.pop %v1562
        %v2608 = vrcp.pop %v1567
        %v2609 = vrcp.pop %v1572
        %v2610 = vrcp.pop %v1577
        %v2611 = vrcp.pop %v1647
        %v2612 = vrcp.pop %v1652
        %v2613 = vrcp.pop %v1657
        %v2614 = vrcp.pop %v1662
        %v2615 = vrcp.pop %v1667
        %v2616 = vrcp.pop %v1672
        %v2617 = vrcp.pop %v1677
        %v2618 = vrcp.pop %v1682
        %v2619 = vrcp.pop %v1687
        %v2620 = vrcp.pop %v1692
        %v2621 = vrcp.pop %v1697
        %v2622 = vrcp.pop %v1702
        %v2623 = vrcp.pop %v1707
        %v2624 = vrcp.pop %v1712
        %v2625 = vrcp.pop %v1717
        %v2626 = vrcp.pop %v1722
        %v2627 = vrcp.pop %v1792
        %v2628 = vrcp.pop %v1797
        %v2629 = vrcp.pop %v1802
        %v2630 = vrcp.pop %v1807
        %v2631 = vrcp.pop %v1812
        %v2632 = vrcp.pop %v1817
        %v2633 = vrcp.pop %v1822
        %v2634 = vrcp.pop %v1827
        %v2635 = vrcp.pop %v1832
        %v2636 = vrcp.pop %v1837
        %v2637 = vrcp.pop %v1842
        %v2638 = vrcp.pop %v1847
        %v2639 = vrcp.pop %v1852
        %v2640 = vrcp.pop %v1857
        %v2641 = vrcp.pop %v1862
        %v2642 = vrcp.pop %v1867
        %v2643 = vrcp.pop %v1937
        %v2644 = vrcp.pop %v1942
        %v2645 = vrcp.pop %v1947
        %v2646 = vrcp.pop %v1952
        %v2647 = vrcp.pop %v1957
        %v2648 = vrcp.pop %v1962
        %v2649 = vrcp.pop %v1967
        %v2650 = vrcp.pop %v1972
        %v2651 = vrcp.pop %v1977
        %v2652 = vrcp.pop %v1982
        %v2653 = vrcp.pop %v1987
        %v2654 = vrcp.pop %v1992
        %v2655 = vrcp.pop %v1997
        %v2656 = vrcp.pop %v2002
        %v2657 = vrcp.pop %v2007
        %v2658 = vrcp.pop %v2012
        %v2659 = vrcp.pop %v2082
        %v2660 = vrcp.pop %v2087
        %v2661 = vrcp.pop %v2092
        %v2662 = vrcp.pop %v2097
        %v2663 = vrcp.pop %v2102
        %v2664 = vrcp.pop %v2107
        %v2665 = vrcp.pop %v2112
        %v2666 = vrcp.pop %v2117
        %v2667 = vrcp.pop %v2122
        %v2668 = vrcp.pop %v2127
        %v2669 = vrcp.pop %v2132
        %v2670 = vrcp.pop %v2137
        %v2671 = vrcp.pop %v2142
        %v2672 = vrcp.pop %v2147
        %v2673 = vrcp.pop %v2152
        %v2674 = vrcp.pop %v2157
        %v2675 = vrcp.pop %v2227
        %v2676 = vrcp.pop %v2232
        %v2677 = vrcp.pop %v2237
        %v2678 = vrcp.pop %v2242
        %v2679 = vrcp.pop %v2247
        %v2680 = vrcp.pop %v2252
        %v2681 = vrcp.pop %v2257
        %v2682 = vrcp.pop %v2262
        %v2683 = vrcp.pop %v2267
        %v2684 = vrcp.pop %v2272
        %v2685 = vrcp.pop %v2277
        %v2686 = vrcp.pop %v2282
        %v2687 = vrcp.pop %v2287
        %v2688 = vrcp.pop %v2292
        %v2689 = vrcp.pop %v2297
        %v2690 = vrcp.pop %v2302
        %v2691 = vrcp.pop %v2372
        %v2692 = vrcp.pop %v2377
        %v2693 = vrcp.pop %v2382
        %v2694 = vrcp.pop %v2387
        %v2695 = vrcp.pop %v2392
        %v2696 = vrcp.pop %v2397
        %v2697 = vrcp.pop %v2402
        %v2698 = vrcp.pop %v2407
        %v2699 = vrcp.pop %v2412
        %v2700 = vrcp.pop %v2417
        %v2701 = vrcp.pop %v2422
        %v2702 = vrcp.pop %v2427
        %v2703 = vrcp.pop %v2432
        %v2704 = vrcp.pop %v2437
        %v2705 = vrcp.pop %v2442
        %v2706 = vrcp.pop %v2447
        %v2707 = vrcp.pop %v2517
        %v2708 = vrcp.pop %v2522
        %v2709 = vrcp.pop %v2527
        %v2710 = vrcp.pop %v2532
        %v2711 = vrcp.pop %v2537
        %v2712 = vrcp.pop %v2542
        %v2713 = vrcp.pop %v2547
        %v2714 = vrcp.pop %v2552
        %v2715 = vrcp.pop %v2557
        %v2716 = vrcp.pop %v2562
        %v2717 = vrcp.pop %v2567
        %v2718 = vrcp.pop %v2572
        %v2719 = vrcp.pop %v2577
        %v2720 = vrcp.pop %v2582
        %v2721 = vrcp.pop %v2587
        %v2722 = vrcp.pop %v2592
        %2851 = vrot.lane.b32.xlu0 %v2595, 127
        %v2852 = vpop.permute.xlu0 %2851
        %2853 = vrot.lane.b32.xlu0 %v2596, 127
        %v2854 = vpop.permute.xlu0 %2853
        %2855 = vrot.lane.b32.xlu0 %v2597, 127
        %v2856 = vpop.permute.xlu0 %2855
        %2857 = vrot.lane.b32.xlu0 %v2598, 127
        %v2858 = vpop.permute.xlu0 %2857
        %2859 = vrot.lane.b32.xlu0 %v2599, 127
        %v2860 = vpop.permute.xlu0 %2859
        %2861 = vrot.lane.b32.xlu0 %v2600, 127
        %v2862 = vpop.permute.xlu0 %2861
        %2863 = vrot.lane.b32.xlu0 %v2601, 127
        %v2864 = vpop.permute.xlu0 %2863
        %2865 = vrot.lane.b32.xlu0 %v2602, 127
        %v2866 = vpop.permute.xlu0 %2865
        %2867 = vrot.lane.b32.xlu0 %v2603, 127
        %v2868 = vpop.permute.xlu0 %2867
        %2869 = vrot.lane.b32.xlu0 %v2604, 127
        %v2870 = vpop.permute.xlu0 %2869
        %2871 = vrot.lane.b32.xlu0 %v2605, 127
        %v2872 = vpop.permute.xlu0 %2871
        %2873 = vrot.lane.b32.xlu0 %v2606, 127
        %v2874 = vpop.permute.xlu0 %2873
        %2875 = vrot.lane.b32.xlu0 %v2607, 127
        %v2876 = vpop.permute.xlu0 %2875
        %2877 = vrot.lane.b32.xlu0 %v2608, 127
        %v2878 = vpop.permute.xlu0 %2877
        %2879 = vrot.lane.b32.xlu0 %v2609, 127
        %v2880 = vpop.permute.xlu0 %2879
        %2881 = vrot.lane.b32.xlu0 %v2610, 127
        %v2882 = vpop.permute.xlu0 %2881
        %2883 = vrot.lane.b32.xlu0 %v2611, 127
        %v2884 = vpop.permute.xlu0 %2883
        %2885 = vrot.lane.b32.xlu0 %v2612, 127
        %v2886 = vpop.permute.xlu0 %2885
        %2887 = vrot.lane.b32.xlu0 %v2613, 127
        %v2888 = vpop.permute.xlu0 %2887
        %2889 = vrot.lane.b32.xlu0 %v2614, 127
        %v2890 = vpop.permute.xlu0 %2889
        %2891 = vrot.lane.b32.xlu0 %v2615, 127
        %v2892 = vpop.permute.xlu0 %2891
        %2893 = vrot.lane.b32.xlu0 %v2616, 127
        %v2894 = vpop.permute.xlu0 %2893
        %2895 = vrot.lane.b32.xlu0 %v2617, 127
        %v2896 = vpop.permute.xlu0 %2895
        %2897 = vrot.lane.b32.xlu0 %v2618, 127
        %v2898 = vpop.permute.xlu0 %2897
        %2899 = vrot.lane.b32.xlu0 %v2619, 127
        %v2900 = vpop.permute.xlu0 %2899
        %2901 = vrot.lane.b32.xlu0 %v2620, 127
        %v2902 = vpop.permute.xlu0 %2901
        %2903 = vrot.lane.b32.xlu0 %v2621, 127
        %v2904 = vpop.permute.xlu0 %2903
        %2905 = vrot.lane.b32.xlu0 %v2622, 127
        %v2906 = vpop.permute.xlu0 %2905
        %2907 = vrot.lane.b32.xlu0 %v2623, 127
        %v2908 = vpop.permute.xlu0 %2907
        %2909 = vrot.lane.b32.xlu0 %v2624, 127
        %v2910 = vpop.permute.xlu0 %2909
        %2911 = vrot.lane.b32.xlu0 %v2625, 127
        %v2912 = vpop.permute.xlu0 %2911
        %2913 = vrot.lane.b32.xlu0 %v2626, 127
        %v2914 = vpop.permute.xlu0 %2913
        %2915 = vrot.lane.b32.xlu0 %v2627, 127
        %v2916 = vpop.permute.xlu0 %2915
        %2917 = vrot.lane.b32.xlu0 %v2628, 127
        %v2918 = vpop.permute.xlu0 %2917
        %2919 = vrot.lane.b32.xlu0 %v2629, 127
        %v2920 = vpop.permute.xlu0 %2919
        %2921 = vrot.lane.b32.xlu0 %v2630, 127
        %v2922 = vpop.permute.xlu0 %2921
        %2923 = vrot.lane.b32.xlu0 %v2631, 127
        %v2924 = vpop.permute.xlu0 %2923
        %2925 = vrot.lane.b32.xlu0 %v2632, 127
        %v2926 = vpop.permute.xlu0 %2925
        %2927 = vrot.lane.b32.xlu0 %v2633, 127
        %v2928 = vpop.permute.xlu0 %2927
        %2929 = vrot.lane.b32.xlu0 %v2634, 127
        %v2930 = vpop.permute.xlu0 %2929
        %2931 = vrot.lane.b32.xlu0 %v2635, 127
        %v2932 = vpop.permute.xlu0 %2931
        %2933 = vrot.lane.b32.xlu0 %v2636, 127
        %v2934 = vpop.permute.xlu0 %2933
        %2935 = vrot.lane.b32.xlu0 %v2637, 127
        %v2936 = vpop.permute.xlu0 %2935
        %2937 = vrot.lane.b32.xlu0 %v2638, 127
        %v2938 = vpop.permute.xlu0 %2937
        %2939 = vrot.lane.b32.xlu0 %v2639, 127
        %v2940 = vpop.permute.xlu0 %2939
        %2941 = vrot.lane.b32.xlu0 %v2640, 127
        %v2942 = vpop.permute.xlu0 %2941
        %2943 = vrot.lane.b32.xlu0 %v2641, 127
        %v2944 = vpop.permute.xlu0 %2943
        %2945 = vrot.lane.b32.xlu0 %v2642, 127
        %v2946 = vpop.permute.xlu0 %2945
        %2947 = vrot.lane.b32.xlu0 %v2643, 127
        %v2948 = vpop.permute.xlu0 %2947
        %2949 = vrot.lane.b32.xlu0 %v2644, 127
        %v2950 = vpop.permute.xlu0 %2949
        %2951 = vrot.lane.b32.xlu0 %v2645, 127
        %v2952 = vpop.permute.xlu0 %2951
        %2953 = vrot.lane.b32.xlu0 %v2646, 127
        %v2954 = vpop.permute.xlu0 %2953
        %2955 = vrot.lane.b32.xlu0 %v2647, 127
        %v2956 = vpop.permute.xlu0 %2955
        %2957 = vrot.lane.b32.xlu0 %v2648, 127
        %v2958 = vpop.permute.xlu0 %2957
        %2959 = vrot.lane.b32.xlu0 %v2649, 127
        %v2960 = vpop.permute.xlu0 %2959
        %2961 = vrot.lane.b32.xlu0 %v2650, 127
        %v2962 = vpop.permute.xlu0 %2961
        %2963 = vrot.lane.b32.xlu0 %v2651, 127
        %v2964 = vpop.permute.xlu0 %2963
        %2965 = vrot.lane.b32.xlu0 %v2652, 127
        %v2966 = vpop.permute.xlu0 %2965
        %2967 = vrot.lane.b32.xlu0 %v2653, 127
        %v2968 = vpop.permute.xlu0 %2967
        %2969 = vrot.lane.b32.xlu0 %v2654, 127
        %v2970 = vpop.permute.xlu0 %2969
        %2971 = vrot.lane.b32.xlu0 %v2655, 127
        %v2972 = vpop.permute.xlu0 %2971
        %2973 = vrot.lane.b32.xlu0 %v2656, 127
        %v2974 = vpop.permute.xlu0 %2973
        %2975 = vrot.lane.b32.xlu0 %v2657, 127
        %v2976 = vpop.permute.xlu0 %2975
        %2977 = vrot.lane.b32.xlu0 %v2658, 127
        %v2978 = vpop.permute.xlu0 %2977
        %2979 = vrot.lane.b32.xlu0 %v2659, 127
        %v2980 = vpop.permute.xlu0 %2979
        %2981 = vrot.lane.b32.xlu0 %v2660, 127
        %v2982 = vpop.permute.xlu0 %2981
        %2983 = vrot.lane.b32.xlu0 %v2661, 127
        %v2984 = vpop.permute.xlu0 %2983
        %2985 = vrot.lane.b32.xlu0 %v2662, 127
        %v2986 = vpop.permute.xlu0 %2985
        %2987 = vrot.lane.b32.xlu0 %v2663, 127
        %v2988 = vpop.permute.xlu0 %2987
        %2989 = vrot.lane.b32.xlu0 %v2664, 127
        %v2990 = vpop.permute.xlu0 %2989
        %2991 = vrot.lane.b32.xlu0 %v2665, 127
        %v2992 = vpop.permute.xlu0 %2991
        %2993 = vrot.lane.b32.xlu0 %v2666, 127
        %v2994 = vpop.permute.xlu0 %2993
        %2995 = vrot.lane.b32.xlu0 %v2667, 127
        %v2996 = vpop.permute.xlu0 %2995
        %2997 = vrot.lane.b32.xlu0 %v2668, 127
        %v2998 = vpop.permute.xlu0 %2997
        %2999 = vrot.lane.b32.xlu0 %v2669, 127
        %v3000 = vpop.permute.xlu0 %2999
        %3001 = vrot.lane.b32.xlu0 %v2670, 127
        %v3002 = vpop.permute.xlu0 %3001
        %3003 = vrot.lane.b32.xlu0 %v2671, 127
        %v3004 = vpop.permute.xlu0 %3003
        %3005 = vrot.lane.b32.xlu0 %v2672, 127
        %v3006 = vpop.permute.xlu0 %3005
        %3007 = vrot.lane.b32.xlu0 %v2673, 127
        %v3008 = vpop.permute.xlu0 %3007
        %3009 = vrot.lane.b32.xlu0 %v2674, 127
        %v3010 = vpop.permute.xlu0 %3009
        %3011 = vrot.lane.b32.xlu0 %v2675, 127
        %v3012 = vpop.permute.xlu0 %3011
        %3013 = vrot.lane.b32.xlu0 %v2676, 127
        %v3014 = vpop.permute.xlu0 %3013
        %3015 = vrot.lane.b32.xlu0 %v2677, 127
        %v3016 = vpop.permute.xlu0 %3015
        %3017 = vrot.lane.b32.xlu0 %v2678, 127
        %v3018 = vpop.permute.xlu0 %3017
        %3019 = vrot.lane.b32.xlu0 %v2679, 127
        %v3020 = vpop.permute.xlu0 %3019
        %3021 = vrot.lane.b32.xlu0 %v2680, 127
        %v3022 = vpop.permute.xlu0 %3021
        %3023 = vrot.lane.b32.xlu0 %v2681, 127
        %v3024 = vpop.permute.xlu0 %3023
        %3025 = vrot.lane.b32.xlu0 %v2682, 127
        %v3026 = vpop.permute.xlu0 %3025
        %3027 = vrot.lane.b32.xlu0 %v2683, 127
        %v3028 = vpop.permute.xlu0 %3027
        %3029 = vrot.lane.b32.xlu0 %v2684, 127
        %v3030 = vpop.permute.xlu0 %3029
        %3031 = vrot.lane.b32.xlu0 %v2685, 127
        %v3032 = vpop.permute.xlu0 %3031
        %3033 = vrot.lane.b32.xlu0 %v2686, 127
        %v3034 = vpop.permute.xlu0 %3033
        %3035 = vrot.lane.b32.xlu0 %v2687, 127
        %v3036 = vpop.permute.xlu0 %3035
        %3037 = vrot.lane.b32.xlu0 %v2688, 127
        %v3038 = vpop.permute.xlu0 %3037
        %3039 = vrot.lane.b32.xlu0 %v2689, 127
        %v3040 = vpop.permute.xlu0 %3039
        %3041 = vrot.lane.b32.xlu0 %v2690, 127
        %v3042 = vpop.permute.xlu0 %3041
        %3043 = vrot.lane.b32.xlu0 %v2691, 127
        %v3044 = vpop.permute.xlu0 %3043
        %3045 = vrot.lane.b32.xlu0 %v2692, 127
        %v3046 = vpop.permute.xlu0 %3045
        %3047 = vrot.lane.b32.xlu0 %v2693, 127
        %v3048 = vpop.permute.xlu0 %3047
        %3049 = vrot.lane.b32.xlu0 %v2694, 127
        %v3050 = vpop.permute.xlu0 %3049
        %3051 = vrot.lane.b32.xlu0 %v2695, 127
        %v3052 = vpop.permute.xlu0 %3051
        %3053 = vrot.lane.b32.xlu0 %v2696, 127
        %v3054 = vpop.permute.xlu0 %3053
        %3055 = vrot.lane.b32.xlu0 %v2697, 127
        %v3056 = vpop.permute.xlu0 %3055
        %3057 = vrot.lane.b32.xlu0 %v2698, 127
        %v3058 = vpop.permute.xlu0 %3057
        %3059 = vrot.lane.b32.xlu0 %v2699, 127
        %v3060 = vpop.permute.xlu0 %3059
        %3061 = vrot.lane.b32.xlu0 %v2700, 127
        %v3062 = vpop.permute.xlu0 %3061
        %3063 = vrot.lane.b32.xlu0 %v2701, 127
        %v3064 = vpop.permute.xlu0 %3063
        %3065 = vrot.lane.b32.xlu0 %v2702, 127
        %v3066 = vpop.permute.xlu0 %3065
        %3067 = vrot.lane.b32.xlu0 %v2703, 127
        %v3068 = vpop.permute.xlu0 %3067
        %3069 = vrot.lane.b32.xlu0 %v2704, 127
        %v3070 = vpop.permute.xlu0 %3069
        %3071 = vrot.lane.b32.xlu0 %v2705, 127
        %v3072 = vpop.permute.xlu0 %3071
        %3073 = vrot.lane.b32.xlu0 %v2706, 127
        %v3074 = vpop.permute.xlu0 %3073
        %3075 = vrot.lane.b32.xlu0 %v2707, 127
        %v3076 = vpop.permute.xlu0 %3075
        %3077 = vrot.lane.b32.xlu0 %v2708, 127
        %v3078 = vpop.permute.xlu0 %3077
        %3079 = vrot.lane.b32.xlu0 %v2709, 127
        %v3080 = vpop.permute.xlu0 %3079
        %3081 = vrot.lane.b32.xlu0 %v2710, 127
        %v3082 = vpop.permute.xlu0 %3081
        %3083 = vrot.lane.b32.xlu0 %v2711, 127
        %v3084 = vpop.permute.xlu0 %3083
        %3085 = vrot.lane.b32.xlu0 %v2712, 127
        %v3086 = vpop.permute.xlu0 %3085
        %3087 = vrot.lane.b32.xlu0 %v2713, 127
        %v3088 = vpop.permute.xlu0 %3087
        %3089 = vrot.lane.b32.xlu0 %v2714, 127
        %v3090 = vpop.permute.xlu0 %3089
        %3091 = vrot.lane.b32.xlu0 %v2715, 127
        %v3092 = vpop.permute.xlu0 %3091
        %3093 = vrot.lane.b32.xlu0 %v2716, 127
        %v3094 = vpop.permute.xlu0 %3093
        %3095 = vrot.lane.b32.xlu0 %v2717, 127
        %v3096 = vpop.permute.xlu0 %3095
        %3097 = vrot.lane.b32.xlu0 %v2718, 127
        %v3098 = vpop.permute.xlu0 %3097
        %3099 = vrot.lane.b32.xlu0 %v2719, 127
        %v3100 = vpop.permute.xlu0 %3099
        %3101 = vrot.lane.b32.xlu0 %v2720, 127
        %v3102 = vpop.permute.xlu0 %3101
        %3103 = vrot.lane.b32.xlu0 %v2721, 127
        %v3104 = vpop.permute.xlu0 %3103
        %3105 = vrot.lane.b32.xlu0 %v2722, 127
        %v3106 = vpop.permute.xlu0 %3105
        %v3235 = vmul.f32 %v1502, %v2852
        %v3236 = vmul.f32 %v1507, %v2854
        %v3237 = vmul.f32 %v1512, %v2856
        %v3238 = vmul.f32 %v1517, %v2858
        %v3239 = vmul.f32 %v1522, %v2860
        %v3240 = vmul.f32 %v1527, %v2862
        %v3241 = vmul.f32 %v1532, %v2864
        %v3242 = vmul.f32 %v1537, %v2866
        %v3243 = vmul.f32 %v1542, %v2868
        %v3244 = vmul.f32 %v1547, %v2870
        %v3245 = vmul.f32 %v1552, %v2872
        %v3246 = vmul.f32 %v1557, %v2874
        %v3247 = vmul.f32 %v1562, %v2876
        %v3248 = vmul.f32 %v1567, %v2878
        %v3249 = vmul.f32 %v1572, %v2880
        %v3250 = vmul.f32 %v1577, %v2882
        %v3251 = vmul.f32 %v1647, %v2884
        %v3252 = vmul.f32 %v1652, %v2886
        %v3253 = vmul.f32 %v1657, %v2888
        %v3254 = vmul.f32 %v1662, %v2890
        %v3255 = vmul.f32 %v1667, %v2892
        %v3256 = vmul.f32 %v1672, %v2894
        %v3257 = vmul.f32 %v1677, %v2896
        %v3258 = vmul.f32 %v1682, %v2898
        %v3259 = vmul.f32 %v1687, %v2900
        %v3260 = vmul.f32 %v1692, %v2902
        %v3261 = vmul.f32 %v1697, %v2904
        %v3262 = vmul.f32 %v1702, %v2906
        %v3263 = vmul.f32 %v1707, %v2908
        %v3264 = vmul.f32 %v1712, %v2910
        %v3265 = vmul.f32 %v1717, %v2912
        %v3266 = vmul.f32 %v1722, %v2914
        %v3267 = vmul.f32 %v1792, %v2916
        %v3268 = vmul.f32 %v1797, %v2918
        %v3269 = vmul.f32 %v1802, %v2920
        %v3270 = vmul.f32 %v1807, %v2922
        %v3271 = vmul.f32 %v1812, %v2924
        %v3272 = vmul.f32 %v1817, %v2926
        %v3273 = vmul.f32 %v1822, %v2928
        %v3274 = vmul.f32 %v1827, %v2930
        %v3275 = vmul.f32 %v1832, %v2932
        %v3276 = vmul.f32 %v1837, %v2934
        %v3277 = vmul.f32 %v1842, %v2936
        %v3278 = vmul.f32 %v1847, %v2938
        %v3279 = vmul.f32 %v1852, %v2940
        %v3280 = vmul.f32 %v1857, %v2942
        %v3281 = vmul.f32 %v1862, %v2944
        %v3282 = vmul.f32 %v1867, %v2946
        %v3283 = vmul.f32 %v1937, %v2948
        %v3284 = vmul.f32 %v1942, %v2950
        %v3285 = vmul.f32 %v1947, %v2952
        %v3286 = vmul.f32 %v1952, %v2954
        %v3287 = vmul.f32 %v1957, %v2956
        %v3288 = vmul.f32 %v1962, %v2958
        %v3289 = vmul.f32 %v1967, %v2960
        %v3290 = vmul.f32 %v1972, %v2962
        %v3291 = vmul.f32 %v1977, %v2964
        %v3292 = vmul.f32 %v1982, %v2966
        %v3293 = vmul.f32 %v1987, %v2968
        %v3294 = vmul.f32 %v1992, %v2970
        %v3295 = vmul.f32 %v1997, %v2972
        %v3296 = vmul.f32 %v2002, %v2974
        %v3297 = vmul.f32 %v2007, %v2976
        %v3298 = vmul.f32 %v2012, %v2978
        %v3299 = vmul.f32 %v2082, %v2980
        %v3300 = vmul.f32 %v2087, %v2982
        %v3301 = vmul.f32 %v2092, %v2984
        %v3302 = vmul.f32 %v2097, %v2986
        %v3303 = vmul.f32 %v2102, %v2988
        %v3304 = vmul.f32 %v2107, %v2990
        %v3305 = vmul.f32 %v2112, %v2992
        %v3306 = vmul.f32 %v2117, %v2994
        %v3307 = vmul.f32 %v2122, %v2996
        %v3308 = vmul.f32 %v2127, %v2998
        %v3309 = vmul.f32 %v2132, %v3000
        %v3310 = vmul.f32 %v2137, %v3002
        %v3311 = vmul.f32 %v2142, %v3004
        %v3312 = vmul.f32 %v2147, %v3006
        %v3313 = vmul.f32 %v2152, %v3008
        %v3314 = vmul.f32 %v2157, %v3010
        %v3315 = vmul.f32 %v2227, %v3012
        %v3316 = vmul.f32 %v2232, %v3014
        %v3317 = vmul.f32 %v2237, %v3016
        %v3318 = vmul.f32 %v2242, %v3018
        %v3319 = vmul.f32 %v2247, %v3020
        %v3320 = vmul.f32 %v2252, %v3022
        %v3321 = vmul.f32 %v2257, %v3024
        %v3322 = vmul.f32 %v2262, %v3026
        %v3323 = vmul.f32 %v2267, %v3028
        %v3324 = vmul.f32 %v2272, %v3030
        %v3325 = vmul.f32 %v2277, %v3032
        %v3326 = vmul.f32 %v2282, %v3034
        %v3327 = vmul.f32 %v2287, %v3036
        %v3328 = vmul.f32 %v2292, %v3038
        %v3329 = vmul.f32 %v2297, %v3040
        %v3330 = vmul.f32 %v2302, %v3042
        %v3331 = vmul.f32 %v2372, %v3044
        %v3332 = vmul.f32 %v2377, %v3046
        %v3333 = vmul.f32 %v2382, %v3048
        %v3334 = vmul.f32 %v2387, %v3050
        %v3335 = vmul.f32 %v2392, %v3052
        %v3336 = vmul.f32 %v2397, %v3054
        %v3337 = vmul.f32 %v2402, %v3056
        %v3338 = vmul.f32 %v2407, %v3058
        %v3339 = vmul.f32 %v2412, %v3060
        %v3340 = vmul.f32 %v2417, %v3062
        %v3341 = vmul.f32 %v2422, %v3064
        %v3342 = vmul.f32 %v2427, %v3066
        %v3343 = vmul.f32 %v2432, %v3068
        %v3344 = vmul.f32 %v2437, %v3070
        %v3345 = vmul.f32 %v2442, %v3072
        %v3346 = vmul.f32 %v2447, %v3074
        %v3347 = vmul.f32 %v2517, %v3076
        %v3348 = vmul.f32 %v2522, %v3078
        %v3349 = vmul.f32 %v2527, %v3080
        %v3350 = vmul.f32 %v2532, %v3082
        %v3351 = vmul.f32 %v2537, %v3084
        %v3352 = vmul.f32 %v2542, %v3086
        %v3353 = vmul.f32 %v2547, %v3088
        %v3354 = vmul.f32 %v2552, %v3090
        %v3355 = vmul.f32 %v2557, %v3092
        %v3356 = vmul.f32 %v2562, %v3094
        %v3357 = vmul.f32 %v2567, %v3096
        %v3358 = vmul.f32 %v2572, %v3098
        %v3359 = vmul.f32 %v2577, %v3100
        %v3360 = vmul.f32 %v2582, %v3102
        %v3361 = vmul.f32 %v2587, %v3104
        %v3362 = vmul.f32 %v2592, %v3106
        %vm3363 = vcmask 7168
        %3364 = vst.msk [vmem:[%s252] sm:$0xff] %vm3363, %v3235
        %3365 = vst.msk [vmem:[%s252 + $0x8] sm:$0xff] %vm3363, %v3236
        %3366 = vst.msk [vmem:[%s252 + $0x10] sm:$0xff] %vm3363, %v3237
        %3367 = vst.msk [vmem:[%s252 + $0x18] sm:$0xff] %vm3363, %v3238
        %3368 = vst.msk [vmem:[%s252 + $0x20] sm:$0xff] %vm3363, %v3239
        %3369 = vst.msk [vmem:[%s252 + $0x28] sm:$0xff] %vm3363, %v3240
        %3370 = vst.msk [vmem:[%s252 + $0x30] sm:$0xff] %vm3363, %v3241
        %3371 = vst.msk [vmem:[%s252 + $0x38] sm:$0xff] %vm3363, %v3242
        %3372 = vst.msk [vmem:[%s252 + $0x40] sm:$0xff] %vm3363, %v3243
        %3373 = vst.msk [vmem:[%s252 + $0x48] sm:$0xff] %vm3363, %v3244
        %3374 = vst.msk [vmem:[%s252 + $0x50] sm:$0xff] %vm3363, %v3245
        %3375 = vst.msk [vmem:[%s252 + $0x58] sm:$0xff] %vm3363, %v3246
        %3376 = vst.msk [vmem:[%s252 + $0x60] sm:$0xff] %vm3363, %v3247
        %3377 = vst.msk [vmem:[%s252 + $0x68] sm:$0xff] %vm3363, %v3248
        %3378 = vst.msk [vmem:[%s252 + $0x70] sm:$0xff] %vm3363, %v3249
        %3379 = vst.msk [vmem:[%s252 + $0x78] sm:$0xff] %vm3363, %v3250
        %3380 = vst.msk [vmem:[%s252 + $0x80] sm:$0xff] %vm3363, %v3251
        %3381 = vst.msk [vmem:[%s252 + $0x88] sm:$0xff] %vm3363, %v3252
        %3382 = vst.msk [vmem:[%s252 + $0x90] sm:$0xff] %vm3363, %v3253
        %3383 = vst.msk [vmem:[%s252 + $0x98] sm:$0xff] %vm3363, %v3254
        %3384 = vst.msk [vmem:[%s252 + $0xa0] sm:$0xff] %vm3363, %v3255
        %3385 = vst.msk [vmem:[%s252 + $0xa8] sm:$0xff] %vm3363, %v3256
        %3386 = vst.msk [vmem:[%s252 + $0xb0] sm:$0xff] %vm3363, %v3257
        %3387 = vst.msk [vmem:[%s252 + $0xb8] sm:$0xff] %vm3363, %v3258
        %3388 = vst.msk [vmem:[%s252 + $0xc0] sm:$0xff] %vm3363, %v3259
        %3389 = vst.msk [vmem:[%s252 + $0xc8] sm:$0xff] %vm3363, %v3260
        %3390 = vst.msk [vmem:[%s252 + $0xd0] sm:$0xff] %vm3363, %v3261
        %3391 = vst.msk [vmem:[%s252 + $0xd8] sm:$0xff] %vm3363, %v3262
        %3392 = vst.msk [vmem:[%s252 + $0xe0] sm:$0xff] %vm3363, %v3263
        %3393 = vst.msk [vmem:[%s252 + $0xe8] sm:$0xff] %vm3363, %v3264
        %3394 = vst.msk [vmem:[%s252 + $0xf0] sm:$0xff] %vm3363, %v3265
        %3395 = vst.msk [vmem:[%s252 + $0xf8] sm:$0xff] %vm3363, %v3266
        %3396 = vst.msk [vmem:[%s252 + $0x100] sm:$0xff] %vm3363, %v3267
        %3397 = vst.msk [vmem:[%s252 + $0x108] sm:$0xff] %vm3363, %v3268
        %3398 = vst.msk [vmem:[%s252 + $0x110] sm:$0xff] %vm3363, %v3269
        %3399 = vst.msk [vmem:[%s252 + $0x118] sm:$0xff] %vm3363, %v3270
        %3400 = vst.msk [vmem:[%s252 + $0x120] sm:$0xff] %vm3363, %v3271
        %3401 = vst.msk [vmem:[%s252 + $0x128] sm:$0xff] %vm3363, %v3272
        %3402 = vst.msk [vmem:[%s252 + $0x130] sm:$0xff] %vm3363, %v3273
        %3403 = vst.msk [vmem:[%s252 + $0x138] sm:$0xff] %vm3363, %v3274
        %3404 = vst.msk [vmem:[%s252 + $0x140] sm:$0xff] %vm3363, %v3275
        %3405 = vst.msk [vmem:[%s252 + $0x148] sm:$0xff] %vm3363, %v3276
        %3406 = vst.msk [vmem:[%s252 + $0x150] sm:$0xff] %vm3363, %v3277
        %3407 = vst.msk [vmem:[%s252 + $0x158] sm:$0xff] %vm3363, %v3278
        %3408 = vst.msk [vmem:[%s252 + $0x160] sm:$0xff] %vm3363, %v3279
        %3409 = vst.msk [vmem:[%s252 + $0x168] sm:$0xff] %vm3363, %v3280
        %3410 = vst.msk [vmem:[%s252 + $0x170] sm:$0xff] %vm3363, %v3281
        %3411 = vst.msk [vmem:[%s252 + $0x178] sm:$0xff] %vm3363, %v3282
        %3412 = vst.msk [vmem:[%s252 + $0x180] sm:$0xff] %vm3363, %v3283
        %3413 = vst.msk [vmem:[%s252 + $0x188] sm:$0xff] %vm3363, %v3284
        %3414 = vst.msk [vmem:[%s252 + $0x190] sm:$0xff] %vm3363, %v3285
        %3415 = vst.msk [vmem:[%s252 + $0x198] sm:$0xff] %vm3363, %v3286
        %3416 = vst.msk [vmem:[%s252 + $0x1a0] sm:$0xff] %vm3363, %v3287
        %3417 = vst.msk [vmem:[%s252 + $0x1a8] sm:$0xff] %vm3363, %v3288
        %3418 = vst.msk [vmem:[%s252 + $0x1b0] sm:$0xff] %vm3363, %v3289
        %3419 = vst.msk [vmem:[%s252 + $0x1b8] sm:$0xff] %vm3363, %v3290
        %3420 = vst.msk [vmem:[%s252 + $0x1c0] sm:$0xff] %vm3363, %v3291
        %3421 = vst.msk [vmem:[%s252 + $0x1c8] sm:$0xff] %vm3363, %v3292
        %3422 = vst.msk [vmem:[%s252 + $0x1d0] sm:$0xff] %vm3363, %v3293
        %3423 = vst.msk [vmem:[%s252 + $0x1d8] sm:$0xff] %vm3363, %v3294
        %3424 = vst.msk [vmem:[%s252 + $0x1e0] sm:$0xff] %vm3363, %v3295
        %3425 = vst.msk [vmem:[%s252 + $0x1e8] sm:$0xff] %vm3363, %v3296
        %3426 = vst.msk [vmem:[%s252 + $0x1f0] sm:$0xff] %vm3363, %v3297
        %3427 = vst.msk [vmem:[%s252 + $0x1f8] sm:$0xff] %vm3363, %v3298
        %3428 = vst.msk [vmem:[%s252 + $0x200] sm:$0xff] %vm3363, %v3299
        %3429 = vst.msk [vmem:[%s252 + $0x208] sm:$0xff] %vm3363, %v3300
        %3430 = vst.msk [vmem:[%s252 + $0x210] sm:$0xff] %vm3363, %v3301
        %3431 = vst.msk [vmem:[%s252 + $0x218] sm:$0xff] %vm3363, %v3302
        %3432 = vst.msk [vmem:[%s252 + $0x220] sm:$0xff] %vm3363, %v3303
        %3433 = vst.msk [vmem:[%s252 + $0x228] sm:$0xff] %vm3363, %v3304
        %3434 = vst.msk [vmem:[%s252 + $0x230] sm:$0xff] %vm3363, %v3305
        %3435 = vst.msk [vmem:[%s252 + $0x238] sm:$0xff] %vm3363, %v3306
        %3436 = vst.msk [vmem:[%s252 + $0x240] sm:$0xff] %vm3363, %v3307
        %3437 = vst.msk [vmem:[%s252 + $0x248] sm:$0xff] %vm3363, %v3308
        %3438 = vst.msk [vmem:[%s252 + $0x250] sm:$0xff] %vm3363, %v3309
        %3439 = vst.msk [vmem:[%s252 + $0x258] sm:$0xff] %vm3363, %v3310
        %3440 = vst.msk [vmem:[%s252 + $0x260] sm:$0xff] %vm3363, %v3311
        %3441 = vst.msk [vmem:[%s252 + $0x268] sm:$0xff] %vm3363, %v3312
        %3442 = vst.msk [vmem:[%s252 + $0x270] sm:$0xff] %vm3363, %v3313
        %3443 = vst.msk [vmem:[%s252 + $0x278] sm:$0xff] %vm3363, %v3314
        %3444 = vst.msk [vmem:[%s252 + $0x280] sm:$0xff] %vm3363, %v3315
        %3445 = vst.msk [vmem:[%s252 + $0x288] sm:$0xff] %vm3363, %v3316
        %3446 = vst.msk [vmem:[%s252 + $0x290] sm:$0xff] %vm3363, %v3317
        %3447 = vst.msk [vmem:[%s252 + $0x298] sm:$0xff] %vm3363, %v3318
        %3448 = vst.msk [vmem:[%s252 + $0x2a0] sm:$0xff] %vm3363, %v3319
        %3449 = vst.msk [vmem:[%s252 + $0x2a8] sm:$0xff] %vm3363, %v3320
        %3450 = vst.msk [vmem:[%s252 + $0x2b0] sm:$0xff] %vm3363, %v3321
        %3451 = vst.msk [vmem:[%s252 + $0x2b8] sm:$0xff] %vm3363, %v3322
        %3452 = vst.msk [vmem:[%s252 + $0x2c0] sm:$0xff] %vm3363, %v3323
        %3453 = vst.msk [vmem:[%s252 + $0x2c8] sm:$0xff] %vm3363, %v3324
        %3454 = vst.msk [vmem:[%s252 + $0x2d0] sm:$0xff] %vm3363, %v3325
        %3455 = vst.msk [vmem:[%s252 + $0x2d8] sm:$0xff] %vm3363, %v3326
        %3456 = vst.msk [vmem:[%s252 + $0x2e0] sm:$0xff] %vm3363, %v3327
        %3457 = vst.msk [vmem:[%s252 + $0x2e8] sm:$0xff] %vm3363, %v3328
        %3458 = vst.msk [vmem:[%s252 + $0x2f0] sm:$0xff] %vm3363, %v3329
        %3459 = vst.msk [vmem:[%s252 + $0x2f8] sm:$0xff] %vm3363, %v3330
        %3460 = vst.msk [vmem:[%s252 + $0x300] sm:$0xff] %vm3363, %v3331
        %3461 = vst.msk [vmem:[%s252 + $0x308] sm:$0xff] %vm3363, %v3332
        %3462 = vst.msk [vmem:[%s252 + $0x310] sm:$0xff] %vm3363, %v3333
        %3463 = vst.msk [vmem:[%s252 + $0x318] sm:$0xff] %vm3363, %v3334
        %3464 = vst.msk [vmem:[%s252 + $0x320] sm:$0xff] %vm3363, %v3335
        %3465 = vst.msk [vmem:[%s252 + $0x328] sm:$0xff] %vm3363, %v3336
        %3466 = vst.msk [vmem:[%s252 + $0x330] sm:$0xff] %vm3363, %v3337
        %3467 = vst.msk [vmem:[%s252 + $0x338] sm:$0xff] %vm3363, %v3338
        %3468 = vst.msk [vmem:[%s252 + $0x340] sm:$0xff] %vm3363, %v3339
        %3469 = vst.msk [vmem:[%s252 + $0x348] sm:$0xff] %vm3363, %v3340
        %3470 = vst.msk [vmem:[%s252 + $0x350] sm:$0xff] %vm3363, %v3341
        %3471 = vst.msk [vmem:[%s252 + $0x358] sm:$0xff] %vm3363, %v3342
        %3472 = vst.msk [vmem:[%s252 + $0x360] sm:$0xff] %vm3363, %v3343
        %3473 = vst.msk [vmem:[%s252 + $0x368] sm:$0xff] %vm3363, %v3344
        %3474 = vst.msk [vmem:[%s252 + $0x370] sm:$0xff] %vm3363, %v3345
        %3475 = vst.msk [vmem:[%s252 + $0x378] sm:$0xff] %vm3363, %v3346
        %3476 = vst.msk [vmem:[%s252 + $0x380] sm:$0xff] %vm3363, %v3347
        %3477 = vst.msk [vmem:[%s252 + $0x388] sm:$0xff] %vm3363, %v3348
        %3478 = vst.msk [vmem:[%s252 + $0x390] sm:$0xff] %vm3363, %v3349
        %3479 = vst.msk [vmem:[%s252 + $0x398] sm:$0xff] %vm3363, %v3350
        %3480 = vst.msk [vmem:[%s252 + $0x3a0] sm:$0xff] %vm3363, %v3351
        %3481 = vst.msk [vmem:[%s252 + $0x3a8] sm:$0xff] %vm3363, %v3352
        %3482 = vst.msk [vmem:[%s252 + $0x3b0] sm:$0xff] %vm3363, %v3353
        %3483 = vst.msk [vmem:[%s252 + $0x3b8] sm:$0xff] %vm3363, %v3354
        %3484 = vst.msk [vmem:[%s252 + $0x3c0] sm:$0xff] %vm3363, %v3355
        %3485 = vst.msk [vmem:[%s252 + $0x3c8] sm:$0xff] %vm3363, %v3356
        %3486 = vst.msk [vmem:[%s252 + $0x3d0] sm:$0xff] %vm3363, %v3357
        %3487 = vst.msk [vmem:[%s252 + $0x3d8] sm:$0xff] %vm3363, %v3358
        %3488 = vst.msk [vmem:[%s252 + $0x3e0] sm:$0xff] %vm3363, %v3359
        %3489 = vst.msk [vmem:[%s252 + $0x3e8] sm:$0xff] %vm3363, %v3360
        %3490 = vst.msk [vmem:[%s252 + $0x3f0] sm:$0xff] %vm3363, %v3361
        %3491 = vst.msk [vmem:[%s252 + $0x3f8] sm:$0xff] %vm3363, %v3362
        %3492 = vset.pattern.permute.xlu0 1
        %3493 = vperm.xlu0 %3492, %v2595
        %v3494 = vpop.permute.xlu0 %3493
        %3496 = vset.pattern.permute.xlu0 1
        %3497 = vperm.xlu0 %3496, %v2596
        %v3498 = vpop.permute.xlu0 %3497
        %3500 = vset.pattern.permute.xlu0 1
        %3501 = vperm.xlu0 %3500, %v2597
        %v3502 = vpop.permute.xlu0 %3501
        %3504 = vset.pattern.permute.xlu0 1
        %3505 = vperm.xlu0 %3504, %v2598
        %v3506 = vpop.permute.xlu0 %3505
        %3508 = vset.pattern.permute.xlu0 1
        %3509 = vperm.xlu0 %3508, %v2599
        %v3510 = vpop.permute.xlu0 %3509
        %3512 = vset.pattern.permute.xlu0 1
        %3513 = vperm.xlu0 %3512, %v2600
        %v3514 = vpop.permute.xlu0 %3513
        %3516 = vset.pattern.permute.xlu0 1
        %3517 = vperm.xlu0 %3516, %v2601
        %v3518 = vpop.permute.xlu0 %3517
        %3520 = vset.pattern.permute.xlu0 1
        %3521 = vperm.xlu0 %3520, %v2602
        %v3522 = vpop.permute.xlu0 %3521
        %3524 = vset.pattern.permute.xlu0 1
        %3525 = vperm.xlu0 %3524, %v2603
        %v3526 = vpop.permute.xlu0 %3525
        %3528 = vset.pattern.permute.xlu0 1
        %3529 = vperm.xlu0 %3528, %v2604
        %v3530 = vpop.permute.xlu0 %3529
        %3532 = vset.pattern.permute.xlu0 1
        %3533 = vperm.xlu0 %3532, %v2605
        %v3534 = vpop.permute.xlu0 %3533
        %3536 = vset.pattern.permute.xlu0 1
        %3537 = vperm.xlu0 %3536, %v2606
        %v3538 = vpop.permute.xlu0 %3537
        %3540 = vset.pattern.permute.xlu0 1
        %3541 = vperm.xlu0 %3540, %v2607
        %v3542 = vpop.permute.xlu0 %3541
        %3544 = vset.pattern.permute.xlu0 1
        %3545 = vperm.xlu0 %3544, %v2608
        %v3546 = vpop.permute.xlu0 %3545
        %3548 = vset.pattern.permute.xlu0 1
        %3549 = vperm.xlu0 %3548, %v2609
        %v3550 = vpop.permute.xlu0 %3549
        %3552 = vset.pattern.permute.xlu0 1
        %3553 = vperm.xlu0 %3552, %v2610
        %v3554 = vpop.permute.xlu0 %3553
        %3556 = vset.pattern.permute.xlu0 1
        %3557 = vperm.xlu0 %3556, %v2611
        %v3558 = vpop.permute.xlu0 %3557
        %3560 = vset.pattern.permute.xlu0 1
        %3561 = vperm.xlu0 %3560, %v2612
        %v3562 = vpop.permute.xlu0 %3561
        %3564 = vset.pattern.permute.xlu0 1
        %3565 = vperm.xlu0 %3564, %v2613
        %v3566 = vpop.permute.xlu0 %3565
        %3568 = vset.pattern.permute.xlu0 1
        %3569 = vperm.xlu0 %3568, %v2614
        %v3570 = vpop.permute.xlu0 %3569
        %3572 = vset.pattern.permute.xlu0 1
        %3573 = vperm.xlu0 %3572, %v2615
        %v3574 = vpop.permute.xlu0 %3573
        %3576 = vset.pattern.permute.xlu0 1
        %3577 = vperm.xlu0 %3576, %v2616
        %v3578 = vpop.permute.xlu0 %3577
        %3580 = vset.pattern.permute.xlu0 1
        %3581 = vperm.xlu0 %3580, %v2617
        %v3582 = vpop.permute.xlu0 %3581
        %3584 = vset.pattern.permute.xlu0 1
        %3585 = vperm.xlu0 %3584, %v2618
        %v3586 = vpop.permute.xlu0 %3585
        %3588 = vset.pattern.permute.xlu0 1
        %3589 = vperm.xlu0 %3588, %v2619
        %v3590 = vpop.permute.xlu0 %3589
        %3592 = vset.pattern.permute.xlu0 1
        %3593 = vperm.xlu0 %3592, %v2620
        %v3594 = vpop.permute.xlu0 %3593
        %3596 = vset.pattern.permute.xlu0 1
        %3597 = vperm.xlu0 %3596, %v2621
        %v3598 = vpop.permute.xlu0 %3597
        %3600 = vset.pattern.permute.xlu0 1
        %3601 = vperm.xlu0 %3600, %v2622
        %v3602 = vpop.permute.xlu0 %3601
        %3604 = vset.pattern.permute.xlu0 1
        %3605 = vperm.xlu0 %3604, %v2623
        %v3606 = vpop.permute.xlu0 %3605
        %3608 = vset.pattern.permute.xlu0 1
        %3609 = vperm.xlu0 %3608, %v2624
        %v3610 = vpop.permute.xlu0 %3609
        %3612 = vset.pattern.permute.xlu0 1
        %3613 = vperm.xlu0 %3612, %v2625
        %v3614 = vpop.permute.xlu0 %3613
        %3616 = vset.pattern.permute.xlu0 1
        %3617 = vperm.xlu0 %3616, %v2626
        %v3618 = vpop.permute.xlu0 %3617
        %3620 = vset.pattern.permute.xlu0 1
        %3621 = vperm.xlu0 %3620, %v2627
        %v3622 = vpop.permute.xlu0 %3621
        %3624 = vset.pattern.permute.xlu0 1
        %3625 = vperm.xlu0 %3624, %v2628
        %v3626 = vpop.permute.xlu0 %3625
        %3628 = vset.pattern.permute.xlu0 1
        %3629 = vperm.xlu0 %3628, %v2629
        %v3630 = vpop.permute.xlu0 %3629
        %3632 = vset.pattern.permute.xlu0 1
        %3633 = vperm.xlu0 %3632, %v2630
        %v3634 = vpop.permute.xlu0 %3633
        %3636 = vset.pattern.permute.xlu0 1
        %3637 = vperm.xlu0 %3636, %v2631
        %v3638 = vpop.permute.xlu0 %3637
        %3640 = vset.pattern.permute.xlu0 1
        %3641 = vperm.xlu0 %3640, %v2632
        %v3642 = vpop.permute.xlu0 %3641
        %3644 = vset.pattern.permute.xlu0 1
        %3645 = vperm.xlu0 %3644, %v2633
        %v3646 = vpop.permute.xlu0 %3645
        %3648 = vset.pattern.permute.xlu0 1
        %3649 = vperm.xlu0 %3648, %v2634
        %v3650 = vpop.permute.xlu0 %3649
        %3652 = vset.pattern.permute.xlu0 1
        %3653 = vperm.xlu0 %3652, %v2635
        %v3654 = vpop.permute.xlu0 %3653
        %3656 = vset.pattern.permute.xlu0 1
        %3657 = vperm.xlu0 %3656, %v2636
        %v3658 = vpop.permute.xlu0 %3657
        %3660 = vset.pattern.permute.xlu0 1
        %3661 = vperm.xlu0 %3660, %v2637
        %v3662 = vpop.permute.xlu0 %3661
        %3664 = vset.pattern.permute.xlu0 1
        %3665 = vperm.xlu0 %3664, %v2638
        %v3666 = vpop.permute.xlu0 %3665
        %3668 = vset.pattern.permute.xlu0 1
        %3669 = vperm.xlu0 %3668, %v2639
        %v3670 = vpop.permute.xlu0 %3669
        %3672 = vset.pattern.permute.xlu0 1
        %3673 = vperm.xlu0 %3672, %v2640
        %v3674 = vpop.permute.xlu0 %3673
        %3676 = vset.pattern.permute.xlu0 1
        %3677 = vperm.xlu0 %3676, %v2641
        %v3678 = vpop.permute.xlu0 %3677
        %3680 = vset.pattern.permute.xlu0 1
        %3681 = vperm.xlu0 %3680, %v2642
        %v3682 = vpop.permute.xlu0 %3681
        %3684 = vset.pattern.permute.xlu0 1
        %3685 = vperm.xlu0 %3684, %v2643
        %v3686 = vpop.permute.xlu0 %3685
        %3688 = vset.pattern.permute.xlu0 1
        %3689 = vperm.xlu0 %3688, %v2644
        %v3690 = vpop.permute.xlu0 %3689
        %3692 = vset.pattern.permute.xlu0 1
        %3693 = vperm.xlu0 %3692, %v2645
        %v3694 = vpop.permute.xlu0 %3693
        %3696 = vset.pattern.permute.xlu0 1
        %3697 = vperm.xlu0 %3696, %v2646
        %v3698 = vpop.permute.xlu0 %3697
        %3700 = vset.pattern.permute.xlu0 1
        %3701 = vperm.xlu0 %3700, %v2647
        %v3702 = vpop.permute.xlu0 %3701
        %3704 = vset.pattern.permute.xlu0 1
        %3705 = vperm.xlu0 %3704, %v2648
        %v3706 = vpop.permute.xlu0 %3705
        %3708 = vset.pattern.permute.xlu0 1
        %3709 = vperm.xlu0 %3708, %v2649
        %v3710 = vpop.permute.xlu0 %3709
        %3712 = vset.pattern.permute.xlu0 1
        %3713 = vperm.xlu0 %3712, %v2650
        %v3714 = vpop.permute.xlu0 %3713
        %3716 = vset.pattern.permute.xlu0 1
        %3717 = vperm.xlu0 %3716, %v2651
        %v3718 = vpop.permute.xlu0 %3717
        %3720 = vset.pattern.permute.xlu0 1
        %3721 = vperm.xlu0 %3720, %v2652
        %v3722 = vpop.permute.xlu0 %3721
        %3724 = vset.pattern.permute.xlu0 1
        %3725 = vperm.xlu0 %3724, %v2653
        %v3726 = vpop.permute.xlu0 %3725
        %3728 = vset.pattern.permute.xlu0 1
        %3729 = vperm.xlu0 %3728, %v2654
        %v3730 = vpop.permute.xlu0 %3729
        %3732 = vset.pattern.permute.xlu0 1
        %3733 = vperm.xlu0 %3732, %v2655
        %v3734 = vpop.permute.xlu0 %3733
        %3736 = vset.pattern.permute.xlu0 1
        %3737 = vperm.xlu0 %3736, %v2656
        %v3738 = vpop.permute.xlu0 %3737
        %3740 = vset.pattern.permute.xlu0 1
        %3741 = vperm.xlu0 %3740, %v2657
        %v3742 = vpop.permute.xlu0 %3741
        %3744 = vset.pattern.permute.xlu0 1
        %3745 = vperm.xlu0 %3744, %v2658
        %v3746 = vpop.permute.xlu0 %3745
        %3748 = vset.pattern.permute.xlu0 1
        %3749 = vperm.xlu0 %3748, %v2659
        %v3750 = vpop.permute.xlu0 %3749
        %3752 = vset.pattern.permute.xlu0 1
        %3753 = vperm.xlu0 %3752, %v2660
        %v3754 = vpop.permute.xlu0 %3753
        %3756 = vset.pattern.permute.xlu0 1
        %3757 = vperm.xlu0 %3756, %v2661
        %v3758 = vpop.permute.xlu0 %3757
        %3760 = vset.pattern.permute.xlu0 1
        %3761 = vperm.xlu0 %3760, %v2662
        %v3762 = vpop.permute.xlu0 %3761
        %3764 = vset.pattern.permute.xlu0 1
        %3765 = vperm.xlu0 %3764, %v2663
        %v3766 = vpop.permute.xlu0 %3765
        %3768 = vset.pattern.permute.xlu0 1
        %3769 = vperm.xlu0 %3768, %v2664
        %v3770 = vpop.permute.xlu0 %3769
        %3772 = vset.pattern.permute.xlu0 1
        %3773 = vperm.xlu0 %3772, %v2665
        %v3774 = vpop.permute.xlu0 %3773
        %3776 = vset.pattern.permute.xlu0 1
        %3777 = vperm.xlu0 %3776, %v2666
        %v3778 = vpop.permute.xlu0 %3777
        %3780 = vset.pattern.permute.xlu0 1
        %3781 = vperm.xlu0 %3780, %v2667
        %v3782 = vpop.permute.xlu0 %3781
        %3784 = vset.pattern.permute.xlu0 1
        %3785 = vperm.xlu0 %3784, %v2668
        %v3786 = vpop.permute.xlu0 %3785
        %3788 = vset.pattern.permute.xlu0 1
        %3789 = vperm.xlu0 %3788, %v2669
        %v3790 = vpop.permute.xlu0 %3789
        %3792 = vset.pattern.permute.xlu0 1
        %3793 = vperm.xlu0 %3792, %v2670
        %v3794 = vpop.permute.xlu0 %3793
        %3796 = vset.pattern.permute.xlu0 1
        %3797 = vperm.xlu0 %3796, %v2671
        %v3798 = vpop.permute.xlu0 %3797
        %3800 = vset.pattern.permute.xlu0 1
        %3801 = vperm.xlu0 %3800, %v2672
        %v3802 = vpop.permute.xlu0 %3801
        %3804 = vset.pattern.permute.xlu0 1
        %3805 = vperm.xlu0 %3804, %v2673
        %v3806 = vpop.permute.xlu0 %3805
        %3808 = vset.pattern.permute.xlu0 1
        %3809 = vperm.xlu0 %3808, %v2674
        %v3810 = vpop.permute.xlu0 %3809
        %3812 = vset.pattern.permute.xlu0 1
        %3813 = vperm.xlu0 %3812, %v2675
        %v3814 = vpop.permute.xlu0 %3813
        %3816 = vset.pattern.permute.xlu0 1
        %3817 = vperm.xlu0 %3816, %v2676
        %v3818 = vpop.permute.xlu0 %3817
        %3820 = vset.pattern.permute.xlu0 1
        %3821 = vperm.xlu0 %3820, %v2677
        %v3822 = vpop.permute.xlu0 %3821
        %3824 = vset.pattern.permute.xlu0 1
        %3825 = vperm.xlu0 %3824, %v2678
        %v3826 = vpop.permute.xlu0 %3825
        %3828 = vset.pattern.permute.xlu0 1
        %3829 = vperm.xlu0 %3828, %v2679
        %v3830 = vpop.permute.xlu0 %3829
        %3832 = vset.pattern.permute.xlu0 1
        %3833 = vperm.xlu0 %3832, %v2680
        %v3834 = vpop.permute.xlu0 %3833
        %3836 = vset.pattern.permute.xlu0 1
        %3837 = vperm.xlu0 %3836, %v2681
        %v3838 = vpop.permute.xlu0 %3837
        %3840 = vset.pattern.permute.xlu0 1
        %3841 = vperm.xlu0 %3840, %v2682
        %v3842 = vpop.permute.xlu0 %3841
        %3844 = vset.pattern.permute.xlu0 1
        %3845 = vperm.xlu0 %3844, %v2683
        %v3846 = vpop.permute.xlu0 %3845
        %3848 = vset.pattern.permute.xlu0 1
        %3849 = vperm.xlu0 %3848, %v2684
        %v3850 = vpop.permute.xlu0 %3849
        %3852 = vset.pattern.permute.xlu0 1
        %3853 = vperm.xlu0 %3852, %v2685
        %v3854 = vpop.permute.xlu0 %3853
        %3856 = vset.pattern.permute.xlu0 1
        %3857 = vperm.xlu0 %3856, %v2686
        %v3858 = vpop.permute.xlu0 %3857
        %3860 = vset.pattern.permute.xlu0 1
        %3861 = vperm.xlu0 %3860, %v2687
        %v3862 = vpop.permute.xlu0 %3861
        %3864 = vset.pattern.permute.xlu0 1
        %3865 = vperm.xlu0 %3864, %v2688
        %v3866 = vpop.permute.xlu0 %3865
        %3868 = vset.pattern.permute.xlu0 1
        %3869 = vperm.xlu0 %3868, %v2689
        %v3870 = vpop.permute.xlu0 %3869
        %3872 = vset.pattern.permute.xlu0 1
        %3873 = vperm.xlu0 %3872, %v2690
        %v3874 = vpop.permute.xlu0 %3873
        %3876 = vset.pattern.permute.xlu0 1
        %3877 = vperm.xlu0 %3876, %v2691
        %v3878 = vpop.permute.xlu0 %3877
        %3880 = vset.pattern.permute.xlu0 1
        %3881 = vperm.xlu0 %3880, %v2692
        %v3882 = vpop.permute.xlu0 %3881
        %3884 = vset.pattern.permute.xlu0 1
        %3885 = vperm.xlu0 %3884, %v2693
        %v3886 = vpop.permute.xlu0 %3885
        %3888 = vset.pattern.permute.xlu0 1
        %3889 = vperm.xlu0 %3888, %v2694
        %v3890 = vpop.permute.xlu0 %3889
        %3892 = vset.pattern.permute.xlu0 1
        %3893 = vperm.xlu0 %3892, %v2695
        %v3894 = vpop.permute.xlu0 %3893
        %3896 = vset.pattern.permute.xlu0 1
        %3897 = vperm.xlu0 %3896, %v2696
        %v3898 = vpop.permute.xlu0 %3897
        %3900 = vset.pattern.permute.xlu0 1
        %3901 = vperm.xlu0 %3900, %v2697
        %v3902 = vpop.permute.xlu0 %3901
        %3904 = vset.pattern.permute.xlu0 1
        %3905 = vperm.xlu0 %3904, %v2698
        %v3906 = vpop.permute.xlu0 %3905
        %3908 = vset.pattern.permute.xlu0 1
        %3909 = vperm.xlu0 %3908, %v2699
        %v3910 = vpop.permute.xlu0 %3909
        %3912 = vset.pattern.permute.xlu0 1
        %3913 = vperm.xlu0 %3912, %v2700
        %v3914 = vpop.permute.xlu0 %3913
        %3916 = vset.pattern.permute.xlu0 1
        %3917 = vperm.xlu0 %3916, %v2701
        %v3918 = vpop.permute.xlu0 %3917
        %3920 = vset.pattern.permute.xlu0 1
        %3921 = vperm.xlu0 %3920, %v2702
        %v3922 = vpop.permute.xlu0 %3921
        %3924 = vset.pattern.permute.xlu0 1
        %3925 = vperm.xlu0 %3924, %v2703
        %v3926 = vpop.permute.xlu0 %3925
        %3928 = vset.pattern.permute.xlu0 1
        %3929 = vperm.xlu0 %3928, %v2704
        %v3930 = vpop.permute.xlu0 %3929
        %3932 = vset.pattern.permute.xlu0 1
        %3933 = vperm.xlu0 %3932, %v2705
        %v3934 = vpop.permute.xlu0 %3933
        %3936 = vset.pattern.permute.xlu0 1
        %3937 = vperm.xlu0 %3936, %v2706
        %v3938 = vpop.permute.xlu0 %3937
        %3940 = vset.pattern.permute.xlu0 1
        %3941 = vperm.xlu0 %3940, %v2707
        %v3942 = vpop.permute.xlu0 %3941
        %3944 = vset.pattern.permute.xlu0 1
        %3945 = vperm.xlu0 %3944, %v2708
        %v3946 = vpop.permute.xlu0 %3945
        %3948 = vset.pattern.permute.xlu0 1
        %3949 = vperm.xlu0 %3948, %v2709
        %v3950 = vpop.permute.xlu0 %3949
        %3952 = vset.pattern.permute.xlu0 1
        %3953 = vperm.xlu0 %3952, %v2710
        %v3954 = vpop.permute.xlu0 %3953
        %3956 = vset.pattern.permute.xlu0 1
        %3957 = vperm.xlu0 %3956, %v2711
        %v3958 = vpop.permute.xlu0 %3957
        %3960 = vset.pattern.permute.xlu0 1
        %3961 = vperm.xlu0 %3960, %v2712
        %v3962 = vpop.permute.xlu0 %3961
        %3964 = vset.pattern.permute.xlu0 1
        %3965 = vperm.xlu0 %3964, %v2713
        %v3966 = vpop.permute.xlu0 %3965
        %3968 = vset.pattern.permute.xlu0 1
        %3969 = vperm.xlu0 %3968, %v2714
        %v3970 = vpop.permute.xlu0 %3969
        %3972 = vset.pattern.permute.xlu0 1
        %3973 = vperm.xlu0 %3972, %v2715
        %v3974 = vpop.permute.xlu0 %3973
        %3976 = vset.pattern.permute.xlu0 1
        %3977 = vperm.xlu0 %3976, %v2716
        %v3978 = vpop.permute.xlu0 %3977
        %3980 = vset.pattern.permute.xlu0 1
        %3981 = vperm.xlu0 %3980, %v2717
        %v3982 = vpop.permute.xlu0 %3981
        %3984 = vset.pattern.permute.xlu0 1
        %3985 = vperm.xlu0 %3984, %v2718
        %v3986 = vpop.permute.xlu0 %3985
        %3988 = vset.pattern.permute.xlu0 1
        %3989 = vperm.xlu0 %3988, %v2719
        %v3990 = vpop.permute.xlu0 %3989
        %3992 = vset.pattern.permute.xlu0 1
        %3993 = vperm.xlu0 %3992, %v2720
        %v3994 = vpop.permute.xlu0 %3993
        %3996 = vset.pattern.permute.xlu0 1
        %3997 = vperm.xlu0 %3996, %v2721
        %v3998 = vpop.permute.xlu0 %3997
        %4000 = vset.pattern.permute.xlu0 1
        %4001 = vperm.xlu0 %4000, %v2722
        %v4002 = vpop.permute.xlu0 %4001
        %v4004 = vmul.f32 %v987, %v3494
        %v4005 = vmul.f32 %v989, %v3498
        %v4006 = vmul.f32 %v991, %v3502
        %v4007 = vmul.f32 %v993, %v3506
        %v4008 = vmul.f32 %v995, %v3510
        %v4009 = vmul.f32 %v997, %v3514
        %v4010 = vmul.f32 %v999, %v3518
        %v4011 = vmul.f32 %v1001, %v3522
        %v4012 = vmul.f32 %v1003, %v3526
        %v4013 = vmul.f32 %v1005, %v3530
        %v4014 = vmul.f32 %v1007, %v3534
        %v4015 = vmul.f32 %v1009, %v3538
        %v4016 = vmul.f32 %v1011, %v3542
        %v4017 = vmul.f32 %v1013, %v3546
        %v4018 = vmul.f32 %v1015, %v3550
        %v4019 = vmul.f32 %v1017, %v3554
        %v4020 = vmul.f32 %v1019, %v3558
        %v4021 = vmul.f32 %v1021, %v3562
        %v4022 = vmul.f32 %v1023, %v3566
        %v4023 = vmul.f32 %v1025, %v3570
        %v4024 = vmul.f32 %v1027, %v3574
        %v4025 = vmul.f32 %v1029, %v3578
        %v4026 = vmul.f32 %v1031, %v3582
        %v4027 = vmul.f32 %v1033, %v3586
        %v4028 = vmul.f32 %v1035, %v3590
        %v4029 = vmul.f32 %v1037, %v3594
        %v4030 = vmul.f32 %v1039, %v3598
        %v4031 = vmul.f32 %v1041, %v3602
        %v4032 = vmul.f32 %v1043, %v3606
        %v4033 = vmul.f32 %v1045, %v3610
        %v4034 = vmul.f32 %v1047, %v3614
        %v4035 = vmul.f32 %v1049, %v3618
        %v4036 = vmul.f32 %v1051, %v3622
        %v4037 = vmul.f32 %v1053, %v3626
        %v4038 = vmul.f32 %v1055, %v3630
        %v4039 = vmul.f32 %v1057, %v3634
        %v4040 = vmul.f32 %v1059, %v3638
        %v4041 = vmul.f32 %v1061, %v3642
        %v4042 = vmul.f32 %v1063, %v3646
        %v4043 = vmul.f32 %v1065, %v3650
        %v4044 = vmul.f32 %v1067, %v3654
        %v4045 = vmul.f32 %v1069, %v3658
        %v4046 = vmul.f32 %v1071, %v3662
        %v4047 = vmul.f32 %v1073, %v3666
        %v4048 = vmul.f32 %v1075, %v3670
        %v4049 = vmul.f32 %v1077, %v3674
        %v4050 = vmul.f32 %v1079, %v3678
        %v4051 = vmul.f32 %v1081, %v3682
        %v4052 = vmul.f32 %v1083, %v3686
        %v4053 = vmul.f32 %v1085, %v3690
        %v4054 = vmul.f32 %v1087, %v3694
        %v4055 = vmul.f32 %v1089, %v3698
        %v4056 = vmul.f32 %v1091, %v3702
        %v4057 = vmul.f32 %v1093, %v3706
        %v4058 = vmul.f32 %v1095, %v3710
        %v4059 = vmul.f32 %v1097, %v3714
        %v4060 = vmul.f32 %v1099, %v3718
        %v4061 = vmul.f32 %v1101, %v3722
        %v4062 = vmul.f32 %v1103, %v3726
        %v4063 = vmul.f32 %v1105, %v3730
        %v4064 = vmul.f32 %v1107, %v3734
        %v4065 = vmul.f32 %v1109, %v3738
        %v4066 = vmul.f32 %v1111, %v3742
        %v4067 = vmul.f32 %v1113, %v3746
        %v4068 = vmul.f32 %v1115, %v3750
        %v4069 = vmul.f32 %v1117, %v3754
        %v4070 = vmul.f32 %v1119, %v3758
        %v4071 = vmul.f32 %v1121, %v3762
        %v4072 = vmul.f32 %v1123, %v3766
        %v4073 = vmul.f32 %v1125, %v3770
        %v4074 = vmul.f32 %v1127, %v3774
        %v4075 = vmul.f32 %v1129, %v3778
        %v4076 = vmul.f32 %v1131, %v3782
        %v4077 = vmul.f32 %v1133, %v3786
        %v4078 = vmul.f32 %v1135, %v3790
        %v4079 = vmul.f32 %v1137, %v3794
        %v4080 = vmul.f32 %v1139, %v3798
        %v4081 = vmul.f32 %v1141, %v3802
        %v4082 = vmul.f32 %v1143, %v3806
        %v4083 = vmul.f32 %v1145, %v3810
        %v4084 = vmul.f32 %v1147, %v3814
        %v4085 = vmul.f32 %v1149, %v3818
        %v4086 = vmul.f32 %v1151, %v3822
        %v4087 = vmul.f32 %v1153, %v3826
        %v4088 = vmul.f32 %v1155, %v3830
        %v4089 = vmul.f32 %v1157, %v3834
        %v4090 = vmul.f32 %v1159, %v3838
        %v4091 = vmul.f32 %v1161, %v3842
        %v4092 = vmul.f32 %v1163, %v3846
        %v4093 = vmul.f32 %v1165, %v3850
        %v4094 = vmul.f32 %v1167, %v3854
        %v4095 = vmul.f32 %v1169, %v3858
        %v4096 = vmul.f32 %v1171, %v3862
        %v4097 = vmul.f32 %v1173, %v3866
        %v4098 = vmul.f32 %v1175, %v3870
        %v4099 = vmul.f32 %v1177, %v3874
        %v4100 = vmul.f32 %v1179, %v3878
        %v4101 = vmul.f32 %v1181, %v3882
        %v4102 = vmul.f32 %v1183, %v3886
        %v4103 = vmul.f32 %v1185, %v3890
        %v4104 = vmul.f32 %v1187, %v3894
        %v4105 = vmul.f32 %v1189, %v3898
        %v4106 = vmul.f32 %v1191, %v3902
        %v4107 = vmul.f32 %v1193, %v3906
        %v4108 = vmul.f32 %v1195, %v3910
        %v4109 = vmul.f32 %v1197, %v3914
        %v4110 = vmul.f32 %v1199, %v3918
        %v4111 = vmul.f32 %v1201, %v3922
        %v4112 = vmul.f32 %v1203, %v3926
        %v4113 = vmul.f32 %v1205, %v3930
        %v4114 = vmul.f32 %v1207, %v3934
        %v4115 = vmul.f32 %v1209, %v3938
        %v4116 = vmul.f32 %v1211, %v3942
        %v4117 = vmul.f32 %v1213, %v3946
        %v4118 = vmul.f32 %v1215, %v3950
        %v4119 = vmul.f32 %v1217, %v3954
        %v4120 = vmul.f32 %v1219, %v3958
        %v4121 = vmul.f32 %v1221, %v3962
        %v4122 = vmul.f32 %v1223, %v3966
        %v4123 = vmul.f32 %v1225, %v3970
        %v4124 = vmul.f32 %v1227, %v3974
        %v4125 = vmul.f32 %v1229, %v3978
        %v4126 = vmul.f32 %v1231, %v3982
        %v4127 = vmul.f32 %v1233, %v3986
        %v4128 = vmul.f32 %v1235, %v3990
        %v4129 = vmul.f32 %v1237, %v3994
        %v4130 = vmul.f32 %v1239, %v3998
        %v4131 = vmul.f32 %v1241, %v4002
        %4132 = vst [vmem:[%s241] sm:$0xff] %v4004
        %4133 = vst [vmem:[%s241 + $0x8] sm:$0xff] %v4005
        %4134 = vst [vmem:[%s241 + $0x10] sm:$0xff] %v4006
        %4135 = vst [vmem:[%s241 + $0x18] sm:$0xff] %v4007
        %4136 = vst [vmem:[%s241 + $0x20] sm:$0xff] %v4008
        %4137 = vst [vmem:[%s241 + $0x28] sm:$0xff] %v4009
        %4138 = vst [vmem:[%s241 + $0x30] sm:$0xff] %v4010
        %4139 = vst [vmem:[%s241 + $0x38] sm:$0xff] %v4011
        %4140 = vst [vmem:[%s241 + $0x40] sm:$0xff] %v4012
        %4141 = vst [vmem:[%s241 + $0x48] sm:$0xff] %v4013
        %4142 = vst [vmem:[%s241 + $0x50] sm:$0xff] %v4014
        %4143 = vst [vmem:[%s241 + $0x58] sm:$0xff] %v4015
        %4144 = vst [vmem:[%s241 + $0x60] sm:$0xff] %v4016
        %4145 = vst [vmem:[%s241 + $0x68] sm:$0xff] %v4017
        %4146 = vst [vmem:[%s241 + $0x70] sm:$0xff] %v4018
        %4147 = vst [vmem:[%s241 + $0x78] sm:$0xff] %v4019
        %4148 = vst [vmem:[%s241 + $0x80] sm:$0xff] %v4020
        %4149 = vst [vmem:[%s241 + $0x88] sm:$0xff] %v4021
        %4150 = vst [vmem:[%s241 + $0x90] sm:$0xff] %v4022
        %4151 = vst [vmem:[%s241 + $0x98] sm:$0xff] %v4023
        %4152 = vst [vmem:[%s241 + $0xa0] sm:$0xff] %v4024
        %4153 = vst [vmem:[%s241 + $0xa8] sm:$0xff] %v4025
        %4154 = vst [vmem:[%s241 + $0xb0] sm:$0xff] %v4026
        %4155 = vst [vmem:[%s241 + $0xb8] sm:$0xff] %v4027
        %4156 = vst [vmem:[%s241 + $0xc0] sm:$0xff] %v4028
        %4157 = vst [vmem:[%s241 + $0xc8] sm:$0xff] %v4029
        %4158 = vst [vmem:[%s241 + $0xd0] sm:$0xff] %v4030
        %4159 = vst [vmem:[%s241 + $0xd8] sm:$0xff] %v4031
        %4160 = vst [vmem:[%s241 + $0xe0] sm:$0xff] %v4032
        %4161 = vst [vmem:[%s241 + $0xe8] sm:$0xff] %v4033
        %4162 = vst [vmem:[%s241 + $0xf0] sm:$0xff] %v4034
        %4163 = vst [vmem:[%s241 + $0xf8] sm:$0xff] %v4035
        %4164 = vst [vmem:[%s241 + $0x100] sm:$0xff] %v4036
        %4165 = vst [vmem:[%s241 + $0x108] sm:$0xff] %v4037
        %4166 = vst [vmem:[%s241 + $0x110] sm:$0xff] %v4038
        %4167 = vst [vmem:[%s241 + $0x118] sm:$0xff] %v4039
        %4168 = vst [vmem:[%s241 + $0x120] sm:$0xff] %v4040
        %4169 = vst [vmem:[%s241 + $0x128] sm:$0xff] %v4041
        %4170 = vst [vmem:[%s241 + $0x130] sm:$0xff] %v4042
        %4171 = vst [vmem:[%s241 + $0x138] sm:$0xff] %v4043
        %4172 = vst [vmem:[%s241 + $0x140] sm:$0xff] %v4044
        %4173 = vst [vmem:[%s241 + $0x148] sm:$0xff] %v4045
        %4174 = vst [vmem:[%s241 + $0x150] sm:$0xff] %v4046
        %4175 = vst [vmem:[%s241 + $0x158] sm:$0xff] %v4047
        %4176 = vst [vmem:[%s241 + $0x160] sm:$0xff] %v4048
        %4177 = vst [vmem:[%s241 + $0x168] sm:$0xff] %v4049
        %4178 = vst [vmem:[%s241 + $0x170] sm:$0xff] %v4050
        %4179 = vst [vmem:[%s241 + $0x178] sm:$0xff] %v4051
        %4180 = vst [vmem:[%s241 + $0x180] sm:$0xff] %v4052
        %4181 = vst [vmem:[%s241 + $0x188] sm:$0xff] %v4053
        %4182 = vst [vmem:[%s241 + $0x190] sm:$0xff] %v4054
        %4183 = vst [vmem:[%s241 + $0x198] sm:$0xff] %v4055
        %4184 = vst [vmem:[%s241 + $0x1a0] sm:$0xff] %v4056
        %4185 = vst [vmem:[%s241 + $0x1a8] sm:$0xff] %v4057
        %4186 = vst [vmem:[%s241 + $0x1b0] sm:$0xff] %v4058
        %4187 = vst [vmem:[%s241 + $0x1b8] sm:$0xff] %v4059
        %4188 = vst [vmem:[%s241 + $0x1c0] sm:$0xff] %v4060
        %4189 = vst [vmem:[%s241 + $0x1c8] sm:$0xff] %v4061
        %4190 = vst [vmem:[%s241 + $0x1d0] sm:$0xff] %v4062
        %4191 = vst [vmem:[%s241 + $0x1d8] sm:$0xff] %v4063
        %4192 = vst [vmem:[%s241 + $0x1e0] sm:$0xff] %v4064
        %4193 = vst [vmem:[%s241 + $0x1e8] sm:$0xff] %v4065
        %4194 = vst [vmem:[%s241 + $0x1f0] sm:$0xff] %v4066
        %4195 = vst [vmem:[%s241 + $0x1f8] sm:$0xff] %v4067
        %4196 = vst [vmem:[%s241 + $0x200] sm:$0xff] %v4068
        %4197 = vst [vmem:[%s241 + $0x208] sm:$0xff] %v4069
        %4198 = vst [vmem:[%s241 + $0x210] sm:$0xff] %v4070
        %4199 = vst [vmem:[%s241 + $0x218] sm:$0xff] %v4071
        %4200 = vst [vmem:[%s241 + $0x220] sm:$0xff] %v4072
        %4201 = vst [vmem:[%s241 + $0x228] sm:$0xff] %v4073
        %4202 = vst [vmem:[%s241 + $0x230] sm:$0xff] %v4074
        %4203 = vst [vmem:[%s241 + $0x238] sm:$0xff] %v4075
        %4204 = vst [vmem:[%s241 + $0x240] sm:$0xff] %v4076
        %4205 = vst [vmem:[%s241 + $0x248] sm:$0xff] %v4077
        %4206 = vst [vmem:[%s241 + $0x250] sm:$0xff] %v4078
        %4207 = vst [vmem:[%s241 + $0x258] sm:$0xff] %v4079
        %4208 = vst [vmem:[%s241 + $0x260] sm:$0xff] %v4080
        %4209 = vst [vmem:[%s241 + $0x268] sm:$0xff] %v4081
        %4210 = vst [vmem:[%s241 + $0x270] sm:$0xff] %v4082
        %4211 = vst [vmem:[%s241 + $0x278] sm:$0xff] %v4083
        %4212 = vst [vmem:[%s241 + $0x280] sm:$0xff] %v4084
        %4213 = vst [vmem:[%s241 + $0x288] sm:$0xff] %v4085
        %4214 = vst [vmem:[%s241 + $0x290] sm:$0xff] %v4086
        %4215 = vst [vmem:[%s241 + $0x298] sm:$0xff] %v4087
        %4216 = vst [vmem:[%s241 + $0x2a0] sm:$0xff] %v4088
        %4217 = vst [vmem:[%s241 + $0x2a8] sm:$0xff] %v4089
        %4218 = vst [vmem:[%s241 + $0x2b0] sm:$0xff] %v4090
        %4219 = vst [vmem:[%s241 + $0x2b8] sm:$0xff] %v4091
        %4220 = vst [vmem:[%s241 + $0x2c0] sm:$0xff] %v4092
        %4221 = vst [vmem:[%s241 + $0x2c8] sm:$0xff] %v4093
        %4222 = vst [vmem:[%s241 + $0x2d0] sm:$0xff] %v4094
        %4223 = vst [vmem:[%s241 + $0x2d8] sm:$0xff] %v4095
        %4224 = vst [vmem:[%s241 + $0x2e0] sm:$0xff] %v4096
        %4225 = vst [vmem:[%s241 + $0x2e8] sm:$0xff] %v4097
        %4226 = vst [vmem:[%s241 + $0x2f0] sm:$0xff] %v4098
        %4227 = vst [vmem:[%s241 + $0x2f8] sm:$0xff] %v4099
        %4228 = vst [vmem:[%s241 + $0x300] sm:$0xff] %v4100
        %4229 = vst [vmem:[%s241 + $0x308] sm:$0xff] %v4101
        %4230 = vst [vmem:[%s241 + $0x310] sm:$0xff] %v4102
        %4231 = vst [vmem:[%s241 + $0x318] sm:$0xff] %v4103
        %4232 = vst [vmem:[%s241 + $0x320] sm:$0xff] %v4104
        %4233 = vst [vmem:[%s241 + $0x328] sm:$0xff] %v4105
        %4234 = vst [vmem:[%s241 + $0x330] sm:$0xff] %v4106
        %4235 = vst [vmem:[%s241 + $0x338] sm:$0xff] %v4107
        %4236 = vst [vmem:[%s241 + $0x340] sm:$0xff] %v4108
        %4237 = vst [vmem:[%s241 + $0x348] sm:$0xff] %v4109
        %4238 = vst [vmem:[%s241 + $0x350] sm:$0xff] %v4110
        %4239 = vst [vmem:[%s241 + $0x358] sm:$0xff] %v4111
        %4240 = vst [vmem:[%s241 + $0x360] sm:$0xff] %v4112
        %4241 = vst [vmem:[%s241 + $0x368] sm:$0xff] %v4113
        %4242 = vst [vmem:[%s241 + $0x370] sm:$0xff] %v4114
        %4243 = vst [vmem:[%s241 + $0x378] sm:$0xff] %v4115
        %4244 = vst [vmem:[%s241 + $0x380] sm:$0xff] %v4116
        %4245 = vst [vmem:[%s241 + $0x388] sm:$0xff] %v4117
        %4246 = vst [vmem:[%s241 + $0x390] sm:$0xff] %v4118
        %4247 = vst [vmem:[%s241 + $0x398] sm:$0xff] %v4119
        %4248 = vst [vmem:[%s241 + $0x3a0] sm:$0xff] %v4120
        %4249 = vst [vmem:[%s241 + $0x3a8] sm:$0xff] %v4121
        %4250 = vst [vmem:[%s241 + $0x3b0] sm:$0xff] %v4122
        %4251 = vst [vmem:[%s241 + $0x3b8] sm:$0xff] %v4123
        %4252 = vst [vmem:[%s241 + $0x3c0] sm:$0xff] %v4124
        %4253 = vst [vmem:[%s241 + $0x3c8] sm:$0xff] %v4125
        %4254 = vst [vmem:[%s241 + $0x3d0] sm:$0xff] %v4126
        %4255 = vst [vmem:[%s241 + $0x3d8] sm:$0xff] %v4127
        %4256 = vst [vmem:[%s241 + $0x3e0] sm:$0xff] %v4128
        %4257 = vst [vmem:[%s241 + $0x3e8] sm:$0xff] %v4129
        %4258 = vst [vmem:[%s241 + $0x3f0] sm:$0xff] %v4130
        %4259 = vst [vmem:[%s241 + $0x3f8] sm:$0xff] %v4131
        %s4260 = smul.u32 8, %s26
        %p4261 = scmp.lt.s32.totalorder %s27, 1
        %s4262 = scalar_select %p4261, %s27, 1
        %p4263 = scmp.lt.s32.totalorder %s4260, 7
        %s4264 = scalar_select %p4263, %s4260, 7
        %s4265 = smul.addr %s4264, 16
        %s4266 = smul.addr %s4262, 128
        %s4267 = sadd.s32 %s4265, %s4266
        %s4268 = smul.addr %s4267, 8
        %s4269 = scalar_lea.vmem %s2, %s4268
        %s4270 = sand.u32 %s126, 1
        %s4271 = scalar_lea.sflag [#allocation4], %s4270
        %s4272 = sand.u32 %s126, 1
        %s4273 = smul.addr %s4272, 1024
        %s4274 = scalar_lea.vmem [#allocation7], %s4273
        // Predicated region
        $region37: #{tpu_custom_call.1} parent=27 // pred_check
          %p4275 = pneg %p108
        $region38: #{tpu_custom_call.1} parent=27 // pred_check_branch
          %4277 = sbr.rel (%p4275) target = $region40
        $region39: #{tpu_custom_call.1} parent=27 // pred_region
          %s4278 = smul.u32 8, %s26
        $region40: #{tpu_custom_call.1} parent=27 // pred_fallthru
          _
        // Predicated region
        $region41: #{tpu_custom_call.1} parent=27 // pred_check
          %p4279 = pneg %p136
        $region42: #{tpu_custom_call.1} parent=27 // pred_check_branch
          %4281 = sbr.rel (%p4279) target = $region44
        $region43: #{tpu_custom_call.1} parent=27 // pred_region
          %s4282 = smul.u32 8, %s26
          %s4284 = ssub.s32 16384, 16384
          %4285 = vsyncadd %s4271, %s4284
          %s4286 = smul.addr %s4282, 16
          %s4287 = smul.addr %s27, 128
          %s4288 = sadd.s32 %s4286, %s4287
          %s4289 = smul.addr %s4288, 128
          %s4290 = scalar_lea.hbm %s3, %s4289
          %s4291 = sshll.u32 %s4274, 4
          %s4292 = int_to_ptr.vmem [resolvable:$true] %s4291
          %4297 = dma.vmem_to_hbm [thread:$0]  %s4292, 16384, %s4290, %s4271, 128, 128, 8
        $region44: #{tpu_custom_call.1} parent=27 // pred_fallthru
          _
      $region28: #{tpu_custom_call.1} parent=5 // pred_fallthru
        _
      %p4298 = scmp.le.s32.totalorder 2, %s17
      // Predicated region
      $region45: #{tpu_custom_call.1} parent=5 // pred_check
        %p4299 = pneg %p4298
      $region46: #{tpu_custom_call.1} parent=5 // pred_check_branch
        %4301 = sbr.rel (%p4299) target = $region48
      $region47: #{tpu_custom_call.1} parent=5 // pred_region
        %s4302 = ssub.s32 %s17, 2
        // Predicated region
        $region49: #{tpu_custom_call.1} parent=47 // pred_check
          %p4303 = pneg %p114
        $region50: #{tpu_custom_call.1} parent=47 // pred_check_branch
          %4305 = sbr.rel (%p4303) target = $region52
        $region51: #{tpu_custom_call.1} parent=47 // pred_region
          %s4306 = smul.u32 8, %s28
          %p4307 = scmp.lt.s32.totalorder %s29, 1
          %s4308 = scalar_select %p4307, %s29, 1
          %p4309 = scmp.lt.s32.totalorder %s4306, 7
          %s4310 = scalar_select %p4309, %s4306, 7
          %s4311 = smul.addr %s4310, 16
          %s4312 = smul.addr %s4308, 128
          %s4313 = sadd.s32 %s4311, %s4312
          %s4314 = smul.addr %s4313, 8
          %s4315 = scalar_lea.vmem %s2, %s4314
        $region52: #{tpu_custom_call.1} parent=47 // pred_fallthru
          _
        // Predicated region
        $region53: #{tpu_custom_call.1} parent=47 // pred_check
          %p4316 = pneg %p142
        $region54: #{tpu_custom_call.1} parent=47 // pred_check_branch
          %4318 = sbr.rel (%p4316) target = $region56
        $region55: #{tpu_custom_call.1} parent=47 // pred_region
          %s4319 = sand.u32 %s127, 1
          %s4320 = scalar_lea.sflag [#allocation4], %s4319
          %s4321 = sand.u32 %s127, 1
          %s4322 = smul.addr %s4321, 1024
          %s4323 = scalar_lea.vmem [#allocation7], %s4322
          %4324 = dma.done %s4320, 16384
        $region56: #{tpu_custom_call.1} parent=47 // pred_fallthru
          _
      $region48: #{tpu_custom_call.1} parent=5 // pred_fallthru
        _
    $region6: #{tpu_custom_call.1} parent=1 // loop_footer
      %s21 = sadd.s32 1, %s17
    $region7: #{tpu_custom_call.1} parent=1 // loop_footer_branch
      %16 = sbr.rel target = $region3
    $region8: #{tpu_custom_call.1} parent=1 // loop_exit
      _
    %4325 = vsyncpa [#allocation3], 1
    %s4326 = scalar_lea.sflag [#allocation3], 1
    %4327 = vsyncpa %s4326, 1
    %4328 = vsyncpa [#allocation6], 1
    %4329 = vsyncpa [#allocation4], 1
    %s4330 = scalar_lea.sflag [#allocation4], 1
    %4331 = vsyncpa %s4330, 1

</llo_original>
